<compile_context>
chip_gen: v7x
topology: tpu7x:2x2x1
jax: 0.10.0
libtpu: 0.0.40
codegen_flags: <defaults>
</compile_context>

<pallas_src>
import jax
import jax.numpy as jnp
import numpy as np
from jax.experimental import pallas as pl
from jax.experimental.pallas import tpu as pltpu


# ------------------------ host-side structured weights ----------------------

def _conv_band_matrix(w, in_w, out_w, stride):
    """Conv weight [OC, C, KH, KW] -> banded matmul slabs [KH, C*in_w, OC*out_w].

    With activations laid out as rows = spatial H, cols = c*in_w + w, the k-th
    slab maps input rows (stride*oh + k) to the conv contribution laid out as
    cols = oc*out_w + ow.  Summing the KH slab-matmuls gives the full conv.
    """
    oc, cin, kh, kw = w.shape
    band = np.zeros((kh, cin * in_w, oc * out_w), np.float32)
    ow = np.arange(out_w)
    for k in range(kh):
        for c in range(cin):
            for q in range(kw):
                rows = c * in_w + stride * ow + q
                for o in range(oc):
                    band[k, rows, o * out_w + ow] = w[o, c, k, q]
    return band


def _row_select(out_rows, in_rows, stride, offset):
    """0/1 matrix S with S[p, stride*p + offset] = 1 (row gather by matmul)."""
    s = np.zeros((out_rows, in_rows), np.float32)
    s[np.arange(out_rows), stride * np.arange(out_rows) + offset] = 1.0
    return s


def _pool_col_select(channels, in_w, out_w, offset):
    """0/1 matrix T with T[c*in_w + 2*p + offset, c*out_w + p] = 1."""
    t = np.zeros((channels * in_w, channels * out_w), np.float32)
    p = np.arange(out_w)
    for c in range(channels):
        t[c * in_w + 2 * p + offset, c * out_w + p] = 1.0
    return t


def prepare_operands(params):
    """Pre-bake all constant operands consumed by the fused kernel."""
    c1_w = np.asarray(params["c1_w"], np.float32)   # [6, 3, 5, 5]
    c1_b = np.asarray(params["c1_b"], np.float32)
    c3_w = np.asarray(params["c3_w"], np.float32)   # [12, 6, 3, 3]
    c3_b = np.asarray(params["c3_b"], np.float32)
    c5_w = np.asarray(params["c5_w"], np.float32)   # [120, 12, 5, 5]
    c5_b = np.asarray(params["c5_b"], np.float32)
    f6_w = np.asarray(params["f6_w"], np.float32)   # [84, 120]
    f6_b = np.asarray(params["f6_b"], np.float32)
    f7_w = np.asarray(params["f7_w"], np.float32)   # [10, 84]
    f7_b = np.asarray(params["f7_b"], np.float32)

    bf16, f32 = jnp.bfloat16, jnp.float32
    return {
        # C1: 5x5 s1, 3->6.  slabs [5, 150, 276]; bias replicated per column.
        "w1": jnp.asarray(_conv_band_matrix(c1_w, 50, 46, 1), bf16),
        "b1": jnp.asarray(np.repeat(c1_b, 46)[None, :], f32),          # [1, 276]
        # S2: 2x2/s2 max pool selectors (rows 46->23, cols 6*46 -> 6*23).
        "s2e": jnp.asarray(_row_select(23, 46, 2, 0), f32),
        "s2o": jnp.asarray(_row_select(23, 46, 2, 1), f32),
        "t2e": jnp.asarray(_pool_col_select(6, 46, 23, 0), f32),
        "t2o": jnp.asarray(_pool_col_select(6, 46, 23, 1), f32),
        # C3: 3x3 s2, 6->12.  Stride-2 row gather + slabs [3, 138, 132].
        "s3": jnp.asarray(np.stack([_row_select(11, 23, 2, k) for k in range(3)]), f32),
        "w3": jnp.asarray(_conv_band_matrix(c3_w, 23, 11, 2), bf16),
        "b3": jnp.asarray(np.repeat(c3_b, 11)[None, :], f32),          # [1, 132]
        # S4: pool selectors (rows 11->5, cols 12*11 -> 12*5).
        "s4e": jnp.asarray(_row_select(5, 11, 2, 0), f32),
        "s4o": jnp.asarray(_row_select(5, 11, 2, 1), f32),
        "t4e": jnp.asarray(_pool_col_select(12, 11, 5, 0), f32),
        "t4o": jnp.asarray(_pool_col_select(12, 11, 5, 1), f32),
        # C5: 5x5 over the full 5x5x12 map -> 120: per-row slabs [5, 60, 120].
        "w5": jnp.asarray(np.transpose(c5_w, (2, 1, 3, 0)).reshape(5, 60, 120), bf16),
        "b5": jnp.asarray(c5_b[None, :], f32),                          # [1, 120]
        # FC head.
        "w6": jnp.asarray(f6_w.T, bf16),                                # [120, 84]
        "b6": jnp.asarray(f6_b[None, :], f32),
        "w7": jnp.asarray(f7_w.T, bf16),                                # [84, 10]
        "b7": jnp.asarray(f7_b[None, :], f32),
    }


_OPERAND_ORDER = ("w1", "b1", "s2e", "s2o", "t2e", "t2o", "s3", "w3", "b3",
                  "s4e", "s4o", "t4e", "t4o", "w5", "b5", "w6", "b6", "w7", "b7")


# ------------------------------ fused kernel --------------------------------

def _lenet5_kernel(x_ref, w1_ref, b1_ref, s2e_ref, s2o_ref, t2e_ref, t2o_ref,
                   s3_ref, w3_ref, b3_ref, s4e_ref, s4o_ref, t4e_ref, t4o_ref,
                   w5_ref, b5_ref, w6_ref, b6_ref, w7_ref, b7_ref, o_ref):
    f32, bf16 = jnp.float32, jnp.bfloat16

    # ---- C1: 5x5 conv, stride 1, 3 -> 6, ReLU.  Layout: [46, 6*46] --------
    acc = jnp.zeros((46, 276), f32)
    for kh in range(5):
        xk = x_ref[0, kh:kh + 46, :].astype(bf16)        # [46, 150]
        acc = acc + jnp.dot(xk, w1_ref[kh], preferred_element_type=f32)
    y = jnp.maximum(acc + b1_ref[...], 0.0)              # [46, 276]

    # ---- S2: 2x2 max pool, stride 2 (selection matmuls) -> [23, 6*23] ------
    r = jnp.maximum(jnp.dot(s2e_ref[...], y, preferred_element_type=f32),
                    jnp.dot(s2o_ref[...], y, preferred_element_type=f32))    # [23, 276]
    p1 = jnp.maximum(jnp.dot(r, t2e_ref[...], preferred_element_type=f32),
                     jnp.dot(r, t2o_ref[...], preferred_element_type=f32))   # [23, 138]

    # ---- C3: 3x3 conv, stride 2, 6 -> 12, ReLU -> [11, 12*11] --------------
    acc = jnp.zeros((11, 132), f32)
    for kh in range(3):
        rows = jnp.dot(s3_ref[kh], p1, preferred_element_type=f32)           # [11, 138]
        acc = acc + jnp.dot(rows.astype(bf16), w3_ref[kh],
                            preferred_element_type=f32)
    y = jnp.maximum(acc + b3_ref[...], 0.0)              # [11, 132]

    # ---- S4: 2x2 max pool, stride 2 -> [5, 12*5] ---------------------------
    r = jnp.maximum(jnp.dot(s4e_ref[...], y, preferred_element_type=f32),
                    jnp.dot(s4o_ref[...], y, preferred_element_type=f32))    # [5, 132]
    p2 = jnp.maximum(jnp.dot(r, t4e_ref[...], preferred_element_type=f32),
                     jnp.dot(r, t4o_ref[...], preferred_element_type=f32))   # [5, 60]

    # ---- C5: 5x5 conv over full map, 12 -> 120, ReLU -> [1, 120] ------------
    acc = jnp.zeros((1, 120), f32)
    for hh in range(5):
        acc = acc + jnp.dot(p2[hh:hh + 1, :].astype(bf16), w5_ref[hh],
                            preferred_element_type=f32)
    h5 = jnp.maximum(acc + b5_ref[...], 0.0)             # [1, 120]

    # ---- F6 -> ReLU -> F7 -> LogSoftmax ------------------------------------
    h6 = jnp.maximum(jnp.dot(h5.astype(bf16), w6_ref[...],
                             preferred_element_type=f32) + b6_ref[...], 0.0)  # [1, 84]
    z = jnp.dot(h6.astype(bf16), w7_ref[...],
                preferred_element_type=f32) + b7_ref[...]                     # [1, 10]
    m = jnp.max(z, axis=-1, keepdims=True)
    e = jnp.exp(z - m)
    lse = jnp.log(jnp.sum(e, axis=-1, keepdims=True))
    o_ref[0] = (z - m) - lse


def _const_spec(arr):
    if arr.ndim == 2:
        return pl.BlockSpec(arr.shape, lambda i: (0, 0))
    return pl.BlockSpec(arr.shape, lambda i: (0, 0, 0))


def lenet5_forward(img, ops):
    """img: [N, 3, 50, 50] (NCHW, like PyTorch) -> log-probs [N, 10]."""
    n, c, h, w = img.shape
    assert (c, h, w) == (3, 50, 50), "LeNet5 geometry requires 3x50x50 input"
    # Channel-blocked column layout: [N, H, C*W], column index = c*W + w.
    x2d = img.transpose(0, 2, 1, 3).reshape(n, h, c * w)

    consts = [ops[k] for k in _OPERAND_ORDER]
    in_specs = [pl.BlockSpec((1, h, c * w), lambda i: (i, 0, 0))]
    in_specs += [_const_spec(a) for a in consts]

    out = pl.pallas_call(
        _lenet5_kernel,
        out_shape=jax.ShapeDtypeStruct((n, 1, 10), jnp.float32),
        grid=(n,),
        in_specs=in_specs,
        out_specs=pl.BlockSpec((1, 1, 10), lambda i: (i, 0, 0)),
        compiler_params=pltpu.CompilerParams(
            dimension_semantics=("parallel",)),
    )(x2d, *consts)
    return out.reshape(n, 10)


# ------------------------------ param init ----------------------------------

def _uniform(key, shape, bound):
    return jax.random.uniform(key, shape, jnp.float32, -bound, bound)


def init_params(key):
    ks = jax.random.split(key, 10)
    params = {}

    def conv(kw_, kb_, oc, ic, kh, kw):
        bound = 1.0 / np.sqrt(ic * kh * kw)
        return (_uniform(kw_, (oc, ic, kh, kw), bound),
                _uniform(kb_, (oc,), bound))

    def lin(kw_, kb_, out_f, in_f):
        bound = 1.0 / np.sqrt(in_f)
        return (_uniform(kw_, (out_f, in_f), bound),
                _uniform(kb_, (out_f,), bound))

    params["c1_w"], params["c1_b"] = conv(ks[0], ks[1], 6, 3, 5, 5)
    params["c3_w"], params["c3_b"] = conv(ks[2], ks[3], 12, 6, 3, 3)
    params["c5_w"], params["c5_b"] = conv(ks[4], ks[5], 120, 12, 5, 5)
    params["f6_w"], params["f6_b"] = lin(ks[6], ks[7], 84, 120)
    params["f7_w"], params["f7_b"] = lin(ks[8], ks[9], 10, 84)
    return params


# --------------------------------- main --------------------------------------

if __name__ == "__main__":
    key = jax.random.PRNGKey(0)
    k_params, k_img = jax.random.split(key)
    params = init_params(k_params)
    ops = prepare_operands(params)

    # LeNet5 geometry requires 3x50x50 input so that c5 yields 120@1x1.
    img = jax.random.normal(k_img, (2, 3, 50, 50), dtype=jnp.float32)

    fwd = jax.jit(lenet5_forward)
    out = jax.block_until_ready(fwd(img, ops))

    assert out.shape == (2, 10)
    assert bool(jnp.all(jnp.isfinite(out)))
    # log-softmax rows must (log-)normalize to 0.
    lse = jax.scipy.special.logsumexp(out, axis=-1)
    assert bool(jnp.all(jnp.abs(lse) < 1e-3))
    print("KERNEL_OK")
</pallas_src>

<mosaic_0001>
module attributes {stable_mosaic.version = 11 : i64} {
  func.func @_lenet5_kernel(%arg0: i32, %arg1: memref<1x50x150xf32, #tpu.memory_space<vmem>>, %arg2: memref<5x150x276xbf16, #tpu.memory_space<vmem>>, %arg3: memref<1x276xf32, #tpu.memory_space<vmem>>, %arg4: memref<23x46xf32, #tpu.memory_space<vmem>>, %arg5: memref<23x46xf32, #tpu.memory_space<vmem>>, %arg6: memref<276x138xf32, #tpu.memory_space<vmem>>, %arg7: memref<276x138xf32, #tpu.memory_space<vmem>>, %arg8: memref<3x11x23xf32, #tpu.memory_space<vmem>>, %arg9: memref<3x138x132xbf16, #tpu.memory_space<vmem>>, %arg10: memref<1x132xf32, #tpu.memory_space<vmem>>, %arg11: memref<5x11xf32, #tpu.memory_space<vmem>>, %arg12: memref<5x11xf32, #tpu.memory_space<vmem>>, %arg13: memref<132x60xf32, #tpu.memory_space<vmem>>, %arg14: memref<132x60xf32, #tpu.memory_space<vmem>>, %arg15: memref<5x60x120xbf16, #tpu.memory_space<vmem>>, %arg16: memref<1x120xf32, #tpu.memory_space<vmem>>, %arg17: memref<120x84xbf16, #tpu.memory_space<vmem>>, %arg18: memref<1x84xf32, #tpu.memory_space<vmem>>, %arg19: memref<84x10xbf16, #tpu.memory_space<vmem>>, %arg20: memref<1x10xf32, #tpu.memory_space<vmem>>, %arg21: memref<1x1x10xf32, #tpu.memory_space<vmem>>) attributes {dimension_semantics = [#tpu.dimension_semantics<parallel>], iteration_bounds = array<i64: 2>, scalar_prefetch = 0 : i64, scratch_operands = 0 : i64, tpu.core_type = #tpu.core_type<tc>, window_params = [{transform_indices = @transform_0, window_bounds = array<i64: 1, 50, 150>}, {pipeline_mode = #tpu.pipeline_mode<synchronous>, transform_indices = @transform_1, window_bounds = array<i64: 5, 150, 276>}, {pipeline_mode = #tpu.pipeline_mode<synchronous>, transform_indices = @transform_2, window_bounds = array<i64: 1, 276>}, {pipeline_mode = #tpu.pipeline_mode<synchronous>, transform_indices = @transform_3, window_bounds = array<i64: 23, 46>}, {pipeline_mode = #tpu.pipeline_mode<synchronous>, transform_indices = @transform_4, window_bounds = array<i64: 23, 46>}, {pipeline_mode = #tpu.pipeline_mode<synchronous>, transform_indices = @transform_5, window_bounds = array<i64: 276, 138>}, {pipeline_mode = #tpu.pipeline_mode<synchronous>, transform_indices = @transform_6, window_bounds = array<i64: 276, 138>}, {pipeline_mode = #tpu.pipeline_mode<synchronous>, transform_indices = @transform_7, window_bounds = array<i64: 3, 11, 23>}, {pipeline_mode = #tpu.pipeline_mode<synchronous>, transform_indices = @transform_8, window_bounds = array<i64: 3, 138, 132>}, {pipeline_mode = #tpu.pipeline_mode<synchronous>, transform_indices = @transform_9, window_bounds = array<i64: 1, 132>}, {pipeline_mode = #tpu.pipeline_mode<synchronous>, transform_indices = @transform_10, window_bounds = array<i64: 5, 11>}, {pipeline_mode = #tpu.pipeline_mode<synchronous>, transform_indices = @transform_11, window_bounds = array<i64: 5, 11>}, {pipeline_mode = #tpu.pipeline_mode<synchronous>, transform_indices = @transform_12, window_bounds = array<i64: 132, 60>}, {pipeline_mode = #tpu.pipeline_mode<synchronous>, transform_indices = @transform_13, window_bounds = array<i64: 132, 60>}, {pipeline_mode = #tpu.pipeline_mode<synchronous>, transform_indices = @transform_14, window_bounds = array<i64: 5, 60, 120>}, {pipeline_mode = #tpu.pipeline_mode<synchronous>, transform_indices = @transform_15, window_bounds = array<i64: 1, 120>}, {pipeline_mode = #tpu.pipeline_mode<synchronous>, transform_indices = @transform_16, window_bounds = array<i64: 120, 84>}, {pipeline_mode = #tpu.pipeline_mode<synchronous>, transform_indices = @transform_17, window_bounds = array<i64: 1, 84>}, {pipeline_mode = #tpu.pipeline_mode<synchronous>, transform_indices = @transform_18, window_bounds = array<i64: 84, 10>}, {pipeline_mode = #tpu.pipeline_mode<synchronous>, transform_indices = @transform_19, window_bounds = array<i64: 1, 10>}, {transform_indices = @transform_20, window_bounds = array<i64: 1, 1, 10>}]} {
    %cst = arith.constant 0.000000e+00 : f32
    %0 = vector.broadcast %cst : f32 to vector<46x276xf32>
    %c0 = arith.constant 0 : index
    %c0_0 = arith.constant 0 : index
    %c0_1 = arith.constant 0 : index
    %1 = vector.load %arg1[%c0, %c0_0, %c0_1] : memref<1x50x150xf32, #tpu.memory_space<vmem>>, vector<1x46x150xf32>
    %2 = vector.shape_cast %1 : vector<1x46x150xf32> to vector<46x150xf32>
    %3 = arith.truncf %2 : vector<46x150xf32> to vector<46x150xbf16>
    %c0_2 = arith.constant 0 : index
    %c0_3 = arith.constant 0 : index
    %c0_4 = arith.constant 0 : index
    %4 = vector.load %arg2[%c0_2, %c0_3, %c0_4] : memref<5x150x276xbf16, #tpu.memory_space<vmem>>, vector<1x150x276xbf16>
    %5 = vector.shape_cast %4 : vector<1x150x276xbf16> to vector<150x276xbf16>
    %cst_5 = arith.constant dense<0.000000e+00> : vector<46x276xf32>
    %6 = tpu.matmul %3, %5, %cst_5 {dimension_numbers = #tpu.dot_dimension_numbers<[1], [0], [0], [1], [0, 0, 1, 1], [], []>} : vector<46x150xbf16>, vector<150x276xbf16>, vector<46x276xf32> -> vector<46x276xf32>
    %7 = arith.addf %0, %6 : vector<46x276xf32>
    %c0_6 = arith.constant 0 : index
    %c1 = arith.constant 1 : index
    %c0_7 = arith.constant 0 : index
    %8 = vector.load %arg1[%c0_6, %c1, %c0_7] : memref<1x50x150xf32, #tpu.memory_space<vmem>>, vector<1x46x150xf32>
    %9 = vector.shape_cast %8 : vector<1x46x150xf32> to vector<46x150xf32>
    %10 = arith.truncf %9 : vector<46x150xf32> to vector<46x150xbf16>
    %c1_8 = arith.constant 1 : index
    %c0_9 = arith.constant 0 : index
    %c0_10 = arith.constant 0 : index
    %11 = vector.load %arg2[%c1_8, %c0_9, %c0_10] : memref<5x150x276xbf16, #tpu.memory_space<vmem>>, vector<1x150x276xbf16>
    %12 = vector.shape_cast %11 : vector<1x150x276xbf16> to vector<150x276xbf16>
    %cst_11 = arith.constant dense<0.000000e+00> : vector<46x276xf32>
    %13 = tpu.matmul %10, %12, %cst_11 {dimension_numbers = #tpu.dot_dimension_numbers<[1], [0], [0], [1], [0, 0, 1, 1], [], []>} : vector<46x150xbf16>, vector<150x276xbf16>, vector<46x276xf32> -> vector<46x276xf32>
    %14 = arith.addf %7, %13 : vector<46x276xf32>
    %c0_12 = arith.constant 0 : index
    %c2 = arith.constant 2 : index
    %c0_13 = arith.constant 0 : index
    %15 = vector.load %arg1[%c0_12, %c2, %c0_13] : memref<1x50x150xf32, #tpu.memory_space<vmem>>, vector<1x46x150xf32>
    %16 = vector.shape_cast %15 : vector<1x46x150xf32> to vector<46x150xf32>
    %17 = arith.truncf %16 : vector<46x150xf32> to vector<46x150xbf16>
    %c2_14 = arith.constant 2 : index
    %c0_15 = arith.constant 0 : index
    %c0_16 = arith.constant 0 : index
    %18 = vector.load %arg2[%c2_14, %c0_15, %c0_16] : memref<5x150x276xbf16, #tpu.memory_space<vmem>>, vector<1x150x276xbf16>
    %19 = vector.shape_cast %18 : vector<1x150x276xbf16> to vector<150x276xbf16>
    %cst_17 = arith.constant dense<0.000000e+00> : vector<46x276xf32>
    %20 = tpu.matmul %17, %19, %cst_17 {dimension_numbers = #tpu.dot_dimension_numbers<[1], [0], [0], [1], [0, 0, 1, 1], [], []>} : vector<46x150xbf16>, vector<150x276xbf16>, vector<46x276xf32> -> vector<46x276xf32>
    %21 = arith.addf %14, %20 : vector<46x276xf32>
    %c0_18 = arith.constant 0 : index
    %c3 = arith.constant 3 : index
    %c0_19 = arith.constant 0 : index
    %22 = vector.load %arg1[%c0_18, %c3, %c0_19] : memref<1x50x150xf32, #tpu.memory_space<vmem>>, vector<1x46x150xf32>
    %23 = vector.shape_cast %22 : vector<1x46x150xf32> to vector<46x150xf32>
    %24 = arith.truncf %23 : vector<46x150xf32> to vector<46x150xbf16>
    %c3_20 = arith.constant 3 : index
    %c0_21 = arith.constant 0 : index
    %c0_22 = arith.constant 0 : index
    %25 = vector.load %arg2[%c3_20, %c0_21, %c0_22] : memref<5x150x276xbf16, #tpu.memory_space<vmem>>, vector<1x150x276xbf16>
    %26 = vector.shape_cast %25 : vector<1x150x276xbf16> to vector<150x276xbf16>
    %cst_23 = arith.constant dense<0.000000e+00> : vector<46x276xf32>
    %27 = tpu.matmul %24, %26, %cst_23 {dimension_numbers = #tpu.dot_dimension_numbers<[1], [0], [0], [1], [0, 0, 1, 1], [], []>} : vector<46x150xbf16>, vector<150x276xbf16>, vector<46x276xf32> -> vector<46x276xf32>
    %28 = arith.addf %21, %27 : vector<46x276xf32>
    %c0_24 = arith.constant 0 : index
    %c4 = arith.constant 4 : index
    %c0_25 = arith.constant 0 : index
    %29 = vector.load %arg1[%c0_24, %c4, %c0_25] : memref<1x50x150xf32, #tpu.memory_space<vmem>>, vector<1x46x150xf32>
    %30 = vector.shape_cast %29 : vector<1x46x150xf32> to vector<46x150xf32>
    %31 = arith.truncf %30 : vector<46x150xf32> to vector<46x150xbf16>
    %c4_26 = arith.constant 4 : index
    %c0_27 = arith.constant 0 : index
    %c0_28 = arith.constant 0 : index
    %32 = vector.load %arg2[%c4_26, %c0_27, %c0_28] : memref<5x150x276xbf16, #tpu.memory_space<vmem>>, vector<1x150x276xbf16>
    %33 = vector.shape_cast %32 : vector<1x150x276xbf16> to vector<150x276xbf16>
    %cst_29 = arith.constant dense<0.000000e+00> : vector<46x276xf32>
    %34 = tpu.matmul %31, %33, %cst_29 {dimension_numbers = #tpu.dot_dimension_numbers<[1], [0], [0], [1], [0, 0, 1, 1], [], []>} : vector<46x150xbf16>, vector<150x276xbf16>, vector<46x276xf32> -> vector<46x276xf32>
    %35 = arith.addf %28, %34 : vector<46x276xf32>
    %c0_30 = arith.constant 0 : index
    %c0_31 = arith.constant 0 : index
    %36 = vector.load %arg3[%c0_30, %c0_31] : memref<1x276xf32, #tpu.memory_space<vmem>>, vector<1x276xf32>
    %37 = vector.broadcast %36 : vector<1x276xf32> to vector<46x276xf32>
    %38 = arith.addf %35, %37 : vector<46x276xf32>
    %cst_32 = arith.constant 0.000000e+00 : f32
    %39 = vector.broadcast %cst_32 : f32 to vector<46x276xf32>
    %40 = arith.maximumf %38, %39 : vector<46x276xf32>
    %c0_33 = arith.constant 0 : index
    %c0_34 = arith.constant 0 : index
    %41 = vector.load %arg4[%c0_33, %c0_34] : memref<23x46xf32, #tpu.memory_space<vmem>>, vector<23x46xf32>
    %cst_35 = arith.constant dense<0.000000e+00> : vector<23x276xf32>
    %42 = tpu.matmul %41, %40, %cst_35 {dimension_numbers = #tpu.dot_dimension_numbers<[1], [0], [0], [1], [0, 0, 1, 1], [], []>} : vector<23x46xf32>, vector<46x276xf32>, vector<23x276xf32> -> vector<23x276xf32>
    %c0_36 = arith.constant 0 : index
    %c0_37 = arith.constant 0 : index
    %43 = vector.load %arg5[%c0_36, %c0_37] : memref<23x46xf32, #tpu.memory_space<vmem>>, vector<23x46xf32>
    %cst_38 = arith.constant dense<0.000000e+00> : vector<23x276xf32>
    %44 = tpu.matmul %43, %40, %cst_38 {dimension_numbers = #tpu.dot_dimension_numbers<[1], [0], [0], [1], [0, 0, 1, 1], [], []>} : vector<23x46xf32>, vector<46x276xf32>, vector<23x276xf32> -> vector<23x276xf32>
    %45 = arith.maximumf %42, %44 : vector<23x276xf32>
    %c0_39 = arith.constant 0 : index
    %c0_40 = arith.constant 0 : index
    %46 = vector.load %arg6[%c0_39, %c0_40] : memref<276x138xf32, #tpu.memory_space<vmem>>, vector<276x138xf32>
    %cst_41 = arith.constant dense<0.000000e+00> : vector<23x138xf32>
    %47 = tpu.matmul %45, %46, %cst_41 {dimension_numbers = #tpu.dot_dimension_numbers<[1], [0], [0], [1], [0, 0, 1, 1], [], []>} : vector<23x276xf32>, vector<276x138xf32>, vector<23x138xf32> -> vector<23x138xf32>
    %c0_42 = arith.constant 0 : index
    %c0_43 = arith.constant 0 : index
    %48 = vector.load %arg7[%c0_42, %c0_43] : memref<276x138xf32, #tpu.memory_space<vmem>>, vector<276x138xf32>
    %cst_44 = arith.constant dense<0.000000e+00> : vector<23x138xf32>
    %49 = tpu.matmul %45, %48, %cst_44 {dimension_numbers = #tpu.dot_dimension_numbers<[1], [0], [0], [1], [0, 0, 1, 1], [], []>} : vector<23x276xf32>, vector<276x138xf32>, vector<23x138xf32> -> vector<23x138xf32>
    %50 = arith.maximumf %47, %49 : vector<23x138xf32>
    %cst_45 = arith.constant 0.000000e+00 : f32
    %51 = vector.broadcast %cst_45 : f32 to vector<11x132xf32>
    %c0_46 = arith.constant 0 : index
    %c0_47 = arith.constant 0 : index
    %c0_48 = arith.constant 0 : index
    %52 = vector.load %arg8[%c0_46, %c0_47, %c0_48] : memref<3x11x23xf32, #tpu.memory_space<vmem>>, vector<1x11x23xf32>
    %53 = vector.shape_cast %52 : vector<1x11x23xf32> to vector<11x23xf32>
    %cst_49 = arith.constant dense<0.000000e+00> : vector<11x138xf32>
    %54 = tpu.matmul %53, %50, %cst_49 {dimension_numbers = #tpu.dot_dimension_numbers<[1], [0], [0], [1], [0, 0, 1, 1], [], []>} : vector<11x23xf32>, vector<23x138xf32>, vector<11x138xf32> -> vector<11x138xf32>
    %55 = arith.truncf %54 : vector<11x138xf32> to vector<11x138xbf16>
    %c0_50 = arith.constant 0 : index
    %c0_51 = arith.constant 0 : index
    %c0_52 = arith.constant 0 : index
    %56 = vector.load %arg9[%c0_50, %c0_51, %c0_52] : memref<3x138x132xbf16, #tpu.memory_space<vmem>>, vector<1x138x132xbf16>
    %57 = vector.shape_cast %56 : vector<1x138x132xbf16> to vector<138x132xbf16>
    %cst_53 = arith.constant dense<0.000000e+00> : vector<11x132xf32>
    %58 = tpu.matmul %55, %57, %cst_53 {dimension_numbers = #tpu.dot_dimension_numbers<[1], [0], [0], [1], [0, 0, 1, 1], [], []>} : vector<11x138xbf16>, vector<138x132xbf16>, vector<11x132xf32> -> vector<11x132xf32>
    %59 = arith.addf %51, %58 : vector<11x132xf32>
    %c1_54 = arith.constant 1 : index
    %c0_55 = arith.constant 0 : index
    %c0_56 = arith.constant 0 : index
    %60 = vector.load %arg8[%c1_54, %c0_55, %c0_56] : memref<3x11x23xf32, #tpu.memory_space<vmem>>, vector<1x11x23xf32>
    %61 = vector.shape_cast %60 : vector<1x11x23xf32> to vector<11x23xf32>
    %cst_57 = arith.constant dense<0.000000e+00> : vector<11x138xf32>
    %62 = tpu.matmul %61, %50, %cst_57 {dimension_numbers = #tpu.dot_dimension_numbers<[1], [0], [0], [1], [0, 0, 1, 1], [], []>} : vector<11x23xf32>, vector<23x138xf32>, vector<11x138xf32> -> vector<11x138xf32>
    %63 = arith.truncf %62 : vector<11x138xf32> to vector<11x138xbf16>
    %c1_58 = arith.constant 1 : index
    %c0_59 = arith.constant 0 : index
    %c0_60 = arith.constant 0 : index
    %64 = vector.load %arg9[%c1_58, %c0_59, %c0_60] : memref<3x138x132xbf16, #tpu.memory_space<vmem>>, vector<1x138x132xbf16>
    %65 = vector.shape_cast %64 : vector<1x138x132xbf16> to vector<138x132xbf16>
    %cst_61 = arith.constant dense<0.000000e+00> : vector<11x132xf32>
    %66 = tpu.matmul %63, %65, %cst_61 {dimension_numbers = #tpu.dot_dimension_numbers<[1], [0], [0], [1], [0, 0, 1, 1], [], []>} : vector<11x138xbf16>, vector<138x132xbf16>, vector<11x132xf32> -> vector<11x132xf32>
    %67 = arith.addf %59, %66 : vector<11x132xf32>
    %c2_62 = arith.constant 2 : index
    %c0_63 = arith.constant 0 : index
    %c0_64 = arith.constant 0 : index
    %68 = vector.load %arg8[%c2_62, %c0_63, %c0_64] : memref<3x11x23xf32, #tpu.memory_space<vmem>>, vector<1x11x23xf32>
    %69 = vector.shape_cast %68 : vector<1x11x23xf32> to vector<11x23xf32>
    %cst_65 = arith.constant dense<0.000000e+00> : vector<11x138xf32>
    %70 = tpu.matmul %69, %50, %cst_65 {dimension_numbers = #tpu.dot_dimension_numbers<[1], [0], [0], [1], [0, 0, 1, 1], [], []>} : vector<11x23xf32>, vector<23x138xf32>, vector<11x138xf32> -> vector<11x138xf32>
    %71 = arith.truncf %70 : vector<11x138xf32> to vector<11x138xbf16>
    %c2_66 = arith.constant 2 : index
    %c0_67 = arith.constant 0 : index
    %c0_68 = arith.constant 0 : index
    %72 = vector.load %arg9[%c2_66, %c0_67, %c0_68] : memref<3x138x132xbf16, #tpu.memory_space<vmem>>, vector<1x138x132xbf16>
    %73 = vector.shape_cast %72 : vector<1x138x132xbf16> to vector<138x132xbf16>
    %cst_69 = arith.constant dense<0.000000e+00> : vector<11x132xf32>
    %74 = tpu.matmul %71, %73, %cst_69 {dimension_numbers = #tpu.dot_dimension_numbers<[1], [0], [0], [1], [0, 0, 1, 1], [], []>} : vector<11x138xbf16>, vector<138x132xbf16>, vector<11x132xf32> -> vector<11x132xf32>
    %75 = arith.addf %67, %74 : vector<11x132xf32>
    %c0_70 = arith.constant 0 : index
    %c0_71 = arith.constant 0 : index
    %76 = vector.load %arg10[%c0_70, %c0_71] : memref<1x132xf32, #tpu.memory_space<vmem>>, vector<1x132xf32>
    %77 = vector.broadcast %76 : vector<1x132xf32> to vector<11x132xf32>
    %78 = arith.addf %75, %77 : vector<11x132xf32>
    %cst_72 = arith.constant 0.000000e+00 : f32
    %79 = vector.broadcast %cst_72 : f32 to vector<11x132xf32>
    %80 = arith.maximumf %78, %79 : vector<11x132xf32>
    %c0_73 = arith.constant 0 : index
    %c0_74 = arith.constant 0 : index
    %81 = vector.load %arg11[%c0_73, %c0_74] : memref<5x11xf32, #tpu.memory_space<vmem>>, vector<5x11xf32>
    %cst_75 = arith.constant dense<0.000000e+00> : vector<5x132xf32>
    %82 = tpu.matmul %81, %80, %cst_75 {dimension_numbers = #tpu.dot_dimension_numbers<[1], [0], [0], [1], [0, 0, 1, 1], [], []>} : vector<5x11xf32>, vector<11x132xf32>, vector<5x132xf32> -> vector<5x132xf32>
    %c0_76 = arith.constant 0 : index
    %c0_77 = arith.constant 0 : index
    %83 = vector.load %arg12[%c0_76, %c0_77] : memref<5x11xf32, #tpu.memory_space<vmem>>, vector<5x11xf32>
    %cst_78 = arith.constant dense<0.000000e+00> : vector<5x132xf32>
    %84 = tpu.matmul %83, %80, %cst_78 {dimension_numbers = #tpu.dot_dimension_numbers<[1], [0], [0], [1], [0, 0, 1, 1], [], []>} : vector<5x11xf32>, vector<11x132xf32>, vector<5x132xf32> -> vector<5x132xf32>
    %85 = arith.maximumf %82, %84 : vector<5x132xf32>
    %c0_79 = arith.constant 0 : index
    %c0_80 = arith.constant 0 : index
    %86 = vector.load %arg13[%c0_79, %c0_80] : memref<132x60xf32, #tpu.memory_space<vmem>>, vector<132x60xf32>
    %cst_81 = arith.constant dense<0.000000e+00> : vector<5x60xf32>
    %87 = tpu.matmul %85, %86, %cst_81 {dimension_numbers = #tpu.dot_dimension_numbers<[1], [0], [0], [1], [0, 0, 1, 1], [], []>} : vector<5x132xf32>, vector<132x60xf32>, vector<5x60xf32> -> vector<5x60xf32>
    %c0_82 = arith.constant 0 : index
    %c0_83 = arith.constant 0 : index
    %88 = vector.load %arg14[%c0_82, %c0_83] : memref<132x60xf32, #tpu.memory_space<vmem>>, vector<132x60xf32>
    %cst_84 = arith.constant dense<0.000000e+00> : vector<5x60xf32>
    %89 = tpu.matmul %85, %88, %cst_84 {dimension_numbers = #tpu.dot_dimension_numbers<[1], [0], [0], [1], [0, 0, 1, 1], [], []>} : vector<5x132xf32>, vector<132x60xf32>, vector<5x60xf32> -> vector<5x60xf32>
    %90 = arith.maximumf %87, %89 : vector<5x60xf32>
    %cst_85 = arith.constant 0.000000e+00 : f32
    %91 = vector.broadcast %cst_85 : f32 to vector<1x120xf32>
    %92 = vector.extract_strided_slice %90 {offsets = [0, 0], sizes = [1, 60], strides = [1, 1]} : vector<5x60xf32> to vector<1x60xf32>
    %93 = arith.truncf %92 : vector<1x60xf32> to vector<1x60xbf16>
    %c0_86 = arith.constant 0 : index
    %c0_87 = arith.constant 0 : index
    %c0_88 = arith.constant 0 : index
    %94 = vector.load %arg15[%c0_86, %c0_87, %c0_88] : memref<5x60x120xbf16, #tpu.memory_space<vmem>>, vector<1x60x120xbf16>
    %95 = vector.shape_cast %94 : vector<1x60x120xbf16> to vector<60x120xbf16>
    %cst_89 = arith.constant dense<0.000000e+00> : vector<1x120xf32>
    %96 = tpu.matmul %93, %95, %cst_89 {dimension_numbers = #tpu.dot_dimension_numbers<[1], [0], [0], [1], [0, 0, 1, 1], [], []>} : vector<1x60xbf16>, vector<60x120xbf16>, vector<1x120xf32> -> vector<1x120xf32>
    %97 = arith.addf %91, %96 : vector<1x120xf32>
    %98 = vector.extract_strided_slice %90 {offsets = [1, 0], sizes = [1, 60], strides = [1, 1]} : vector<5x60xf32> to vector<1x60xf32>
    %99 = arith.truncf %98 : vector<1x60xf32> to vector<1x60xbf16>
    %c1_90 = arith.constant 1 : index
    %c0_91 = arith.constant 0 : index
    %c0_92 = arith.constant 0 : index
    %100 = vector.load %arg15[%c1_90, %c0_91, %c0_92] : memref<5x60x120xbf16, #tpu.memory_space<vmem>>, vector<1x60x120xbf16>
    %101 = vector.shape_cast %100 : vector<1x60x120xbf16> to vector<60x120xbf16>
    %cst_93 = arith.constant dense<0.000000e+00> : vector<1x120xf32>
    %102 = tpu.matmul %99, %101, %cst_93 {dimension_numbers = #tpu.dot_dimension_numbers<[1], [0], [0], [1], [0, 0, 1, 1], [], []>} : vector<1x60xbf16>, vector<60x120xbf16>, vector<1x120xf32> -> vector<1x120xf32>
    %103 = arith.addf %97, %102 : vector<1x120xf32>
    %104 = vector.extract_strided_slice %90 {offsets = [2, 0], sizes = [1, 60], strides = [1, 1]} : vector<5x60xf32> to vector<1x60xf32>
    %105 = arith.truncf %104 : vector<1x60xf32> to vector<1x60xbf16>
    %c2_94 = arith.constant 2 : index
    %c0_95 = arith.constant 0 : index
    %c0_96 = arith.constant 0 : index
    %106 = vector.load %arg15[%c2_94, %c0_95, %c0_96] : memref<5x60x120xbf16, #tpu.memory_space<vmem>>, vector<1x60x120xbf16>
    %107 = vector.shape_cast %106 : vector<1x60x120xbf16> to vector<60x120xbf16>
    %cst_97 = arith.constant dense<0.000000e+00> : vector<1x120xf32>
    %108 = tpu.matmul %105, %107, %cst_97 {dimension_numbers = #tpu.dot_dimension_numbers<[1], [0], [0], [1], [0, 0, 1, 1], [], []>} : vector<1x60xbf16>, vector<60x120xbf16>, vector<1x120xf32> -> vector<1x120xf32>
    %109 = arith.addf %103, %108 : vector<1x120xf32>
    %110 = vector.extract_strided_slice %90 {offsets = [3, 0], sizes = [1, 60], strides = [1, 1]} : vector<5x60xf32> to vector<1x60xf32>
    %111 = arith.truncf %110 : vector<1x60xf32> to vector<1x60xbf16>
    %c3_98 = arith.constant 3 : index
    %c0_99 = arith.constant 0 : index
    %c0_100 = arith.constant 0 : index
    %112 = vector.load %arg15[%c3_98, %c0_99, %c0_100] : memref<5x60x120xbf16, #tpu.memory_space<vmem>>, vector<1x60x120xbf16>
    %113 = vector.shape_cast %112 : vector<1x60x120xbf16> to vector<60x120xbf16>
    %cst_101 = arith.constant dense<0.000000e+00> : vector<1x120xf32>
    %114 = tpu.matmul %111, %113, %cst_101 {dimension_numbers = #tpu.dot_dimension_numbers<[1], [0], [0], [1], [0, 0, 1, 1], [], []>} : vector<1x60xbf16>, vector<60x120xbf16>, vector<1x120xf32> -> vector<1x120xf32>
    %115 = arith.addf %109, %114 : vector<1x120xf32>
    %116 = vector.extract_strided_slice %90 {offsets = [4, 0], sizes = [1, 60], strides = [1, 1]} : vector<5x60xf32> to vector<1x60xf32>
    %117 = arith.truncf %116 : vector<1x60xf32> to vector<1x60xbf16>
    %c4_102 = arith.constant 4 : index
    %c0_103 = arith.constant 0 : index
    %c0_104 = arith.constant 0 : index
    %118 = vector.load %arg15[%c4_102, %c0_103, %c0_104] : memref<5x60x120xbf16, #tpu.memory_space<vmem>>, vector<1x60x120xbf16>
    %119 = vector.shape_cast %118 : vector<1x60x120xbf16> to vector<60x120xbf16>
    %cst_105 = arith.constant dense<0.000000e+00> : vector<1x120xf32>
    %120 = tpu.matmul %117, %119, %cst_105 {dimension_numbers = #tpu.dot_dimension_numbers<[1], [0], [0], [1], [0, 0, 1, 1], [], []>} : vector<1x60xbf16>, vector<60x120xbf16>, vector<1x120xf32> -> vector<1x120xf32>
    %121 = arith.addf %115, %120 : vector<1x120xf32>
    %c0_106 = arith.constant 0 : index
    %c0_107 = arith.constant 0 : index
    %122 = vector.load %arg16[%c0_106, %c0_107] : memref<1x120xf32, #tpu.memory_space<vmem>>, vector<1x120xf32>
    %123 = arith.addf %121, %122 : vector<1x120xf32>
    %cst_108 = arith.constant 0.000000e+00 : f32
    %124 = vector.broadcast %cst_108 : f32 to vector<1x120xf32>
    %125 = arith.maximumf %123, %124 : vector<1x120xf32>
    %126 = arith.truncf %125 : vector<1x120xf32> to vector<1x120xbf16>
    %c0_109 = arith.constant 0 : index
    %c0_110 = arith.constant 0 : index
    %127 = vector.load %arg17[%c0_109, %c0_110] : memref<120x84xbf16, #tpu.memory_space<vmem>>, vector<120x84xbf16>
    %cst_111 = arith.constant dense<0.000000e+00> : vector<1x84xf32>
    %128 = tpu.matmul %126, %127, %cst_111 {dimension_numbers = #tpu.dot_dimension_numbers<[1], [0], [0], [1], [0, 0, 1, 1], [], []>} : vector<1x120xbf16>, vector<120x84xbf16>, vector<1x84xf32> -> vector<1x84xf32>
    %c0_112 = arith.constant 0 : index
    %c0_113 = arith.constant 0 : index
    %129 = vector.load %arg18[%c0_112, %c0_113] : memref<1x84xf32, #tpu.memory_space<vmem>>, vector<1x84xf32>
    %130 = arith.addf %128, %129 : vector<1x84xf32>
    %cst_114 = arith.constant 0.000000e+00 : f32
    %131 = vector.broadcast %cst_114 : f32 to vector<1x84xf32>
    %132 = arith.maximumf %130, %131 : vector<1x84xf32>
    %133 = arith.truncf %132 : vector<1x84xf32> to vector<1x84xbf16>
    %c0_115 = arith.constant 0 : index
    %c0_116 = arith.constant 0 : index
    %134 = vector.load %arg19[%c0_115, %c0_116] : memref<84x10xbf16, #tpu.memory_space<vmem>>, vector<84x10xbf16>
    %cst_117 = arith.constant dense<0.000000e+00> : vector<1x10xf32>
    %135 = tpu.matmul %133, %134, %cst_117 {dimension_numbers = #tpu.dot_dimension_numbers<[1], [0], [0], [1], [0, 0, 1, 1], [], []>} : vector<1x84xbf16>, vector<84x10xbf16>, vector<1x10xf32> -> vector<1x10xf32>
    %c0_118 = arith.constant 0 : index
    %c0_119 = arith.constant 0 : index
    %136 = vector.load %arg20[%c0_118, %c0_119] : memref<1x10xf32, #tpu.memory_space<vmem>>, vector<1x10xf32>
    %137 = arith.addf %135, %136 : vector<1x10xf32>
    %cst_120 = arith.constant dense<0xFF800000> : vector<1xf32>
    %138 = vector.multi_reduction <maximumf>, %137, %cst_120 [1] : vector<1x10xf32> to vector<1xf32>
    %139 = vector.shape_cast %138 : vector<1xf32> to vector<1x1xf32>
    %140 = vector.broadcast %139 : vector<1x1xf32> to vector<1x10xf32>
    %141 = arith.subf %137, %140 : vector<1x10xf32>
    %142 = math.exp %141 : vector<1x10xf32>
    %cst_121 = arith.constant dense<0.000000e+00> : vector<1xf32>
    %143 = vector.multi_reduction <add>, %142, %cst_121 [1] : vector<1x10xf32> to vector<1xf32>
    %144 = vector.shape_cast %143 : vector<1xf32> to vector<1x1xf32>
    %145 = math.log %144 : vector<1x1xf32>
    %146 = vector.broadcast %139 : vector<1x1xf32> to vector<1x10xf32>
    %147 = arith.subf %137, %146 : vector<1x10xf32>
    %148 = vector.broadcast %145 : vector<1x1xf32> to vector<1x10xf32>
    %149 = arith.subf %147, %148 : vector<1x10xf32>
    %c0_122 = arith.constant 0 : index
    %c0_123 = arith.constant 0 : index
    %c0_124 = arith.constant 0 : index
    %150 = vector.load %arg21[%c0_122, %c0_123, %c0_124] : memref<1x1x10xf32, #tpu.memory_space<vmem>>, vector<1x1x10xf32>
    %151 = vector.shape_cast %150 : vector<1x1x10xf32> to vector<1x10xf32>
    %152 = vector.shape_cast %149 : vector<1x10xf32> to vector<1x1x10xf32>
    tpu.vector_store %arg21[%c0_122, %c0_123, %c0_124], %152 {strides = array<i32>} : memref<1x1x10xf32, #tpu.memory_space<vmem>>, vector<1x1x10xf32>,
    return
  }
  func.func @transform_0(%arg0: i32) -> (i32, i32, i32) {
    %c0_i32 = arith.constant 0 : i32
    %c0_i32_0 = arith.constant 0 : i32
    %c0_i32_1 = arith.constant 0 : i32
    return %arg0, %c0_i32, %c0_i32_0 : i32, i32, i32
  }
  func.func @transform_1(%arg0: i32) -> (i32, i32, i32) {
    %c0_i32 = arith.constant 0 : i32
    %c0_i32_0 = arith.constant 0 : i32
    %c0_i32_1 = arith.constant 0 : i32
    %c0_i32_2 = arith.constant 0 : i32
    return %c0_i32, %c0_i32_0, %c0_i32_1 : i32, i32, i32
  }
  func.func @transform_2(%arg0: i32) -> (i32, i32) {
    %c0_i32 = arith.constant 0 : i32
    %c0_i32_0 = arith.constant 0 : i32
    %c0_i32_1 = arith.constant 0 : i32
    return %c0_i32, %c0_i32_0 : i32, i32
  }
  func.func @transform_3(%arg0: i32) -> (i32, i32) {
    %c0_i32 = arith.constant 0 : i32
    %c0_i32_0 = arith.constant 0 : i32
    %c0_i32_1 = arith.constant 0 : i32
    return %c0_i32, %c0_i32_0 : i32, i32
  }
  func.func @transform_4(%arg0: i32) -> (i32, i32) {
    %c0_i32 = arith.constant 0 : i32
    %c0_i32_0 = arith.constant 0 : i32
    %c0_i32_1 = arith.constant 0 : i32
    return %c0_i32, %c0_i32_0 : i32, i32
  }
  func.func @transform_5(%arg0: i32) -> (i32, i32) {
    %c0_i32 = arith.constant 0 : i32
    %c0_i32_0 = arith.constant 0 : i32
    %c0_i32_1 = arith.constant 0 : i32
    return %c0_i32, %c0_i32_0 : i32, i32
  }
  func.func @transform_6(%arg0: i32) -> (i32, i32) {
    %c0_i32 = arith.constant 0 : i32
    %c0_i32_0 = arith.constant 0 : i32
    %c0_i32_1 = arith.constant 0 : i32
    return %c0_i32, %c0_i32_0 : i32, i32
  }
  func.func @transform_7(%arg0: i32) -> (i32, i32, i32) {
    %c0_i32 = arith.constant 0 : i32
    %c0_i32_0 = arith.constant 0 : i32
    %c0_i32_1 = arith.constant 0 : i32
    %c0_i32_2 = arith.constant 0 : i32
    return %c0_i32, %c0_i32_0, %c0_i32_1 : i32, i32, i32
  }
  func.func @transform_8(%arg0: i32) -> (i32, i32, i32) {
    %c0_i32 = arith.constant 0 : i32
    %c0_i32_0 = arith.constant 0 : i32
    %c0_i32_1 = arith.constant 0 : i32
    %c0_i32_2 = arith.constant 0 : i32
    return %c0_i32, %c0_i32_0, %c0_i32_1 : i32, i32, i32
  }
  func.func @transform_9(%arg0: i32) -> (i32, i32) {
    %c0_i32 = arith.constant 0 : i32
    %c0_i32_0 = arith.constant 0 : i32
    %c0_i32_1 = arith.constant 0 : i32
    return %c0_i32, %c0_i32_0 : i32, i32
  }
  func.func @transform_10(%arg0: i32) -> (i32, i32) {
    %c0_i32 = arith.constant 0 : i32
    %c0_i32_0 = arith.constant 0 : i32
    %c0_i32_1 = arith.constant 0 : i32
    return %c0_i32, %c0_i32_0 : i32, i32
  }
  func.func @transform_11(%arg0: i32) -> (i32, i32) {
    %c0_i32 = arith.constant 0 : i32
    %c0_i32_0 = arith.constant 0 : i32
    %c0_i32_1 = arith.constant 0 : i32
    return %c0_i32, %c0_i32_0 : i32, i32
  }
  func.func @transform_12(%arg0: i32) -> (i32, i32) {
    %c0_i32 = arith.constant 0 : i32
    %c0_i32_0 = arith.constant 0 : i32
    %c0_i32_1 = arith.constant 0 : i32
    return %c0_i32, %c0_i32_0 : i32, i32
  }
  func.func @transform_13(%arg0: i32) -> (i32, i32) {
    %c0_i32 = arith.constant 0 : i32
    %c0_i32_0 = arith.constant 0 : i32
    %c0_i32_1 = arith.constant 0 : i32
    return %c0_i32, %c0_i32_0 : i32, i32
  }
  func.func @transform_14(%arg0: i32) -> (i32, i32, i32) {
    %c0_i32 = arith.constant 0 : i32
    %c0_i32_0 = arith.constant 0 : i32
    %c0_i32_1 = arith.constant 0 : i32
    %c0_i32_2 = arith.constant 0 : i32
    return %c0_i32, %c0_i32_0, %c0_i32_1 : i32, i32, i32
  }
  func.func @transform_15(%arg0: i32) -> (i32, i32) {
    %c0_i32 = arith.constant 0 : i32
    %c0_i32_0 = arith.constant 0 : i32
    %c0_i32_1 = arith.constant 0 : i32
    return %c0_i32, %c0_i32_0 : i32, i32
  }
  func.func @transform_16(%arg0: i32) -> (i32, i32) {
    %c0_i32 = arith.constant 0 : i32
    %c0_i32_0 = arith.constant 0 : i32
    %c0_i32_1 = arith.constant 0 : i32
    return %c0_i32, %c0_i32_0 : i32, i32
  }
  func.func @transform_17(%arg0: i32) -> (i32, i32) {
    %c0_i32 = arith.constant 0 : i32
    %c0_i32_0 = arith.constant 0 : i32
    %c0_i32_1 = arith.constant 0 : i32
    return %c0_i32, %c0_i32_0 : i32, i32
  }
  func.func @transform_18(%arg0: i32) -> (i32, i32) {
    %c0_i32 = arith.constant 0 : i32
    %c0_i32_0 = arith.constant 0 : i32
    %c0_i32_1 = arith.constant 0 : i32
    return %c0_i32, %c0_i32_0 : i32, i32
  }
  func.func @transform_19(%arg0: i32) -> (i32, i32) {
    %c0_i32 = arith.constant 0 : i32
    %c0_i32_0 = arith.constant 0 : i32
    %c0_i32_1 = arith.constant 0 : i32
    return %c0_i32, %c0_i32_0 : i32, i32
  }
  func.func @transform_20(%arg0: i32) -> (i32, i32, i32) {
    %c0_i32 = arith.constant 0 : i32
    %c0_i32_0 = arith.constant 0 : i32
    %c0_i32_1 = arith.constant 0 : i32
    return %arg0, %c0_i32, %c0_i32_0 : i32, i32, i32
  }
}

</mosaic_0001>

<llo_original>
// kernel: lenet5_forward.1
$region0: #{lenet5_forward.1}
  #allocation0 [shape = 'u32[]', space=smem, size = 0x4, offset = 0x4, fixed_abs, tag = 'smem constant byte address 0x4 - core index']
  #allocation1 [shape = 'u32[144,128]{1,0:T(1,128)}', space=vmem, size = 0x12000, scoped, tag = 'internal scratch']
  %s0 = inlined_call_operand.vmem [shape: f32[2,50,150], index: 0, kind: input, shape index: {}]
  %s1 = inlined_call_operand.vmem [shape: bf16[5,150,276], index: 1, kind: input, shape index: {}]
  %s2 = inlined_call_operand.vmem [shape: f32[1,276], index: 2, kind: input, shape index: {}]
  %s3 = inlined_call_operand.vmem [shape: f32[23,46], index: 3, kind: input, shape index: {}]
  %s4 = inlined_call_operand.vmem [shape: f32[23,46], index: 4, kind: input, shape index: {}]
  %s5 = inlined_call_operand.vmem [shape: f32[276,138], index: 5, kind: input, shape index: {}]
  %s6 = inlined_call_operand.vmem [shape: f32[276,138], index: 6, kind: input, shape index: {}]
  %s7 = inlined_call_operand.vmem [shape: f32[3,11,23], index: 7, kind: input, shape index: {}]
  %s8 = inlined_call_operand.vmem [shape: bf16[3,138,132], index: 8, kind: input, shape index: {}]
  %s9 = inlined_call_operand.vmem [shape: f32[1,132], index: 9, kind: input, shape index: {}]
  %s10 = inlined_call_operand.vmem [shape: f32[5,11], index: 10, kind: input, shape index: {}]
  %s11 = inlined_call_operand.vmem [shape: f32[5,11], index: 11, kind: input, shape index: {}]
  %s12 = inlined_call_operand.vmem [shape: f32[132,60], index: 12, kind: input, shape index: {}]
  %s13 = inlined_call_operand.vmem [shape: f32[132,60], index: 13, kind: input, shape index: {}]
  %s14 = inlined_call_operand.vmem [shape: bf16[5,60,120], index: 14, kind: input, shape index: {}]
  %s15 = inlined_call_operand.vmem [shape: f32[1,120], index: 15, kind: input, shape index: {}]
  %s16 = inlined_call_operand.vmem [shape: bf16[120,84], index: 16, kind: input, shape index: {}]
  %s17 = inlined_call_operand.vmem [shape: f32[1,84], index: 17, kind: input, shape index: {}]
  %s18 = inlined_call_operand.vmem [shape: bf16[84,10], index: 18, kind: input, shape index: {}]
  %s19 = inlined_call_operand.vmem [shape: f32[1,10], index: 19, kind: input, shape index: {}]
  %s20 = inlined_call_operand.hbm [shape: f32[2,1,10], index: 20, kind: output, shape index: {}]
  %s21 = sld [smem:[#allocation0]]
  $region113: #{lenet5_forward.1} parent=0
    _
  %s23 = ssub.s32 1, %s21
  %s24 = scalar_select 0, %s23, %s21
  $region1: #{lenet5_forward.1} parent=0
    #allocation2 [shape = 'u8[1024]{0}', space=vmem, size = 0x400, scoped, tag = 'output window, operand 0']
    #allocation3 [shape = 's32[2]{0}', space=sflag, size = 0x8, scoped, tag = 'scoped memory for lenet5_forward.1']
    %25 = vsyncpa [#allocation3], 0
    %s26 = scalar_lea.sflag [#allocation3], 1
    %27 = vsyncpa %s26, 0
    loop: start=0, step=1, limit=4
    $region2: #{lenet5_forward.1} parent=1 // loop_pre_header
      _
    $region3: #{lenet5_forward.1} parent=1 // loop_header
      %s29 = sphi 0, %s33
      %p30 = scmp.ge.s32.totalorder %s29, 4
      %s39 = sphi 0, %s41
      %s42 = sphi 0, %s39
      %s43 = sphi 0, %s42
      %s59 = sphi 0, %s43
      %s63 = sphi 0, %s63
      %s65 = sphi 0, %s63
      %s66 = sphi 0, %s65
      %s80 = sphi 0, %s66
      %s84 = sphi 0, %s84
      %s86 = sphi 0, %s84
      %s87 = sphi 0, %s86
      %s101 = sphi 0, %s87
      %s105 = sphi 0, %s105
      %s107 = sphi 0, %s105
      %s108 = sphi 0, %s107
      %s122 = sphi 0, %s108
      %s126 = sphi 0, %s126
      %s128 = sphi 0, %s126
      %s129 = sphi 0, %s128
      %s143 = sphi 0, %s129
      %s147 = sphi 0, %s147
      %s149 = sphi 0, %s147
      %s150 = sphi 0, %s149
      %s164 = sphi 0, %s150
      %s168 = sphi 0, %s168
      %s170 = sphi 0, %s168
      %s171 = sphi 0, %s170
      %s185 = sphi 0, %s171
      %s189 = sphi 0, %s189
      %s191 = sphi 0, %s189
      %s192 = sphi 0, %s191
      %s206 = sphi 0, %s192
      %s210 = sphi 0, %s210
      %s212 = sphi 0, %s210
      %s213 = sphi 0, %s212
      %s227 = sphi 0, %s213
      %s231 = sphi 0, %s231
      %s233 = sphi 0, %s231
      %s234 = sphi 0, %s233
      %s248 = sphi 0, %s234
      %s252 = sphi 0, %s252
      %s254 = sphi 0, %s252
      %s255 = sphi 0, %s254
      %s269 = sphi 0, %s255
      %s273 = sphi 0, %s273
      %s275 = sphi 0, %s273
      %s276 = sphi 0, %s275
      %s290 = sphi 0, %s276
      %s294 = sphi 0, %s294
      %s296 = sphi 0, %s294
      %s297 = sphi 0, %s296
      %s311 = sphi 0, %s297
      %s315 = sphi 0, %s315
      %s317 = sphi 0, %s315
      %s318 = sphi 0, %s317
      %s332 = sphi 0, %s318
      %s336 = sphi 0, %s336
      %s338 = sphi 0, %s336
      %s339 = sphi 0, %s338
      %s353 = sphi 0, %s339
      %s357 = sphi 0, %s357
      %s359 = sphi 0, %s357
      %s360 = sphi 0, %s359
      %s374 = sphi 0, %s360
      %s378 = sphi 0, %s378
      %s380 = sphi 0, %s378
      %s381 = sphi 0, %s380
      %s395 = sphi 0, %s381
      %s399 = sphi 0, %s399
      %s401 = sphi 0, %s399
      %s402 = sphi 0, %s401
      %s416 = sphi 0, %s402
      %s420 = sphi 0, %s420
      %s422 = sphi 0, %s420
      %s423 = sphi 0, %s422
      %s437 = sphi 0, %s423
      %s441 = sphi 0, %s441
      %s443 = sphi 0, %s441
      %s444 = sphi 0, %s443
      %s458 = sphi 0, %s444
      %s464 = sphi 0, %s466
      %s467 = sphi 0, %s464
      %s468 = sphi 0, %s467
      %s484 = sphi 0, %s468
    $region4: #{lenet5_forward.1} parent=1 // loop_header_branch
      %32 = sbr.rel (%p30) target = $region8
    $region5: #{lenet5_forward.1} parent=1 // loop_body
      %s34 = ssub.s32 %s29, 1
      %s35 = ssub.s32 %s29, 2
      %s36 = sadd.s32 %s29, 1
      %s37 = ssub.s32 %s29, %s36
      %p38 = scmp.eq.s32.totalorder %s37, 0
      %s40 = sadd.s32 %s39, 1
      %s41 = scalar_select %p38, %s39, %s40
      %p44 = pneg %p38
      %p45 = scmp.eq.s32.totalorder %s29, 1
      %p46 = por %p44, %p45
      %p47 = scmp.ne.s32.totalorder %s39, %s42
      %p48 = scmp.eq.s32.totalorder %s29, 0
      %p49 = por %p47, %p48
      %p50 = scmp.ne.s32.totalorder %s39, %s42
      %p51 = scmp.eq.s32.totalorder %s34, 1
      %p52 = por %p50, %p51
      %p53 = scmp.ne.s32.totalorder %s42, %s43
      %p54 = scmp.eq.s32.totalorder %s34, 0
      %p55 = por %p53, %p54
      %p56 = scmp.ne.s32.totalorder %s42, %s43
      %p57 = scmp.eq.s32.totalorder %s35, 1
      %p58 = por %p56, %p57
      %p60 = scmp.ne.s32.totalorder %s43, %s59
      %p61 = scmp.eq.s32.totalorder %s35, 0
      %p62 = por %p60, %p61
      %s64 = sadd.s32 %s63, 1
      %p67 = scmp.eq.s32.totalorder %s29, 1
      %p68 = scmp.ne.s32.totalorder %s63, %s65
      %p69 = scmp.eq.s32.totalorder %s29, 0
      %p70 = por %p68, %p69
      %p71 = scmp.ne.s32.totalorder %s63, %s65
      %p72 = scmp.eq.s32.totalorder %s34, 1
      %p73 = por %p71, %p72
      %p74 = scmp.ne.s32.totalorder %s65, %s66
      %p75 = scmp.eq.s32.totalorder %s34, 0
      %p76 = por %p74, %p75
      %p77 = scmp.ne.s32.totalorder %s65, %s66
      %p78 = scmp.eq.s32.totalorder %s35, 1
      %p79 = por %p77, %p78
      %p81 = scmp.ne.s32.totalorder %s66, %s80
      %p82 = scmp.eq.s32.totalorder %s35, 0
      %p83 = por %p81, %p82
      %s85 = sadd.s32 %s84, 1
      %p88 = scmp.eq.s32.totalorder %s29, 1
      %p89 = scmp.ne.s32.totalorder %s84, %s86
      %p90 = scmp.eq.s32.totalorder %s29, 0
      %p91 = por %p89, %p90
      %p92 = scmp.ne.s32.totalorder %s84, %s86
      %p93 = scmp.eq.s32.totalorder %s34, 1
      %p94 = por %p92, %p93
      %p95 = scmp.ne.s32.totalorder %s86, %s87
      %p96 = scmp.eq.s32.totalorder %s34, 0
      %p97 = por %p95, %p96
      %p98 = scmp.ne.s32.totalorder %s86, %s87
      %p99 = scmp.eq.s32.totalorder %s35, 1
      %p100 = por %p98, %p99
      %p102 = scmp.ne.s32.totalorder %s87, %s101
      %p103 = scmp.eq.s32.totalorder %s35, 0
      %p104 = por %p102, %p103
      %s106 = sadd.s32 %s105, 1
      %p109 = scmp.eq.s32.totalorder %s29, 1
      %p110 = scmp.ne.s32.totalorder %s105, %s107
      %p111 = scmp.eq.s32.totalorder %s29, 0
      %p112 = por %p110, %p111
      %p113 = scmp.ne.s32.totalorder %s105, %s107
      %p114 = scmp.eq.s32.totalorder %s34, 1
      %p115 = por %p113, %p114
      %p116 = scmp.ne.s32.totalorder %s107, %s108
      %p117 = scmp.eq.s32.totalorder %s34, 0
      %p118 = por %p116, %p117
      %p119 = scmp.ne.s32.totalorder %s107, %s108
      %p120 = scmp.eq.s32.totalorder %s35, 1
      %p121 = por %p119, %p120
      %p123 = scmp.ne.s32.totalorder %s108, %s122
      %p124 = scmp.eq.s32.totalorder %s35, 0
      %p125 = por %p123, %p124
      %s127 = sadd.s32 %s126, 1
      %p130 = scmp.eq.s32.totalorder %s29, 1
      %p131 = scmp.ne.s32.totalorder %s126, %s128
      %p132 = scmp.eq.s32.totalorder %s29, 0
      %p133 = por %p131, %p132
      %p134 = scmp.ne.s32.totalorder %s126, %s128
      %p135 = scmp.eq.s32.totalorder %s34, 1
      %p136 = por %p134, %p135
      %p137 = scmp.ne.s32.totalorder %s128, %s129
      %p138 = scmp.eq.s32.totalorder %s34, 0
      %p139 = por %p137, %p138
      %p140 = scmp.ne.s32.totalorder %s128, %s129
      %p141 = scmp.eq.s32.totalorder %s35, 1
      %p142 = por %p140, %p141
      %p144 = scmp.ne.s32.totalorder %s129, %s143
      %p145 = scmp.eq.s32.totalorder %s35, 0
      %p146 = por %p144, %p145
      %s148 = sadd.s32 %s147, 1
      %p151 = scmp.eq.s32.totalorder %s29, 1
      %p152 = scmp.ne.s32.totalorder %s147, %s149
      %p153 = scmp.eq.s32.totalorder %s29, 0
      %p154 = por %p152, %p153
      %p155 = scmp.ne.s32.totalorder %s147, %s149
      %p156 = scmp.eq.s32.totalorder %s34, 1
      %p157 = por %p155, %p156
      %p158 = scmp.ne.s32.totalorder %s149, %s150
      %p159 = scmp.eq.s32.totalorder %s34, 0
      %p160 = por %p158, %p159
      %p161 = scmp.ne.s32.totalorder %s149, %s150
      %p162 = scmp.eq.s32.totalorder %s35, 1
      %p163 = por %p161, %p162
      %p165 = scmp.ne.s32.totalorder %s150, %s164
      %p166 = scmp.eq.s32.totalorder %s35, 0
      %p167 = por %p165, %p166
      %s169 = sadd.s32 %s168, 1
      %p172 = scmp.eq.s32.totalorder %s29, 1
      %p173 = scmp.ne.s32.totalorder %s168, %s170
      %p174 = scmp.eq.s32.totalorder %s29, 0
      %p175 = por %p173, %p174
      %p176 = scmp.ne.s32.totalorder %s168, %s170
      %p177 = scmp.eq.s32.totalorder %s34, 1
      %p178 = por %p176, %p177
      %p179 = scmp.ne.s32.totalorder %s170, %s171
      %p180 = scmp.eq.s32.totalorder %s34, 0
      %p181 = por %p179, %p180
      %p182 = scmp.ne.s32.totalorder %s170, %s171
      %p183 = scmp.eq.s32.totalorder %s35, 1
      %p184 = por %p182, %p183
      %p186 = scmp.ne.s32.totalorder %s171, %s185
      %p187 = scmp.eq.s32.totalorder %s35, 0
      %p188 = por %p186, %p187
      %s190 = sadd.s32 %s189, 1
      %p193 = scmp.eq.s32.totalorder %s29, 1
      %p194 = scmp.ne.s32.totalorder %s189, %s191
      %p195 = scmp.eq.s32.totalorder %s29, 0
      %p196 = por %p194, %p195
      %p197 = scmp.ne.s32.totalorder %s189, %s191
      %p198 = scmp.eq.s32.totalorder %s34, 1
      %p199 = por %p197, %p198
      %p200 = scmp.ne.s32.totalorder %s191, %s192
      %p201 = scmp.eq.s32.totalorder %s34, 0
      %p202 = por %p200, %p201
      %p203 = scmp.ne.s32.totalorder %s191, %s192
      %p204 = scmp.eq.s32.totalorder %s35, 1
      %p205 = por %p203, %p204
      %p207 = scmp.ne.s32.totalorder %s192, %s206
      %p208 = scmp.eq.s32.totalorder %s35, 0
      %p209 = por %p207, %p208
      %s211 = sadd.s32 %s210, 1
      %p214 = scmp.eq.s32.totalorder %s29, 1
      %p215 = scmp.ne.s32.totalorder %s210, %s212
      %p216 = scmp.eq.s32.totalorder %s29, 0
      %p217 = por %p215, %p216
      %p218 = scmp.ne.s32.totalorder %s210, %s212
      %p219 = scmp.eq.s32.totalorder %s34, 1
      %p220 = por %p218, %p219
      %p221 = scmp.ne.s32.totalorder %s212, %s213
      %p222 = scmp.eq.s32.totalorder %s34, 0
      %p223 = por %p221, %p222
      %p224 = scmp.ne.s32.totalorder %s212, %s213
      %p225 = scmp.eq.s32.totalorder %s35, 1
      %p226 = por %p224, %p225
      %p228 = scmp.ne.s32.totalorder %s213, %s227
      %p229 = scmp.eq.s32.totalorder %s35, 0
      %p230 = por %p228, %p229
      %s232 = sadd.s32 %s231, 1
      %p235 = scmp.eq.s32.totalorder %s29, 1
      %p236 = scmp.ne.s32.totalorder %s231, %s233
      %p237 = scmp.eq.s32.totalorder %s29, 0
      %p238 = por %p236, %p237
      %p239 = scmp.ne.s32.totalorder %s231, %s233
      %p240 = scmp.eq.s32.totalorder %s34, 1
      %p241 = por %p239, %p240
      %p242 = scmp.ne.s32.totalorder %s233, %s234
      %p243 = scmp.eq.s32.totalorder %s34, 0
      %p244 = por %p242, %p243
      %p245 = scmp.ne.s32.totalorder %s233, %s234
      %p246 = scmp.eq.s32.totalorder %s35, 1
      %p247 = por %p245, %p246
      %p249 = scmp.ne.s32.totalorder %s234, %s248
      %p250 = scmp.eq.s32.totalorder %s35, 0
      %p251 = por %p249, %p250
      %s253 = sadd.s32 %s252, 1
      %p256 = scmp.eq.s32.totalorder %s29, 1
      %p257 = scmp.ne.s32.totalorder %s252, %s254
      %p258 = scmp.eq.s32.totalorder %s29, 0
      %p259 = por %p257, %p258
      %p260 = scmp.ne.s32.totalorder %s252, %s254
      %p261 = scmp.eq.s32.totalorder %s34, 1
      %p262 = por %p260, %p261
      %p263 = scmp.ne.s32.totalorder %s254, %s255
      %p264 = scmp.eq.s32.totalorder %s34, 0
      %p265 = por %p263, %p264
      %p266 = scmp.ne.s32.totalorder %s254, %s255
      %p267 = scmp.eq.s32.totalorder %s35, 1
      %p268 = por %p266, %p267
      %p270 = scmp.ne.s32.totalorder %s255, %s269
      %p271 = scmp.eq.s32.totalorder %s35, 0
      %p272 = por %p270, %p271
      %s274 = sadd.s32 %s273, 1
      %p277 = scmp.eq.s32.totalorder %s29, 1
      %p278 = scmp.ne.s32.totalorder %s273, %s275
      %p279 = scmp.eq.s32.totalorder %s29, 0
      %p280 = por %p278, %p279
      %p281 = scmp.ne.s32.totalorder %s273, %s275
      %p282 = scmp.eq.s32.totalorder %s34, 1
      %p283 = por %p281, %p282
      %p284 = scmp.ne.s32.totalorder %s275, %s276
      %p285 = scmp.eq.s32.totalorder %s34, 0
      %p286 = por %p284, %p285
      %p287 = scmp.ne.s32.totalorder %s275, %s276
      %p288 = scmp.eq.s32.totalorder %s35, 1
      %p289 = por %p287, %p288
      %p291 = scmp.ne.s32.totalorder %s276, %s290
      %p292 = scmp.eq.s32.totalorder %s35, 0
      %p293 = por %p291, %p292
      %s295 = sadd.s32 %s294, 1
      %p298 = scmp.eq.s32.totalorder %s29, 1
      %p299 = scmp.ne.s32.totalorder %s294, %s296
      %p300 = scmp.eq.s32.totalorder %s29, 0
      %p301 = por %p299, %p300
      %p302 = scmp.ne.s32.totalorder %s294, %s296
      %p303 = scmp.eq.s32.totalorder %s34, 1
      %p304 = por %p302, %p303
      %p305 = scmp.ne.s32.totalorder %s296, %s297
      %p306 = scmp.eq.s32.totalorder %s34, 0
      %p307 = por %p305, %p306
      %p308 = scmp.ne.s32.totalorder %s296, %s297
      %p309 = scmp.eq.s32.totalorder %s35, 1
      %p310 = por %p308, %p309
      %p312 = scmp.ne.s32.totalorder %s297, %s311
      %p313 = scmp.eq.s32.totalorder %s35, 0
      %p314 = por %p312, %p313
      %s316 = sadd.s32 %s315, 1
      %p319 = scmp.eq.s32.totalorder %s29, 1
      %p320 = scmp.ne.s32.totalorder %s315, %s317
      %p321 = scmp.eq.s32.totalorder %s29, 0
      %p322 = por %p320, %p321
      %p323 = scmp.ne.s32.totalorder %s315, %s317
      %p324 = scmp.eq.s32.totalorder %s34, 1
      %p325 = por %p323, %p324
      %p326 = scmp.ne.s32.totalorder %s317, %s318
      %p327 = scmp.eq.s32.totalorder %s34, 0
      %p328 = por %p326, %p327
      %p329 = scmp.ne.s32.totalorder %s317, %s318
      %p330 = scmp.eq.s32.totalorder %s35, 1
      %p331 = por %p329, %p330
      %p333 = scmp.ne.s32.totalorder %s318, %s332
      %p334 = scmp.eq.s32.totalorder %s35, 0
      %p335 = por %p333, %p334
      %s337 = sadd.s32 %s336, 1
      %p340 = scmp.eq.s32.totalorder %s29, 1
      %p341 = scmp.ne.s32.totalorder %s336, %s338
      %p342 = scmp.eq.s32.totalorder %s29, 0
      %p343 = por %p341, %p342
      %p344 = scmp.ne.s32.totalorder %s336, %s338
      %p345 = scmp.eq.s32.totalorder %s34, 1
      %p346 = por %p344, %p345
      %p347 = scmp.ne.s32.totalorder %s338, %s339
      %p348 = scmp.eq.s32.totalorder %s34, 0
      %p349 = por %p347, %p348
      %p350 = scmp.ne.s32.totalorder %s338, %s339
      %p351 = scmp.eq.s32.totalorder %s35, 1
      %p352 = por %p350, %p351
      %p354 = scmp.ne.s32.totalorder %s339, %s353
      %p355 = scmp.eq.s32.totalorder %s35, 0
      %p356 = por %p354, %p355
      %s358 = sadd.s32 %s357, 1
      %p361 = scmp.eq.s32.totalorder %s29, 1
      %p362 = scmp.ne.s32.totalorder %s357, %s359
      %p363 = scmp.eq.s32.totalorder %s29, 0
      %p364 = por %p362, %p363
      %p365 = scmp.ne.s32.totalorder %s357, %s359
      %p366 = scmp.eq.s32.totalorder %s34, 1
      %p367 = por %p365, %p366
      %p368 = scmp.ne.s32.totalorder %s359, %s360
      %p369 = scmp.eq.s32.totalorder %s34, 0
      %p370 = por %p368, %p369
      %p371 = scmp.ne.s32.totalorder %s359, %s360
      %p372 = scmp.eq.s32.totalorder %s35, 1
      %p373 = por %p371, %p372
      %p375 = scmp.ne.s32.totalorder %s360, %s374
      %p376 = scmp.eq.s32.totalorder %s35, 0
      %p377 = por %p375, %p376
      %s379 = sadd.s32 %s378, 1
      %p382 = scmp.eq.s32.totalorder %s29, 1
      %p383 = scmp.ne.s32.totalorder %s378, %s380
      %p384 = scmp.eq.s32.totalorder %s29, 0
      %p385 = por %p383, %p384
      %p386 = scmp.ne.s32.totalorder %s378, %s380
      %p387 = scmp.eq.s32.totalorder %s34, 1
      %p388 = por %p386, %p387
      %p389 = scmp.ne.s32.totalorder %s380, %s381
      %p390 = scmp.eq.s32.totalorder %s34, 0
      %p391 = por %p389, %p390
      %p392 = scmp.ne.s32.totalorder %s380, %s381
      %p393 = scmp.eq.s32.totalorder %s35, 1
      %p394 = por %p392, %p393
      %p396 = scmp.ne.s32.totalorder %s381, %s395
      %p397 = scmp.eq.s32.totalorder %s35, 0
      %p398 = por %p396, %p397
      %s400 = sadd.s32 %s399, 1
      %p403 = scmp.eq.s32.totalorder %s29, 1
      %p404 = scmp.ne.s32.totalorder %s399, %s401
      %p405 = scmp.eq.s32.totalorder %s29, 0
      %p406 = por %p404, %p405
      %p407 = scmp.ne.s32.totalorder %s399, %s401
      %p408 = scmp.eq.s32.totalorder %s34, 1
      %p409 = por %p407, %p408
      %p410 = scmp.ne.s32.totalorder %s401, %s402
      %p411 = scmp.eq.s32.totalorder %s34, 0
      %p412 = por %p410, %p411
      %p413 = scmp.ne.s32.totalorder %s401, %s402
      %p414 = scmp.eq.s32.totalorder %s35, 1
      %p415 = por %p413, %p414
      %p417 = scmp.ne.s32.totalorder %s402, %s416
      %p418 = scmp.eq.s32.totalorder %s35, 0
      %p419 = por %p417, %p418
      %s421 = sadd.s32 %s420, 1
      %p424 = scmp.eq.s32.totalorder %s29, 1
      %p425 = scmp.ne.s32.totalorder %s420, %s422
      %p426 = scmp.eq.s32.totalorder %s29, 0
      %p427 = por %p425, %p426
      %p428 = scmp.ne.s32.totalorder %s420, %s422
      %p429 = scmp.eq.s32.totalorder %s34, 1
      %p430 = por %p428, %p429
      %p431 = scmp.ne.s32.totalorder %s422, %s423
      %p432 = scmp.eq.s32.totalorder %s34, 0
      %p433 = por %p431, %p432
      %p434 = scmp.ne.s32.totalorder %s422, %s423
      %p435 = scmp.eq.s32.totalorder %s35, 1
      %p436 = por %p434, %p435
      %p438 = scmp.ne.s32.totalorder %s423, %s437
      %p439 = scmp.eq.s32.totalorder %s35, 0
      %p440 = por %p438, %p439
      %s442 = sadd.s32 %s441, 1
      %p445 = scmp.eq.s32.totalorder %s29, 1
      %p446 = scmp.ne.s32.totalorder %s441, %s443
      %p447 = scmp.eq.s32.totalorder %s29, 0
      %p448 = por %p446, %p447
      %p449 = scmp.ne.s32.totalorder %s441, %s443
      %p450 = scmp.eq.s32.totalorder %s34, 1
      %p451 = por %p449, %p450
      %p452 = scmp.ne.s32.totalorder %s443, %s444
      %p453 = scmp.eq.s32.totalorder %s34, 0
      %p454 = por %p452, %p453
      %p455 = scmp.ne.s32.totalorder %s443, %s444
      %p456 = scmp.eq.s32.totalorder %s35, 1
      %p457 = por %p455, %p456
      %p459 = scmp.ne.s32.totalorder %s444, %s458
      %p460 = scmp.eq.s32.totalorder %s35, 0
      %p461 = por %p459, %p460
      %s462 = ssub.s32 %s29, %s36
      %p463 = scmp.eq.s32.totalorder %s462, 0
      %s465 = sadd.s32 %s464, 1
      %s466 = scalar_select %p463, %s464, %s465
      %p469 = pneg %p463
      %p470 = scmp.eq.s32.totalorder %s29, 1
      %p471 = por %p469, %p470
      %p472 = scmp.ne.s32.totalorder %s464, %s467
      %p473 = scmp.eq.s32.totalorder %s29, 0
      %p474 = por %p472, %p473
      %p475 = scmp.ne.s32.totalorder %s464, %s467
      %p476 = scmp.eq.s32.totalorder %s34, 1
      %p477 = por %p475, %p476
      %p478 = scmp.ne.s32.totalorder %s467, %s468
      %p479 = scmp.eq.s32.totalorder %s34, 0
      %p480 = por %p478, %p479
      %p481 = scmp.ne.s32.totalorder %s467, %s468
      %p482 = scmp.eq.s32.totalorder %s35, 1
      %p483 = por %p481, %p482
      %p485 = scmp.ne.s32.totalorder %s468, %s484
      %p486 = scmp.eq.s32.totalorder %s35, 0
      %p487 = por %p485, %p486
      %p488 = scmp.le.s32.totalorder 1, %s29
      %p489 = scmp.lt.s32.totalorder %s29, 3
      %p490 = pnand %p488, %p489
      %p491 = pneg %p490
      // Predicated region
      $region9: #{lenet5_forward.1} parent=5 // pred_check
        _
      $region10: #{lenet5_forward.1} parent=5 // pred_check_branch
        %493 = sbr.rel (%p490) target = $region12
      $region11: #{lenet5_forward.1} parent=5 // pred_region
        %s494 = ssub.s32 %s29, 1
        // Predicated region
        $region13: #{lenet5_forward.1} parent=11 // pred_check
          %p495 = pneg %p76
        $region14: #{lenet5_forward.1} parent=11 // pred_check_branch
          %497 = sbr.rel (%p495) target = $region16
        $region15: #{lenet5_forward.1} parent=11 // pred_region
          _
        $region16: #{lenet5_forward.1} parent=11 // pred_fallthru
          _
        // Predicated region
        $region17: #{lenet5_forward.1} parent=11 // pred_check
          %p498 = pneg %p97
        $region18: #{lenet5_forward.1} parent=11 // pred_check_branch
          %500 = sbr.rel (%p498) target = $region20
        $region19: #{lenet5_forward.1} parent=11 // pred_region
          _
        $region20: #{lenet5_forward.1} parent=11 // pred_fallthru
          _
        // Predicated region
        $region21: #{lenet5_forward.1} parent=11 // pred_check
          %p501 = pneg %p118
        $region22: #{lenet5_forward.1} parent=11 // pred_check_branch
          %503 = sbr.rel (%p501) target = $region24
        $region23: #{lenet5_forward.1} parent=11 // pred_region
          _
        $region24: #{lenet5_forward.1} parent=11 // pred_fallthru
          _
        // Predicated region
        $region25: #{lenet5_forward.1} parent=11 // pred_check
          %p504 = pneg %p139
        $region26: #{lenet5_forward.1} parent=11 // pred_check_branch
          %506 = sbr.rel (%p504) target = $region28
        $region27: #{lenet5_forward.1} parent=11 // pred_region
          _
        $region28: #{lenet5_forward.1} parent=11 // pred_fallthru
          _
        // Predicated region
        $region29: #{lenet5_forward.1} parent=11 // pred_check
          %p507 = pneg %p160
        $region30: #{lenet5_forward.1} parent=11 // pred_check_branch
          %509 = sbr.rel (%p507) target = $region32
        $region31: #{lenet5_forward.1} parent=11 // pred_region
          _
        $region32: #{lenet5_forward.1} parent=11 // pred_fallthru
          _
        // Predicated region
        $region33: #{lenet5_forward.1} parent=11 // pred_check
          %p510 = pneg %p181
        $region34: #{lenet5_forward.1} parent=11 // pred_check_branch
          %512 = sbr.rel (%p510) target = $region36
        $region35: #{lenet5_forward.1} parent=11 // pred_region
          _
        $region36: #{lenet5_forward.1} parent=11 // pred_fallthru
          _
        // Predicated region
        $region37: #{lenet5_forward.1} parent=11 // pred_check
          %p513 = pneg %p202
        $region38: #{lenet5_forward.1} parent=11 // pred_check_branch
          %515 = sbr.rel (%p513) target = $region40
        $region39: #{lenet5_forward.1} parent=11 // pred_region
          _
        $region40: #{lenet5_forward.1} parent=11 // pred_fallthru
          _
        // Predicated region
        $region41: #{lenet5_forward.1} parent=11 // pred_check
          %p516 = pneg %p223
        $region42: #{lenet5_forward.1} parent=11 // pred_check_branch
          %518 = sbr.rel (%p516) target = $region44
        $region43: #{lenet5_forward.1} parent=11 // pred_region
          _
        $region44: #{lenet5_forward.1} parent=11 // pred_fallthru
          _
        // Predicated region
        $region45: #{lenet5_forward.1} parent=11 // pred_check
          %p519 = pneg %p244
        $region46: #{lenet5_forward.1} parent=11 // pred_check_branch
          %521 = sbr.rel (%p519) target = $region48
        $region47: #{lenet5_forward.1} parent=11 // pred_region
          _
        $region48: #{lenet5_forward.1} parent=11 // pred_fallthru
          _
        // Predicated region
        $region49: #{lenet5_forward.1} parent=11 // pred_check
          %p522 = pneg %p265
        $region50: #{lenet5_forward.1} parent=11 // pred_check_branch
          %524 = sbr.rel (%p522) target = $region52
        $region51: #{lenet5_forward.1} parent=11 // pred_region
          _
        $region52: #{lenet5_forward.1} parent=11 // pred_fallthru
          _
        // Predicated region
        $region53: #{lenet5_forward.1} parent=11 // pred_check
          %p525 = pneg %p286
        $region54: #{lenet5_forward.1} parent=11 // pred_check_branch
          %527 = sbr.rel (%p525) target = $region56
        $region55: #{lenet5_forward.1} parent=11 // pred_region
          _
        $region56: #{lenet5_forward.1} parent=11 // pred_fallthru
          _
        // Predicated region
        $region57: #{lenet5_forward.1} parent=11 // pred_check
          %p528 = pneg %p307
        $region58: #{lenet5_forward.1} parent=11 // pred_check_branch
          %530 = sbr.rel (%p528) target = $region60
        $region59: #{lenet5_forward.1} parent=11 // pred_region
          _
        $region60: #{lenet5_forward.1} parent=11 // pred_fallthru
          _
        // Predicated region
        $region61: #{lenet5_forward.1} parent=11 // pred_check
          %p531 = pneg %p328
        $region62: #{lenet5_forward.1} parent=11 // pred_check_branch
          %533 = sbr.rel (%p531) target = $region64
        $region63: #{lenet5_forward.1} parent=11 // pred_region
          _
        $region64: #{lenet5_forward.1} parent=11 // pred_fallthru
          _
        // Predicated region
        $region65: #{lenet5_forward.1} parent=11 // pred_check
          %p534 = pneg %p349
        $region66: #{lenet5_forward.1} parent=11 // pred_check_branch
          %536 = sbr.rel (%p534) target = $region68
        $region67: #{lenet5_forward.1} parent=11 // pred_region
          _
        $region68: #{lenet5_forward.1} parent=11 // pred_fallthru
          _
        // Predicated region
        $region69: #{lenet5_forward.1} parent=11 // pred_check
          %p537 = pneg %p370
        $region70: #{lenet5_forward.1} parent=11 // pred_check_branch
          %539 = sbr.rel (%p537) target = $region72
        $region71: #{lenet5_forward.1} parent=11 // pred_region
          _
        $region72: #{lenet5_forward.1} parent=11 // pred_fallthru
          _
        // Predicated region
        $region73: #{lenet5_forward.1} parent=11 // pred_check
          %p540 = pneg %p391
        $region74: #{lenet5_forward.1} parent=11 // pred_check_branch
          %542 = sbr.rel (%p540) target = $region76
        $region75: #{lenet5_forward.1} parent=11 // pred_region
          _
        $region76: #{lenet5_forward.1} parent=11 // pred_fallthru
          _
        // Predicated region
        $region77: #{lenet5_forward.1} parent=11 // pred_check
          %p543 = pneg %p412
        $region78: #{lenet5_forward.1} parent=11 // pred_check_branch
          %545 = sbr.rel (%p543) target = $region80
        $region79: #{lenet5_forward.1} parent=11 // pred_region
          _
        $region80: #{lenet5_forward.1} parent=11 // pred_fallthru
          _
        // Predicated region
        $region81: #{lenet5_forward.1} parent=11 // pred_check
          %p546 = pneg %p433
        $region82: #{lenet5_forward.1} parent=11 // pred_check_branch
          %548 = sbr.rel (%p546) target = $region84
        $region83: #{lenet5_forward.1} parent=11 // pred_region
          _
        $region84: #{lenet5_forward.1} parent=11 // pred_fallthru
          _
        // Predicated region
        $region85: #{lenet5_forward.1} parent=11 // pred_check
          %p549 = pneg %p454
        $region86: #{lenet5_forward.1} parent=11 // pred_check_branch
          %551 = sbr.rel (%p549) target = $region88
        $region87: #{lenet5_forward.1} parent=11 // pred_region
          _
        $region88: #{lenet5_forward.1} parent=11 // pred_fallthru
          _
      $region12: #{lenet5_forward.1} parent=5 // pred_fallthru
        _
      %p552 = scmp.lt.s32.totalorder %s29, 2
      // Predicated region
      $region89: #{lenet5_forward.1} parent=5 // pred_check
        %p553 = pneg %p552
      $region90: #{lenet5_forward.1} parent=5 // pred_check_branch
        %555 = sbr.rel (%p553) target = $region92
      $region91: #{lenet5_forward.1} parent=5 // pred_region
        // Predicated region
        $region93: #{lenet5_forward.1} parent=91 // pred_check
          %p556 = pneg %p49
        $region94: #{lenet5_forward.1} parent=91 // pred_check_branch
          %558 = sbr.rel (%p556) target = $region96
        $region95: #{lenet5_forward.1} parent=91 // pred_region
          %p559 = scmp.lt.s32.totalorder %s29, 1
          %s560 = scalar_select %p559, %s29, 1
          %s561 = smul.addr %s560, 14
          %s562 = smul.addr %s561, 8
          %s563 = scalar_lea.vmem %s0, %s562
        $region96: #{lenet5_forward.1} parent=91 // pred_fallthru
          _
      $region92: #{lenet5_forward.1} parent=5 // pred_fallthru
        _
      %p564 = scmp.le.s32.totalorder 1, %s29
      %p565 = scmp.lt.s32.totalorder %s29, 3
      %p566 = pnand %p564, %p565
      %p567 = pneg %p566
      // Predicated region
      $region97: #{lenet5_forward.1} parent=5 // pred_check
        _
      $region98: #{lenet5_forward.1} parent=5 // pred_check_branch
        %569 = sbr.rel (%p566) target = $region100
      $region99: #{lenet5_forward.1} parent=5 // pred_region
        %s570 = ssub.s32 %s29, 1
        %p571 = scmp.lt.s32.totalorder %s34, 1
        %s572 = scalar_select %p571, %s34, 1
        %s573 = smul.addr %s572, 14
        %s574 = smul.addr %s573, 8
        %s575 = scalar_lea.vmem %s0, %s574
        %p576 = pneg %p55
        %p577 = pneg %p52
        %p578 = pneg %p76
        %p579 = pneg %p73
        %p580 = pneg %p97
        %p581 = pneg %p94
        %p582 = pneg %p118
        %p583 = pneg %p115
        %p584 = pneg %p139
        %p585 = pneg %p136
        %p586 = pneg %p160
        %p587 = pneg %p157
        %p588 = pneg %p181
        %p589 = pneg %p178
        %p590 = pneg %p202
        %p591 = pneg %p199
        %p592 = pneg %p223
        %p593 = pneg %p220
        %p594 = pneg %p244
        %p595 = pneg %p241
        %p596 = pneg %p265
        %p597 = pneg %p262
        %p598 = pneg %p286
        %p599 = pneg %p283
        %p600 = pneg %p307
        %p601 = pneg %p304
        %p602 = pneg %p328
        %p603 = pneg %p325
        %p604 = pneg %p349
        %p605 = pneg %p346
        %p606 = pneg %p370
        %p607 = pneg %p367
        %p608 = pneg %p391
        %p609 = pneg %p388
        %p610 = pneg %p412
        %p611 = pneg %p409
        %p612 = pneg %p433
        %p613 = pneg %p430
        %p614 = pneg %p454
        %p615 = pneg %p451
        %p616 = pneg %p480
        %p617 = pneg %p477
        %s618 = sand.u32 %s467, 1
        %s619 = scalar_lea.sflag [#allocation3], %s618
        %s620 = sand.u32 %s467, 1
        %s621 = scalar_lea.vmem [#allocation2], %s620
        %p622 = scmp.lt.s32.totalorder %s34, 1
        %s623 = scalar_select %p622, %s34, 1
        %s624 = smul.addr %s623, 14
        %s625 = smul.addr %s624, 8
        %s626 = scalar_lea.vmem %s0, %s625
        %v628 = vld [vmem:[%s626] sm:$0xff]
        %v629 = vld [vmem:[%s626 + $0x8] sm:$0xff]
        %v630 = vld [vmem:[%s626 + $0x10] sm:$0xff]
        %v631 = vld [vmem:[%s626 + $0x18] sm:$0xff]
        %v632 = vld [vmem:[%s626 + $0x20] sm:$0xff]
        %v633 = vld [vmem:[%s626 + $0x28] sm:$0xff]
        %v634 = vld [vmem:[%s626 + $0x30] sm:$0xff]
        %v635 = vld [vmem:[%s626 + $0x38] sm:$0xff]
        %v636 = vld [vmem:[%s626 + $0x40] sm:$0xff]
        %v637 = vld [vmem:[%s626 + $0x48] sm:$0xff]
        %v638 = vld [vmem:[%s626 + $0x50] sm:$0x3f]
        %v639 = vld [vmem:[%s626 + $0x58] sm:$0x3f]
        %v640 = vpack.c.bf16 %v630, %v628
        %v641 = vpack.c.bf16 %v631, %v629
        %v642 = vpack.c.bf16 %v634, %v632
        %v643 = vpack.c.bf16 %v635, %v633
        %v644 = vpack.c.bf16 %v638, %v636
        %v645 = vpack.c.bf16 %v639, %v637
        %v646 = vld [vmem:[%s1] sm:$0xff]
        %v647 = vld [vmem:[%s1 + $0x8] sm:$0xf]
        %v648 = vld [vmem:[%s1 + $0xc] sm:$0xff]
        %v649 = vld [vmem:[%s1 + $0x14] sm:$0xf]
        %v650 = vld [vmem:[%s1 + $0x18] sm:$0xff]
        %v651 = vld [vmem:[%s1 + $0x20] sm:$0xf]
        %v652 = vld [vmem:[%s1 + $0x24] sm:$0xff]
        %v653 = vld [vmem:[%s1 + $0x2c] sm:$0xf]
        %v654 = vld [vmem:[%s1 + $0x30] sm:$0xff]
        %v655 = vld [vmem:[%s1 + $0x38] sm:$0xf]
        %v656 = vld [vmem:[%s1 + $0x3c] sm:$0xff]
        %v657 = vld [vmem:[%s1 + $0x44] sm:$0xf]
        %v658 = vld [vmem:[%s1 + $0x48] sm:$0xff]
        %v659 = vld [vmem:[%s1 + $0x50] sm:$0xf]
        %v660 = vld [vmem:[%s1 + $0x54] sm:$0xff]
        %v661 = vld [vmem:[%s1 + $0x5c] sm:$0xf]
        %v662 = vld [vmem:[%s1 + $0x60] sm:$0xff]
        %v663 = vld [vmem:[%s1 + $0x68] sm:$0xf]
        %v664 = vld [vmem:[%s1 + $0x6c] sm:$0xff]
        %v665 = vld [vmem:[%s1 + $0x74] sm:$0xf]
        %v666 = vld [vmem:[%s1 + $0x78] sm:$0xff]
        %v667 = vld [vmem:[%s1 + $0x80] sm:$0xf]
        %v668 = vld [vmem:[%s1 + $0x84] sm:$0xff]
        %v669 = vld [vmem:[%s1 + $0x8c] sm:$0xf]
        %v670 = vld [vmem:[%s1 + $0x90] sm:$0xff]
        %v671 = vld [vmem:[%s1 + $0x98] sm:$0xf]
        %v672 = vld [vmem:[%s1 + $0x9c] sm:$0xff]
        %v673 = vld [vmem:[%s1 + $0xa4] sm:$0xf]
        %v674 = vld [vmem:[%s1 + $0xa8] sm:$0xff]
        %v675 = vld [vmem:[%s1 + $0xb0] sm:$0xf]
        %v676 = vld [vmem:[%s1 + $0xb4] sm:$0xff]
        %v677 = vld [vmem:[%s1 + $0xbc] sm:$0xf]
        %v678 = vld [vmem:[%s1 + $0xc0] sm:$0xff]
        %v679 = vld [vmem:[%s1 + $0xc8] sm:$0xf]
        %v680 = vld [vmem:[%s1 + $0xcc] sm:$0xff]
        %v681 = vld [vmem:[%s1 + $0xd4] sm:$0xf]
        %v682 = vld [vmem:[%s1 + $0xd8] sm:$0x77]
        %v683 = vld [vmem:[%s1 + $0xe0] sm:$0x7]
        %v684 = vld [vmem:[%s626] sm:$0xfe]
        %v685 = vld [vmem:[%s626 + $0x8] sm:$0xfe]
        %v686 = vld [vmem:[%s626 + $0x50] sm:$0x7f]
        %v687 = vld [vmem:[%s626 + $0x58] sm:$0x7f]
        %v688 = vpack.c.bf16 %v630, %v684
        %v689 = vpack.c.bf16 %v631, %v685
        %v690 = vpack.c.bf16 %v686, %v636
        %v691 = vpack.c.bf16 %v687, %v637
        %s692 = scalar_lea.vmem %s1, 228
        %v693 = vld [vmem:[%s692] sm:$0xff]
        %v694 = vld [vmem:[%s692 + $0x8] sm:$0xf]
        %v695 = vld [vmem:[%s692 + $0xc] sm:$0xff]
        %v696 = vld [vmem:[%s692 + $0x14] sm:$0xf]
        %v697 = vld [vmem:[%s692 + $0x18] sm:$0xff]
        %v698 = vld [vmem:[%s692 + $0x20] sm:$0xf]
        %v699 = vld [vmem:[%s692 + $0x24] sm:$0xff]
        %v700 = vld [vmem:[%s692 + $0x2c] sm:$0xf]
        %v701 = vld [vmem:[%s692 + $0x30] sm:$0xff]
        %v702 = vld [vmem:[%s692 + $0x38] sm:$0xf]
        %v703 = vld [vmem:[%s692 + $0x3c] sm:$0xff]
        %v704 = vld [vmem:[%s692 + $0x44] sm:$0xf]
        %v705 = vld [vmem:[%s692 + $0x48] sm:$0xff]
        %v706 = vld [vmem:[%s692 + $0x50] sm:$0xf]
        %v707 = vld [vmem:[%s692 + $0x54] sm:$0xff]
        %v708 = vld [vmem:[%s692 + $0x5c] sm:$0xf]
        %v709 = vld [vmem:[%s692 + $0x60] sm:$0xff]
        %v710 = vld [vmem:[%s692 + $0x68] sm:$0xf]
        %v711 = vld [vmem:[%s692 + $0x6c] sm:$0xff]
        %v712 = vld [vmem:[%s692 + $0x74] sm:$0xf]
        %v713 = vld [vmem:[%s692 + $0x78] sm:$0xff]
        %v714 = vld [vmem:[%s692 + $0x80] sm:$0xf]
        %v715 = vld [vmem:[%s692 + $0x84] sm:$0xff]
        %v716 = vld [vmem:[%s692 + $0x8c] sm:$0xf]
        %v717 = vld [vmem:[%s692 + $0x90] sm:$0xff]
        %v718 = vld [vmem:[%s692 + $0x98] sm:$0xf]
        %v719 = vld [vmem:[%s692 + $0x9c] sm:$0xff]
        %v720 = vld [vmem:[%s692 + $0xa4] sm:$0xf]
        %v721 = vld [vmem:[%s692 + $0xa8] sm:$0xff]
        %v722 = vld [vmem:[%s692 + $0xb0] sm:$0xf]
        %v723 = vld [vmem:[%s692 + $0xb4] sm:$0xff]
        %v724 = vld [vmem:[%s692 + $0xbc] sm:$0xf]
        %v725 = vld [vmem:[%s692 + $0xc0] sm:$0xff]
        %v726 = vld [vmem:[%s692 + $0xc8] sm:$0xf]
        %v727 = vld [vmem:[%s692 + $0xcc] sm:$0xff]
        %v728 = vld [vmem:[%s692 + $0xd4] sm:$0xf]
        %v729 = vld [vmem:[%s692 + $0xd8] sm:$0x77]
        %v730 = vld [vmem:[%s692 + $0xe0] sm:$0x7]
        %vm731 = vsmask.f32 7424
        %v733 = vshrl.u32 %v688, 16
        %v735 = vshll.u32 %v688, 16
        %v737 = vrot.slane %v735, 1
        %v738 = vor.u32 %v733, %v737
        %v740 = vshll.u32 %v642, 16
        %v742 = vrot.slane %v740, 1
        %v743 = vsel %vm731, %v738, %v742
        %v745 = vshrl.u32 %v689, 16
        %v747 = vshll.u32 %v689, 16
        %v749 = vrot.slane %v747, 1
        %v750 = vor.u32 %v745, %v749
        %v752 = vshll.u32 %v643, 16
        %v754 = vrot.slane %v752, 1
        %v755 = vsel %vm731, %v750, %v754
        %v756 = vshrl.u32 %v642, 16
        %v758 = vor.u32 %v756, %v742
        %v760 = vshll.u32 %v690, 16
        %v762 = vrot.slane %v760, 1
        %v763 = vsel %vm731, %v758, %v762
        %v764 = vshrl.u32 %v643, 16
        %v766 = vor.u32 %v764, %v754
        %v768 = vshll.u32 %v691, 16
        %v770 = vrot.slane %v768, 1
        %v771 = vsel %vm731, %v766, %v770
        %v772 = vshrl.u32 %v690, 16
        %v774 = vor.u32 %v772, %v762
        %v775 = vshrl.u32 %v691, 16
        %v777 = vor.u32 %v775, %v770
        %v819 = vunpack.c.l.b16 %v693
        %v820 = vunpack.c.h.b16 %v693
        %v821 = vunpack.c.l.b16 %v694
        %v822 = vunpack.c.l.b16 %v695
        %v823 = vunpack.c.h.b16 %v695
        %v824 = vunpack.c.l.b16 %v696
        %v825 = vunpack.c.l.b16 %v697
        %v826 = vunpack.c.h.b16 %v697
        %v827 = vunpack.c.l.b16 %v698
        %v828 = vunpack.c.l.b16 %v699
        %v829 = vunpack.c.h.b16 %v699
        %v830 = vunpack.c.l.b16 %v700
        %v831 = vunpack.c.l.b16 %v701
        %v832 = vunpack.c.h.b16 %v701
        %v833 = vunpack.c.l.b16 %v702
        %v834 = vunpack.c.l.b16 %v703
        %v835 = vunpack.c.h.b16 %v703
        %v836 = vunpack.c.l.b16 %v704
        %v837 = vunpack.c.l.b16 %v705
        %v838 = vunpack.c.h.b16 %v705
        %v839 = vunpack.c.l.b16 %v706
        %v840 = vunpack.c.l.b16 %v707
        %v841 = vunpack.c.h.b16 %v707
        %v842 = vunpack.c.l.b16 %v708
        %v843 = vunpack.c.l.b16 %v709
        %v844 = vunpack.c.h.b16 %v709
        %v845 = vunpack.c.l.b16 %v710
        %v846 = vunpack.c.l.b16 %v711
        %v847 = vunpack.c.h.b16 %v711
        %v848 = vunpack.c.l.b16 %v712
        %v849 = vunpack.c.l.b16 %v713
        %v850 = vunpack.c.h.b16 %v713
        %v851 = vunpack.c.l.b16 %v714
        %v852 = vunpack.c.l.b16 %v715
        %v853 = vunpack.c.h.b16 %v715
        %v854 = vunpack.c.l.b16 %v716
        %v855 = vunpack.c.l.b16 %v717
        %v856 = vunpack.c.h.b16 %v717
        %v857 = vunpack.c.l.b16 %v718
        %v858 = vunpack.c.l.b16 %v719
        %v859 = vunpack.c.h.b16 %v719
        %v860 = vunpack.c.l.b16 %v720
        %v861 = vunpack.c.l.b16 %v721
        %v862 = vunpack.c.h.b16 %v721
        %v863 = vunpack.c.l.b16 %v722
        %v864 = vunpack.c.l.b16 %v723
        %v865 = vunpack.c.h.b16 %v723
        %v866 = vunpack.c.l.b16 %v724
        %v867 = vunpack.c.l.b16 %v725
        %v868 = vunpack.c.h.b16 %v725
        %v869 = vunpack.c.l.b16 %v726
        %v870 = vunpack.c.l.b16 %v727
        %v871 = vunpack.c.h.b16 %v727
        %v872 = vunpack.c.l.b16 %v728
        %v873 = vunpack.c.l.b16 %v729
        %v874 = vunpack.c.h.b16 %v729
        %v875 = vunpack.c.l.b16 %v730
        %v876 = vpack.c.b16 %v822, %v819
        %v877 = vpack.c.b16 %v823, %v820
        %v878 = vpack.c.b16 %v824, %v821
        %v879 = vpack.c.b16 %v828, %v825
        %v880 = vpack.c.b16 %v829, %v826
        %v881 = vpack.c.b16 %v830, %v827
        %v882 = vpack.c.b16 %v834, %v831
        %v883 = vpack.c.b16 %v835, %v832
        %v884 = vpack.c.b16 %v836, %v833
        %v885 = vpack.c.b16 %v840, %v837
        %v886 = vpack.c.b16 %v841, %v838
        %v887 = vpack.c.b16 %v842, %v839
        %v888 = vpack.c.b16 %v846, %v843
        %v889 = vpack.c.b16 %v847, %v844
        %v890 = vpack.c.b16 %v848, %v845
        %v891 = vpack.c.b16 %v852, %v849
        %v892 = vpack.c.b16 %v853, %v850
        %v893 = vpack.c.b16 %v854, %v851
        %v894 = vpack.c.b16 %v858, %v855
        %v895 = vpack.c.b16 %v859, %v856
        %v896 = vpack.c.b16 %v860, %v857
        %v897 = vpack.c.b16 %v864, %v861
        %v898 = vpack.c.b16 %v865, %v862
        %v899 = vpack.c.b16 %v866, %v863
        %v900 = vpack.c.b16 %v870, %v867
        %v901 = vpack.c.b16 %v871, %v868
        %v902 = vpack.c.b16 %v872, %v869
        %v903 = vpack.c.b16 %v873, %v873
        %v904 = vpack.c.b16 %v874, %v874
        %v905 = vpack.c.b16 %v875, %v875
        %vm933 = vcmask 179200
        %v935 = vsel %vm933, %v755, 0
        %v938 = vsel %vm933, %v771, 0
        %v941 = vsel %vm933, %v777, 0
        %vm943 = vcmask 1042432
        %v945 = vsel %vm943, %v903, 0
        %v948 = vsel %vm943, %v904, 0
        %v951 = vsel %vm943, %v905, 0
        %953 = vmatprep.subr.bf16.mxu0 %v877
        %954 = vmatpush1.bf16.msra.mxu0 %v876
        %955 = vmatprep.subr.bf16.mxu0 %v880
        %956 = vmatpush1.bf16.msra.mxu0 %v879
        %957 = vmatprep.subr.bf16.mxu0 %v883
        %958 = vmatpush1.bf16.msra.mxu0 %v882
        %959 = vmatprep.subr.bf16.mxu0 %v886
        %960 = vmatpush1.bf16.msra.mxu0 %v885
        %961 = vmatprep.subr.bf16.mxu0 %v889
        %962 = vmatpush1.bf16.msra.mxu0 %v888
        %963 = vmatprep.subr.bf16.mxu0 %v892
        %964 = vmatpush1.bf16.msra.mxu0 %v891
        %965 = vmatprep.subr.bf16.mxu0 %v895
        %966 = vmatpush1.bf16.msra.mxu0 %v894
        %967 = vmatprep.subr.bf16.mxu0 %v898
        %968 = vmatpush1.bf16.msra.mxu0 %v897
        %969 = vmatprep.subr.bf16.mxu0 %v901
        %970 = vmatpush1.bf16.msra.mxu0 %v900
        %971 = vmatprep.subr.bf16.mxu0 %v948
        %972 = vmatpush1.bf16.msra.mxu0 %v945
        %973 = vmatprep.subr.bf16.mxu0 0
        %974 = vmatpush1.bf16.msra.mxu0 0
        %975 = vmatprep.subr.bf16.mxu0 0
        %976 = vmatpush1.bf16.msra.mxu0 0
        %977 = vmatprep.subr.bf16.mxu0 0
        %978 = vmatpush1.bf16.msra.mxu0 0
        %979 = vmatprep.subr.bf16.mxu0 0
        %980 = vmatpush1.bf16.msra.mxu0 0
        %981 = vmatprep.subr.bf16.mxu0 0
        %982 = vmatpush1.bf16.msra.mxu0 0
        %983 = vmatprep.subr.bf16.mxu0 0
        %984 = vmatpush1.bf16.msra.mxu0 0
        %985 = vmatprep.mubr.bf16.mxu0 %v935
        %986 = vmatmul.mubr.bf16.gmra.mrb[0].mxu0 %v743
        %v987 = vpop.f32.mrb[0].mxu0
        %v988 = vadd.f32 0.0, %v987
        %v989 = vpop.f32.mrb[0].mxu0
        %v990 = vadd.f32 0.0, %v989
        %v991 = vpop.f32.mrb[0].mxu0
        %v992 = vadd.f32 0.0, %v991
        %v993 = vpop.f32.mrb[0].mxu0
        %v994 = vadd.f32 0.0, %v993
        %995 = vmatprep.mubr.bf16.mxu0 %v938
        %996 = vmatmul.mubr.bf16.gmra.mrb[0].mxu0 %v763
        %v997 = vpop.f32.mrb[0].mxu0
        %v998 = vadd.f32 0.0, %v997
        %v999 = vpop.f32.mrb[0].mxu0
        %v1000 = vadd.f32 0.0, %v999
        %v1001 = vpop.f32.mrb[0].mxu0
        %v1002 = vadd.f32 0.0, %v1001
        %v1003 = vpop.f32.mrb[0].mxu0
        %v1004 = vadd.f32 0.0, %v1003
        %1005 = vmatprep.mubr.bf16.mxu0 %v941
        %1006 = vmatmul.mubr.bf16.gmra.mrb[0].mxu0 %v774
        %v1007 = vpop.f32.mrb[0].mxu0
        %v1008 = vadd.f32 0.0, %v1007
        %v1009 = vpop.f32.mrb[0].mxu0
        %v1010 = vadd.f32 0.0, %v1009
        %v1011 = vpop.f32.mrb[0].mxu0
        %v1012 = vadd.f32 0.0, %v1011
        %v1013 = vpop.f32.mrb[0].mxu0
        %v1014 = vadd.f32 0.0, %v1013
        %1015 = vdwg.mxu0
        %1016 = vmatprep.subr.bf16.mxu0 0
        %1017 = vmatpush1.bf16.msra.mxu0 %v878
        %1018 = vmatprep.subr.bf16.mxu0 0
        %1019 = vmatpush1.bf16.msra.mxu0 %v881
        %1020 = vmatprep.subr.bf16.mxu0 0
        %1021 = vmatpush1.bf16.msra.mxu0 %v884
        %1022 = vmatprep.subr.bf16.mxu0 0
        %1023 = vmatpush1.bf16.msra.mxu0 %v887
        %1024 = vmatprep.subr.bf16.mxu0 0
        %1025 = vmatpush1.bf16.msra.mxu0 %v890
        %1026 = vmatprep.subr.bf16.mxu0 0
        %1027 = vmatpush1.bf16.msra.mxu0 %v893
        %1028 = vmatprep.subr.bf16.mxu0 0
        %1029 = vmatpush1.bf16.msra.mxu0 %v896
        %1030 = vmatprep.subr.bf16.mxu0 0
        %1031 = vmatpush1.bf16.msra.mxu0 %v899
        %1032 = vmatprep.subr.bf16.mxu0 0
        %1033 = vmatpush1.bf16.msra.mxu0 %v902
        %1034 = vmatprep.subr.bf16.mxu0 0
        %1035 = vmatpush1.bf16.msra.mxu0 %v951
        %1036 = vmatprep.subr.bf16.mxu0 0
        %1037 = vmatpush1.bf16.msra.mxu0 0
        %1038 = vmatprep.subr.bf16.mxu0 0
        %1039 = vmatpush1.bf16.msra.mxu0 0
        %1040 = vmatprep.subr.bf16.mxu0 0
        %1041 = vmatpush1.bf16.msra.mxu0 0
        %1042 = vmatprep.subr.bf16.mxu0 0
        %1043 = vmatpush1.bf16.msra.mxu0 0
        %1044 = vmatprep.subr.bf16.mxu0 0
        %1045 = vmatpush1.bf16.msra.mxu0 0
        %1046 = vmatprep.subr.bf16.mxu0 0
        %1047 = vmatpush1.bf16.msra.mxu0 0
        %1048 = vmatprep.mubr.bf16.mxu0 %v935
        %1049 = vmatmul.mubr.bf16.gmra.mrb[0].mxu0 %v743
        %v1050 = vpop.f32.mrb[0].mxu0
        %v1051 = vadd.f32 0.0, %v1050
        %v1052 = vpop.f32.mrb[0].mxu0
        %v1053 = vpop.f32.mrb[0].mxu0
        %v1054 = vadd.f32 0.0, %v1053
        %v1055 = vpop.f32.mrb[0].mxu0
        %1056 = vmatprep.mubr.bf16.mxu0 %v938
        %1057 = vmatmul.mubr.bf16.gmra.mrb[0].mxu0 %v763
        %v1058 = vpop.f32.mrb[0].mxu0
        %v1059 = vadd.f32 0.0, %v1058
        %v1060 = vpop.f32.mrb[0].mxu0
        %v1061 = vpop.f32.mrb[0].mxu0
        %v1062 = vadd.f32 0.0, %v1061
        %v1063 = vpop.f32.mrb[0].mxu0
        %1064 = vmatprep.mubr.bf16.mxu0 %v941
        %1065 = vmatmul.mubr.bf16.gmra.mrb[0].mxu0 %v774
        %v1066 = vpop.f32.mrb[0].mxu0
        %v1067 = vadd.f32 0.0, %v1066
        %v1068 = vpop.f32.mrb[0].mxu0
        %v1069 = vpop.f32.mrb[0].mxu0
        %v1070 = vadd.f32 0.0, %v1069
        %v1071 = vpop.f32.mrb[0].mxu0
        %1072 = vdwg.mxu0
        %v1111 = vunpack.c.l.b16 %v646
        %v1112 = vunpack.c.h.b16 %v646
        %v1113 = vunpack.c.l.b16 %v647
        %v1114 = vunpack.c.l.b16 %v648
        %v1115 = vunpack.c.h.b16 %v648
        %v1116 = vunpack.c.l.b16 %v649
        %v1117 = vunpack.c.l.b16 %v650
        %v1118 = vunpack.c.h.b16 %v650
        %v1119 = vunpack.c.l.b16 %v651
        %v1120 = vunpack.c.l.b16 %v652
        %v1121 = vunpack.c.h.b16 %v652
        %v1122 = vunpack.c.l.b16 %v653
        %v1123 = vunpack.c.l.b16 %v654
        %v1124 = vunpack.c.h.b16 %v654
        %v1125 = vunpack.c.l.b16 %v655
        %v1126 = vunpack.c.l.b16 %v656
        %v1127 = vunpack.c.h.b16 %v656
        %v1128 = vunpack.c.l.b16 %v657
        %v1129 = vunpack.c.l.b16 %v658
        %v1130 = vunpack.c.h.b16 %v658
        %v1131 = vunpack.c.l.b16 %v659
        %v1132 = vunpack.c.l.b16 %v660
        %v1133 = vunpack.c.h.b16 %v660
        %v1134 = vunpack.c.l.b16 %v661
        %v1135 = vunpack.c.l.b16 %v662
        %v1136 = vunpack.c.h.b16 %v662
        %v1137 = vunpack.c.l.b16 %v663
        %v1138 = vunpack.c.l.b16 %v664
        %v1139 = vunpack.c.h.b16 %v664
        %v1140 = vunpack.c.l.b16 %v665
        %v1141 = vunpack.c.l.b16 %v666
        %v1142 = vunpack.c.h.b16 %v666
        %v1143 = vunpack.c.l.b16 %v667
        %v1144 = vunpack.c.l.b16 %v668
        %v1145 = vunpack.c.h.b16 %v668
        %v1146 = vunpack.c.l.b16 %v669
        %v1147 = vunpack.c.l.b16 %v670
        %v1148 = vunpack.c.h.b16 %v670
        %v1149 = vunpack.c.l.b16 %v671
        %v1150 = vunpack.c.l.b16 %v672
        %v1151 = vunpack.c.h.b16 %v672
        %v1152 = vunpack.c.l.b16 %v673
        %v1153 = vunpack.c.l.b16 %v674
        %v1154 = vunpack.c.h.b16 %v674
        %v1155 = vunpack.c.l.b16 %v675
        %v1156 = vunpack.c.l.b16 %v676
        %v1157 = vunpack.c.h.b16 %v676
        %v1158 = vunpack.c.l.b16 %v677
        %v1159 = vunpack.c.l.b16 %v678
        %v1160 = vunpack.c.h.b16 %v678
        %v1161 = vunpack.c.l.b16 %v679
        %v1162 = vunpack.c.l.b16 %v680
        %v1163 = vunpack.c.h.b16 %v680
        %v1164 = vunpack.c.l.b16 %v681
        %v1165 = vunpack.c.l.b16 %v682
        %v1166 = vunpack.c.h.b16 %v682
        %v1167 = vunpack.c.l.b16 %v683
        %v1168 = vpack.c.b16 %v1114, %v1111
        %v1169 = vpack.c.b16 %v1115, %v1112
        %v1170 = vpack.c.b16 %v1116, %v1113
        %v1171 = vpack.c.b16 %v1120, %v1117
        %v1172 = vpack.c.b16 %v1121, %v1118
        %v1173 = vpack.c.b16 %v1122, %v1119
        %v1174 = vpack.c.b16 %v1126, %v1123
        %v1175 = vpack.c.b16 %v1127, %v1124
        %v1176 = vpack.c.b16 %v1128, %v1125
        %v1177 = vpack.c.b16 %v1132, %v1129
        %v1178 = vpack.c.b16 %v1133, %v1130
        %v1179 = vpack.c.b16 %v1134, %v1131
        %v1180 = vpack.c.b16 %v1138, %v1135
        %v1181 = vpack.c.b16 %v1139, %v1136
        %v1182 = vpack.c.b16 %v1140, %v1137
        %v1183 = vpack.c.b16 %v1144, %v1141
        %v1184 = vpack.c.b16 %v1145, %v1142
        %v1185 = vpack.c.b16 %v1146, %v1143
        %v1186 = vpack.c.b16 %v1150, %v1147
        %v1187 = vpack.c.b16 %v1151, %v1148
        %v1188 = vpack.c.b16 %v1152, %v1149
        %v1189 = vpack.c.b16 %v1156, %v1153
        %v1190 = vpack.c.b16 %v1157, %v1154
        %v1191 = vpack.c.b16 %v1158, %v1155
        %v1192 = vpack.c.b16 %v1162, %v1159
        %v1193 = vpack.c.b16 %v1163, %v1160
        %v1194 = vpack.c.b16 %v1164, %v1161
        %v1195 = vpack.c.b16 %v1165, %v1165
        %v1196 = vpack.c.b16 %v1166, %v1166
        %v1197 = vpack.c.b16 %v1167, %v1167
        %v1226 = vsel %vm933, %v641, 0
        %v1228 = vsel %vm933, %v643, 0
        %v1231 = vsel %vm933, %v645, 0
        %v1234 = vsel %vm943, %v1195, 0
        %v1237 = vsel %vm943, %v1196, 0
        %v1240 = vsel %vm943, %v1197, 0
        %1242 = vmatprep.subr.bf16.mxu0 %v1169
        %1243 = vmatpush1.bf16.msra.mxu0 %v1168
        %1244 = vmatprep.subr.bf16.mxu0 %v1172
        %1245 = vmatpush1.bf16.msra.mxu0 %v1171
        %1246 = vmatprep.subr.bf16.mxu0 %v1175
        %1247 = vmatpush1.bf16.msra.mxu0 %v1174
        %1248 = vmatprep.subr.bf16.mxu0 %v1178
        %1249 = vmatpush1.bf16.msra.mxu0 %v1177
        %1250 = vmatprep.subr.bf16.mxu0 %v1181
        %1251 = vmatpush1.bf16.msra.mxu0 %v1180
        %1252 = vmatprep.subr.bf16.mxu0 %v1184
        %1253 = vmatpush1.bf16.msra.mxu0 %v1183
        %1254 = vmatprep.subr.bf16.mxu0 %v1187
        %1255 = vmatpush1.bf16.msra.mxu0 %v1186
        %1256 = vmatprep.subr.bf16.mxu0 %v1190
        %1257 = vmatpush1.bf16.msra.mxu0 %v1189
        %1258 = vmatprep.subr.bf16.mxu0 %v1193
        %1259 = vmatpush1.bf16.msra.mxu0 %v1192
        %1260 = vmatprep.subr.bf16.mxu0 %v1237
        %1261 = vmatpush1.bf16.msra.mxu0 %v1234
        %1262 = vmatprep.subr.bf16.mxu0 0
        %1263 = vmatpush1.bf16.msra.mxu0 0
        %1264 = vmatprep.subr.bf16.mxu0 0
        %1265 = vmatpush1.bf16.msra.mxu0 0
        %1266 = vmatprep.subr.bf16.mxu0 0
        %1267 = vmatpush1.bf16.msra.mxu0 0
        %1268 = vmatprep.subr.bf16.mxu0 0
        %1269 = vmatpush1.bf16.msra.mxu0 0
        %1270 = vmatprep.subr.bf16.mxu0 0
        %1271 = vmatpush1.bf16.msra.mxu0 0
        %1272 = vmatprep.subr.bf16.mxu0 0
        %1273 = vmatpush1.bf16.msra.mxu0 0
        %1274 = vmatprep.mubr.bf16.mxu0 %v1226
        %1275 = vmatmul.mubr.bf16.gmra.mrb[0].mxu0 %v640
        %v1276 = vpop.f32.mrb[0].mxu0
        %v1277 = vadd.f32 %v988, %v1276
        %v1278 = vpop.f32.mrb[0].mxu0
        %v1279 = vadd.f32 %v990, %v1278
        %v1280 = vpop.f32.mrb[0].mxu0
        %v1281 = vadd.f32 %v992, %v1280
        %v1282 = vpop.f32.mrb[0].mxu0
        %v1283 = vadd.f32 %v994, %v1282
        %1284 = vmatprep.mubr.bf16.mxu0 %v1228
        %1285 = vmatmul.mubr.bf16.gmra.mrb[0].mxu0 %v642
        %v1286 = vpop.f32.mrb[0].mxu0
        %v1287 = vadd.f32 %v998, %v1286
        %v1288 = vpop.f32.mrb[0].mxu0
        %v1289 = vadd.f32 %v1000, %v1288
        %v1290 = vpop.f32.mrb[0].mxu0
        %v1291 = vadd.f32 %v1002, %v1290
        %v1292 = vpop.f32.mrb[0].mxu0
        %v1293 = vadd.f32 %v1004, %v1292
        %1294 = vmatprep.mubr.bf16.mxu0 %v1231
        %1295 = vmatmul.mubr.bf16.gmra.mrb[0].mxu0 %v644
        %v1296 = vpop.f32.mrb[0].mxu0
        %v1297 = vadd.f32 %v1008, %v1296
        %v1298 = vpop.f32.mrb[0].mxu0
        %v1299 = vadd.f32 %v1010, %v1298
        %v1300 = vpop.f32.mrb[0].mxu0
        %v1301 = vadd.f32 %v1012, %v1300
        %v1302 = vpop.f32.mrb[0].mxu0
        %v1303 = vadd.f32 %v1014, %v1302
        %1304 = vdwg.mxu0
        %1305 = vmatprep.subr.bf16.mxu0 0
        %1306 = vmatpush1.bf16.msra.mxu0 %v1170
        %1307 = vmatprep.subr.bf16.mxu0 0
        %1308 = vmatpush1.bf16.msra.mxu0 %v1173
        %1309 = vmatprep.subr.bf16.mxu0 0
        %1310 = vmatpush1.bf16.msra.mxu0 %v1176
        %1311 = vmatprep.subr.bf16.mxu0 0
        %1312 = vmatpush1.bf16.msra.mxu0 %v1179
        %1313 = vmatprep.subr.bf16.mxu0 0
        %1314 = vmatpush1.bf16.msra.mxu0 %v1182
        %1315 = vmatprep.subr.bf16.mxu0 0
        %1316 = vmatpush1.bf16.msra.mxu0 %v1185
        %1317 = vmatprep.subr.bf16.mxu0 0
        %1318 = vmatpush1.bf16.msra.mxu0 %v1188
        %1319 = vmatprep.subr.bf16.mxu0 0
        %1320 = vmatpush1.bf16.msra.mxu0 %v1191
        %1321 = vmatprep.subr.bf16.mxu0 0
        %1322 = vmatpush1.bf16.msra.mxu0 %v1194
        %1323 = vmatprep.subr.bf16.mxu0 0
        %1324 = vmatpush1.bf16.msra.mxu0 %v1240
        %1325 = vmatprep.subr.bf16.mxu0 0
        %1326 = vmatpush1.bf16.msra.mxu0 0
        %1327 = vmatprep.subr.bf16.mxu0 0
        %1328 = vmatpush1.bf16.msra.mxu0 0
        %1329 = vmatprep.subr.bf16.mxu0 0
        %1330 = vmatpush1.bf16.msra.mxu0 0
        %1331 = vmatprep.subr.bf16.mxu0 0
        %1332 = vmatpush1.bf16.msra.mxu0 0
        %1333 = vmatprep.subr.bf16.mxu0 0
        %1334 = vmatpush1.bf16.msra.mxu0 0
        %1335 = vmatprep.subr.bf16.mxu0 0
        %1336 = vmatpush1.bf16.msra.mxu0 0
        %1337 = vmatprep.mubr.bf16.mxu0 %v1226
        %1338 = vmatmul.mubr.bf16.gmra.mrb[0].mxu0 %v640
        %v1339 = vpop.f32.mrb[0].mxu0
        %v1340 = vadd.f32 %v1051, %v1339
        %v1341 = vpop.f32.mrb[0].mxu0
        %v1342 = vpop.f32.mrb[0].mxu0
        %v1343 = vadd.f32 %v1054, %v1342
        %v1344 = vpop.f32.mrb[0].mxu0
        %1345 = vmatprep.mubr.bf16.mxu0 %v1228
        %1346 = vmatmul.mubr.bf16.gmra.mrb[0].mxu0 %v642
        %v1347 = vpop.f32.mrb[0].mxu0
        %v1348 = vadd.f32 %v1059, %v1347
        %v1349 = vpop.f32.mrb[0].mxu0
        %v1350 = vpop.f32.mrb[0].mxu0
        %v1351 = vadd.f32 %v1062, %v1350
        %v1352 = vpop.f32.mrb[0].mxu0
        %1353 = vmatprep.mubr.bf16.mxu0 %v1231
        %1354 = vmatmul.mubr.bf16.gmra.mrb[0].mxu0 %v644
        %v1355 = vpop.f32.mrb[0].mxu0
        %v1356 = vadd.f32 %v1067, %v1355
        %v1357 = vpop.f32.mrb[0].mxu0
        %v1358 = vpop.f32.mrb[0].mxu0
        %v1359 = vadd.f32 %v1070, %v1358
        %v1360 = vpop.f32.mrb[0].mxu0
        %1361 = vdwg.mxu0
        %v1362 = vld [vmem:[%s626] sm:$0xfc]
        %v1363 = vld [vmem:[%s626 + $0x8] sm:$0xfc]
        %v1364 = vld [vmem:[%s626 + $0x50] sm:$0xff]
        %v1365 = vld [vmem:[%s626 + $0x58] sm:$0xff]
        %v1366 = vpack.c.bf16 %v630, %v1362
        %v1367 = vpack.c.bf16 %v631, %v1363
        %v1368 = vpack.c.bf16 %v1364, %v636
        %v1369 = vpack.c.bf16 %v1365, %v637
        %s1370 = scalar_lea.vmem %s1, 456
        %v1371 = vld [vmem:[%s1370] sm:$0xff]
        %v1372 = vld [vmem:[%s1370 + $0x8] sm:$0xf]
        %v1373 = vld [vmem:[%s1370 + $0xc] sm:$0xff]
        %v1374 = vld [vmem:[%s1370 + $0x14] sm:$0xf]
        %v1375 = vld [vmem:[%s1370 + $0x18] sm:$0xff]
        %v1376 = vld [vmem:[%s1370 + $0x20] sm:$0xf]
        %v1377 = vld [vmem:[%s1370 + $0x24] sm:$0xff]
        %v1378 = vld [vmem:[%s1370 + $0x2c] sm:$0xf]
        %v1379 = vld [vmem:[%s1370 + $0x30] sm:$0xff]
        %v1380 = vld [vmem:[%s1370 + $0x38] sm:$0xf]
        %v1381 = vld [vmem:[%s1370 + $0x3c] sm:$0xff]
        %v1382 = vld [vmem:[%s1370 + $0x44] sm:$0xf]
        %v1383 = vld [vmem:[%s1370 + $0x48] sm:$0xff]
        %v1384 = vld [vmem:[%s1370 + $0x50] sm:$0xf]
        %v1385 = vld [vmem:[%s1370 + $0x54] sm:$0xff]
        %v1386 = vld [vmem:[%s1370 + $0x5c] sm:$0xf]
        %v1387 = vld [vmem:[%s1370 + $0x60] sm:$0xff]
        %v1388 = vld [vmem:[%s1370 + $0x68] sm:$0xf]
        %v1389 = vld [vmem:[%s1370 + $0x6c] sm:$0xff]
        %v1390 = vld [vmem:[%s1370 + $0x74] sm:$0xf]
        %v1391 = vld [vmem:[%s1370 + $0x78] sm:$0xff]
        %v1392 = vld [vmem:[%s1370 + $0x80] sm:$0xf]
        %v1393 = vld [vmem:[%s1370 + $0x84] sm:$0xff]
        %v1394 = vld [vmem:[%s1370 + $0x8c] sm:$0xf]
        %v1395 = vld [vmem:[%s1370 + $0x90] sm:$0xff]
        %v1396 = vld [vmem:[%s1370 + $0x98] sm:$0xf]
        %v1397 = vld [vmem:[%s1370 + $0x9c] sm:$0xff]
        %v1398 = vld [vmem:[%s1370 + $0xa4] sm:$0xf]
        %v1399 = vld [vmem:[%s1370 + $0xa8] sm:$0xff]
        %v1400 = vld [vmem:[%s1370 + $0xb0] sm:$0xf]
        %v1401 = vld [vmem:[%s1370 + $0xb4] sm:$0xff]
        %v1402 = vld [vmem:[%s1370 + $0xbc] sm:$0xf]
        %v1403 = vld [vmem:[%s1370 + $0xc0] sm:$0xff]
        %v1404 = vld [vmem:[%s1370 + $0xc8] sm:$0xf]
        %v1405 = vld [vmem:[%s1370 + $0xcc] sm:$0xff]
        %v1406 = vld [vmem:[%s1370 + $0xd4] sm:$0xf]
        %v1407 = vld [vmem:[%s1370 + $0xd8] sm:$0x77]
        %v1408 = vld [vmem:[%s1370 + $0xe0] sm:$0x7]
        %vm1415 = vcmask 1046528
        %v1416 = vrot.slane %v1366, 1
        %v1417 = vrot.slane %v642, 1
        %v1418 = vsel %vm1415, %v1416, %v1417
        %v1419 = vrot.slane %v1367, 1
        %v1420 = vrot.slane %v643, 1
        %v1421 = vsel %vm1415, %v1419, %v1420
        %v1422 = vrot.slane %v1368, 1
        %v1423 = vsel %vm1415, %v1417, %v1422
        %v1424 = vrot.slane %v1369, 1
        %v1425 = vsel %vm1415, %v1420, %v1424
        %v1467 = vunpack.c.l.b16 %v1371
        %v1468 = vunpack.c.h.b16 %v1371
        %v1469 = vunpack.c.l.b16 %v1372
        %v1470 = vunpack.c.l.b16 %v1373
        %v1471 = vunpack.c.h.b16 %v1373
        %v1472 = vunpack.c.l.b16 %v1374
        %v1473 = vunpack.c.l.b16 %v1375
        %v1474 = vunpack.c.h.b16 %v1375
        %v1475 = vunpack.c.l.b16 %v1376
        %v1476 = vunpack.c.l.b16 %v1377
        %v1477 = vunpack.c.h.b16 %v1377
        %v1478 = vunpack.c.l.b16 %v1378
        %v1479 = vunpack.c.l.b16 %v1379
        %v1480 = vunpack.c.h.b16 %v1379
        %v1481 = vunpack.c.l.b16 %v1380
        %v1482 = vunpack.c.l.b16 %v1381
        %v1483 = vunpack.c.h.b16 %v1381
        %v1484 = vunpack.c.l.b16 %v1382
        %v1485 = vunpack.c.l.b16 %v1383
        %v1486 = vunpack.c.h.b16 %v1383
        %v1487 = vunpack.c.l.b16 %v1384
        %v1488 = vunpack.c.l.b16 %v1385
        %v1489 = vunpack.c.h.b16 %v1385
        %v1490 = vunpack.c.l.b16 %v1386
        %v1491 = vunpack.c.l.b16 %v1387
        %v1492 = vunpack.c.h.b16 %v1387
        %v1493 = vunpack.c.l.b16 %v1388
        %v1494 = vunpack.c.l.b16 %v1389
        %v1495 = vunpack.c.h.b16 %v1389
        %v1496 = vunpack.c.l.b16 %v1390
        %v1497 = vunpack.c.l.b16 %v1391
        %v1498 = vunpack.c.h.b16 %v1391
        %v1499 = vunpack.c.l.b16 %v1392
        %v1500 = vunpack.c.l.b16 %v1393
        %v1501 = vunpack.c.h.b16 %v1393
        %v1502 = vunpack.c.l.b16 %v1394
        %v1503 = vunpack.c.l.b16 %v1395
        %v1504 = vunpack.c.h.b16 %v1395
        %v1505 = vunpack.c.l.b16 %v1396
        %v1506 = vunpack.c.l.b16 %v1397
        %v1507 = vunpack.c.h.b16 %v1397
        %v1508 = vunpack.c.l.b16 %v1398
        %v1509 = vunpack.c.l.b16 %v1399
        %v1510 = vunpack.c.h.b16 %v1399
        %v1511 = vunpack.c.l.b16 %v1400
        %v1512 = vunpack.c.l.b16 %v1401
        %v1513 = vunpack.c.h.b16 %v1401
        %v1514 = vunpack.c.l.b16 %v1402
        %v1515 = vunpack.c.l.b16 %v1403
        %v1516 = vunpack.c.h.b16 %v1403
        %v1517 = vunpack.c.l.b16 %v1404
        %v1518 = vunpack.c.l.b16 %v1405
        %v1519 = vunpack.c.h.b16 %v1405
        %v1520 = vunpack.c.l.b16 %v1406
        %v1521 = vunpack.c.l.b16 %v1407
        %v1522 = vunpack.c.h.b16 %v1407
        %v1523 = vunpack.c.l.b16 %v1408
        %v1524 = vpack.c.b16 %v1470, %v1467
        %v1525 = vpack.c.b16 %v1471, %v1468
        %v1526 = vpack.c.b16 %v1472, %v1469
        %v1527 = vpack.c.b16 %v1476, %v1473
        %v1528 = vpack.c.b16 %v1477, %v1474
        %v1529 = vpack.c.b16 %v1478, %v1475
        %v1530 = vpack.c.b16 %v1482, %v1479
        %v1531 = vpack.c.b16 %v1483, %v1480
        %v1532 = vpack.c.b16 %v1484, %v1481
        %v1533 = vpack.c.b16 %v1488, %v1485
        %v1534 = vpack.c.b16 %v1489, %v1486
        %v1535 = vpack.c.b16 %v1490, %v1487
        %v1536 = vpack.c.b16 %v1494, %v1491
        %v1537 = vpack.c.b16 %v1495, %v1492
        %v1538 = vpack.c.b16 %v1496, %v1493
        %v1539 = vpack.c.b16 %v1500, %v1497
        %v1540 = vpack.c.b16 %v1501, %v1498
        %v1541 = vpack.c.b16 %v1502, %v1499
        %v1542 = vpack.c.b16 %v1506, %v1503
        %v1543 = vpack.c.b16 %v1507, %v1504
        %v1544 = vpack.c.b16 %v1508, %v1505
        %v1545 = vpack.c.b16 %v1512, %v1509
        %v1546 = vpack.c.b16 %v1513, %v1510
        %v1547 = vpack.c.b16 %v1514, %v1511
        %v1548 = vpack.c.b16 %v1518, %v1515
        %v1549 = vpack.c.b16 %v1519, %v1516
        %v1550 = vpack.c.b16 %v1520, %v1517
        %v1551 = vpack.c.b16 %v1521, %v1521
        %v1552 = vpack.c.b16 %v1522, %v1522
        %v1553 = vpack.c.b16 %v1523, %v1523
        %v1582 = vsel %vm933, %v1421, 0
        %v1585 = vsel %vm933, %v1425, 0
        %v1588 = vsel %vm933, %v1424, 0
        %v1591 = vsel %vm943, %v1551, 0
        %v1594 = vsel %vm943, %v1552, 0
        %v1597 = vsel %vm943, %v1553, 0
        %1599 = vmatprep.subr.bf16.mxu0 %v1525
        %1600 = vmatpush1.bf16.msra.mxu0 %v1524
        %1601 = vmatprep.subr.bf16.mxu0 %v1528
        %1602 = vmatpush1.bf16.msra.mxu0 %v1527
        %1603 = vmatprep.subr.bf16.mxu0 %v1531
        %1604 = vmatpush1.bf16.msra.mxu0 %v1530
        %1605 = vmatprep.subr.bf16.mxu0 %v1534
        %1606 = vmatpush1.bf16.msra.mxu0 %v1533
        %1607 = vmatprep.subr.bf16.mxu0 %v1537
        %1608 = vmatpush1.bf16.msra.mxu0 %v1536
        %1609 = vmatprep.subr.bf16.mxu0 %v1540
        %1610 = vmatpush1.bf16.msra.mxu0 %v1539
        %1611 = vmatprep.subr.bf16.mxu0 %v1543
        %1612 = vmatpush1.bf16.msra.mxu0 %v1542
        %1613 = vmatprep.subr.bf16.mxu0 %v1546
        %1614 = vmatpush1.bf16.msra.mxu0 %v1545
        %1615 = vmatprep.subr.bf16.mxu0 %v1549
        %1616 = vmatpush1.bf16.msra.mxu0 %v1548
        %1617 = vmatprep.subr.bf16.mxu0 %v1594
        %1618 = vmatpush1.bf16.msra.mxu0 %v1591
        %1619 = vmatprep.subr.bf16.mxu0 0
        %1620 = vmatpush1.bf16.msra.mxu0 0
        %1621 = vmatprep.subr.bf16.mxu0 0
        %1622 = vmatpush1.bf16.msra.mxu0 0
        %1623 = vmatprep.subr.bf16.mxu0 0
        %1624 = vmatpush1.bf16.msra.mxu0 0
        %1625 = vmatprep.subr.bf16.mxu0 0
        %1626 = vmatpush1.bf16.msra.mxu0 0
        %1627 = vmatprep.subr.bf16.mxu0 0
        %1628 = vmatpush1.bf16.msra.mxu0 0
        %1629 = vmatprep.subr.bf16.mxu0 0
        %1630 = vmatpush1.bf16.msra.mxu0 0
        %1631 = vmatprep.mubr.bf16.mxu0 %v1582
        %1632 = vmatmul.mubr.bf16.gmra.mrb[0].mxu0 %v1418
        %v1633 = vpop.f32.mrb[0].mxu0
        %v1634 = vadd.f32 0.0, %v1633
        %v1635 = vpop.f32.mrb[0].mxu0
        %v1636 = vadd.f32 0.0, %v1635
        %v1637 = vpop.f32.mrb[0].mxu0
        %v1638 = vadd.f32 0.0, %v1637
        %v1639 = vpop.f32.mrb[0].mxu0
        %v1640 = vadd.f32 0.0, %v1639
        %1641 = vmatprep.mubr.bf16.mxu0 %v1585
        %1642 = vmatmul.mubr.bf16.gmra.mrb[0].mxu0 %v1423
        %v1643 = vpop.f32.mrb[0].mxu0
        %v1644 = vadd.f32 0.0, %v1643
        %v1645 = vpop.f32.mrb[0].mxu0
        %v1646 = vadd.f32 0.0, %v1645
        %v1647 = vpop.f32.mrb[0].mxu0
        %v1648 = vadd.f32 0.0, %v1647
        %v1649 = vpop.f32.mrb[0].mxu0
        %v1650 = vadd.f32 0.0, %v1649
        %1651 = vmatprep.mubr.bf16.mxu0 %v1588
        %1652 = vmatmul.mubr.bf16.gmra.mrb[0].mxu0 %v1422
        %v1653 = vpop.f32.mrb[0].mxu0
        %v1654 = vadd.f32 0.0, %v1653
        %v1655 = vpop.f32.mrb[0].mxu0
        %v1656 = vadd.f32 0.0, %v1655
        %v1657 = vpop.f32.mrb[0].mxu0
        %v1658 = vadd.f32 0.0, %v1657
        %v1659 = vpop.f32.mrb[0].mxu0
        %v1660 = vadd.f32 0.0, %v1659
        %1661 = vdwg.mxu0
        %1662 = vmatprep.subr.bf16.mxu0 0
        %1663 = vmatpush1.bf16.msra.mxu0 %v1526
        %1664 = vmatprep.subr.bf16.mxu0 0
        %1665 = vmatpush1.bf16.msra.mxu0 %v1529
        %1666 = vmatprep.subr.bf16.mxu0 0
        %1667 = vmatpush1.bf16.msra.mxu0 %v1532
        %1668 = vmatprep.subr.bf16.mxu0 0
        %1669 = vmatpush1.bf16.msra.mxu0 %v1535
        %1670 = vmatprep.subr.bf16.mxu0 0
        %1671 = vmatpush1.bf16.msra.mxu0 %v1538
        %1672 = vmatprep.subr.bf16.mxu0 0
        %1673 = vmatpush1.bf16.msra.mxu0 %v1541
        %1674 = vmatprep.subr.bf16.mxu0 0
        %1675 = vmatpush1.bf16.msra.mxu0 %v1544
        %1676 = vmatprep.subr.bf16.mxu0 0
        %1677 = vmatpush1.bf16.msra.mxu0 %v1547
        %1678 = vmatprep.subr.bf16.mxu0 0
        %1679 = vmatpush1.bf16.msra.mxu0 %v1550
        %1680 = vmatprep.subr.bf16.mxu0 0
        %1681 = vmatpush1.bf16.msra.mxu0 %v1597
        %1682 = vmatprep.subr.bf16.mxu0 0
        %1683 = vmatpush1.bf16.msra.mxu0 0
        %1684 = vmatprep.subr.bf16.mxu0 0
        %1685 = vmatpush1.bf16.msra.mxu0 0
        %1686 = vmatprep.subr.bf16.mxu0 0
        %1687 = vmatpush1.bf16.msra.mxu0 0
        %1688 = vmatprep.subr.bf16.mxu0 0
        %1689 = vmatpush1.bf16.msra.mxu0 0
        %1690 = vmatprep.subr.bf16.mxu0 0
        %1691 = vmatpush1.bf16.msra.mxu0 0
        %1692 = vmatprep.subr.bf16.mxu0 0
        %1693 = vmatpush1.bf16.msra.mxu0 0
        %1694 = vmatprep.mubr.bf16.mxu0 %v1582
        %1695 = vmatmul.mubr.bf16.gmra.mrb[0].mxu0 %v1418
        %v1696 = vpop.f32.mrb[0].mxu0
        %v1697 = vadd.f32 0.0, %v1696
        %v1698 = vpop.f32.mrb[0].mxu0
        %v1699 = vpop.f32.mrb[0].mxu0
        %v1700 = vadd.f32 0.0, %v1699
        %v1701 = vpop.f32.mrb[0].mxu0
        %1702 = vmatprep.mubr.bf16.mxu0 %v1585
        %1703 = vmatmul.mubr.bf16.gmra.mrb[0].mxu0 %v1423
        %v1704 = vpop.f32.mrb[0].mxu0
        %v1705 = vadd.f32 0.0, %v1704
        %v1706 = vpop.f32.mrb[0].mxu0
        %v1707 = vpop.f32.mrb[0].mxu0
        %v1708 = vadd.f32 0.0, %v1707
        %v1709 = vpop.f32.mrb[0].mxu0
        %1710 = vmatprep.mubr.bf16.mxu0 %v1588
        %1711 = vmatmul.mubr.bf16.gmra.mrb[0].mxu0 %v1422
        %v1712 = vpop.f32.mrb[0].mxu0
        %v1713 = vadd.f32 0.0, %v1712
        %v1714 = vpop.f32.mrb[0].mxu0
        %v1715 = vpop.f32.mrb[0].mxu0
        %v1716 = vadd.f32 0.0, %v1715
        %v1717 = vpop.f32.mrb[0].mxu0
        %1718 = vdwg.mxu0
        %v1719 = vadd.f32 %v1277, %v1634
        %v1720 = vadd.f32 %v1279, %v1636
        %v1721 = vadd.f32 %v1340, %v1697
        %v1722 = vadd.f32 %v1281, %v1638
        %v1723 = vadd.f32 %v1283, %v1640
        %v1724 = vadd.f32 %v1343, %v1700
        %v1725 = vadd.f32 %v1287, %v1644
        %v1726 = vadd.f32 %v1289, %v1646
        %v1727 = vadd.f32 %v1348, %v1705
        %v1728 = vadd.f32 %v1291, %v1648
        %v1729 = vadd.f32 %v1293, %v1650
        %v1730 = vadd.f32 %v1351, %v1708
        %v1731 = vadd.f32 %v1297, %v1654
        %v1732 = vadd.f32 %v1299, %v1656
        %v1733 = vadd.f32 %v1356, %v1713
        %v1734 = vadd.f32 %v1301, %v1658
        %v1735 = vadd.f32 %v1303, %v1660
        %v1736 = vadd.f32 %v1359, %v1716
        %v1737 = vld [vmem:[%s626] sm:$0xf8]
        %v1738 = vld [vmem:[%s626 + $0x8] sm:$0xf8]
        %v1739 = vld [vmem:[%s626 + $0x10] sm:$0xff]
        %v1740 = vld [vmem:[%s626 + $0x18] sm:$0xff]
        %v1741 = vld [vmem:[%s626 + $0x20] sm:$0xff]
        %v1742 = vld [vmem:[%s626 + $0x28] sm:$0xff]
        %v1743 = vld [vmem:[%s626 + $0x30] sm:$0xff]
        %v1744 = vld [vmem:[%s626 + $0x38] sm:$0xff]
        %v1745 = vld [vmem:[%s626 + $0x40] sm:$0xff]
        %v1746 = vld [vmem:[%s626 + $0x48] sm:$0xff]
        %v1747 = vld [vmem:[%s626 + $0x50] sm:$0xff]
        %v1748 = vld [vmem:[%s626 + $0x58] sm:$0xff]
        %v1749 = vld [vmem:[%s626 + $0x60] sm:$0x1]
        %v1750 = vld [vmem:[%s626 + $0x68] sm:$0x1]
        %v1751 = vpack.c.bf16 %v1739, %v1737
        %v1752 = vpack.c.bf16 %v1740, %v1738
        %v1753 = vpack.c.bf16 %v1743, %v1741
        %v1754 = vpack.c.bf16 %v1744, %v1742
        %v1755 = vpack.c.bf16 %v1747, %v1745
        %v1756 = vpack.c.bf16 %v1748, %v1746
        %v1757 = vpack.c.bf16 %v1749, %v1749
        %v1758 = vpack.c.bf16 %v1750, %v1750
        %s1759 = scalar_lea.vmem %s1, 684
        %v1760 = vld [vmem:[%s1759] sm:$0xff]
        %v1761 = vld [vmem:[%s1759 + $0x8] sm:$0xf]
        %v1762 = vld [vmem:[%s1759 + $0xc] sm:$0xff]
        %v1763 = vld [vmem:[%s1759 + $0x14] sm:$0xf]
        %v1764 = vld [vmem:[%s1759 + $0x18] sm:$0xff]
        %v1765 = vld [vmem:[%s1759 + $0x20] sm:$0xf]
        %v1766 = vld [vmem:[%s1759 + $0x24] sm:$0xff]
        %v1767 = vld [vmem:[%s1759 + $0x2c] sm:$0xf]
        %v1768 = vld [vmem:[%s1759 + $0x30] sm:$0xff]
        %v1769 = vld [vmem:[%s1759 + $0x38] sm:$0xf]
        %v1770 = vld [vmem:[%s1759 + $0x3c] sm:$0xff]
        %v1771 = vld [vmem:[%s1759 + $0x44] sm:$0xf]
        %v1772 = vld [vmem:[%s1759 + $0x48] sm:$0xff]
        %v1773 = vld [vmem:[%s1759 + $0x50] sm:$0xf]
        %v1774 = vld [vmem:[%s1759 + $0x54] sm:$0xff]
        %v1775 = vld [vmem:[%s1759 + $0x5c] sm:$0xf]
        %v1776 = vld [vmem:[%s1759 + $0x60] sm:$0xff]
        %v1777 = vld [vmem:[%s1759 + $0x68] sm:$0xf]
        %v1778 = vld [vmem:[%s1759 + $0x6c] sm:$0xff]
        %v1779 = vld [vmem:[%s1759 + $0x74] sm:$0xf]
        %v1780 = vld [vmem:[%s1759 + $0x78] sm:$0xff]
        %v1781 = vld [vmem:[%s1759 + $0x80] sm:$0xf]
        %v1782 = vld [vmem:[%s1759 + $0x84] sm:$0xff]
        %v1783 = vld [vmem:[%s1759 + $0x8c] sm:$0xf]
        %v1784 = vld [vmem:[%s1759 + $0x90] sm:$0xff]
        %v1785 = vld [vmem:[%s1759 + $0x98] sm:$0xf]
        %v1786 = vld [vmem:[%s1759 + $0x9c] sm:$0xff]
        %v1787 = vld [vmem:[%s1759 + $0xa4] sm:$0xf]
        %v1788 = vld [vmem:[%s1759 + $0xa8] sm:$0xff]
        %v1789 = vld [vmem:[%s1759 + $0xb0] sm:$0xf]
        %v1790 = vld [vmem:[%s1759 + $0xb4] sm:$0xff]
        %v1791 = vld [vmem:[%s1759 + $0xbc] sm:$0xf]
        %v1792 = vld [vmem:[%s1759 + $0xc0] sm:$0xff]
        %v1793 = vld [vmem:[%s1759 + $0xc8] sm:$0xf]
        %v1794 = vld [vmem:[%s1759 + $0xcc] sm:$0xff]
        %v1795 = vld [vmem:[%s1759 + $0xd4] sm:$0xf]
        %v1796 = vld [vmem:[%s1759 + $0xd8] sm:$0x77]
        %v1797 = vld [vmem:[%s1759 + $0xe0] sm:$0x7]
        %vm1798 = vsmask.f32 6400
        %v1800 = vshrl.u32 %v1751, 16
        %v1802 = vrot.slane %v1800, 1
        %v1803 = vshll.u32 %v1751, 16
        %v1805 = vrot.slane %v1803, 2
        %v1806 = vor.u32 %v1802, %v1805
        %v1808 = vshrl.u32 %v1753, 16
        %v1810 = vrot.slane %v1808, 1
        %v1811 = vshll.u32 %v1753, 16
        %v1813 = vrot.slane %v1811, 2
        %v1814 = vor.u32 %v1810, %v1813
        %v1815 = vsel %vm1798, %v1806, %v1814
        %v1817 = vshrl.u32 %v1752, 16
        %v1819 = vrot.slane %v1817, 1
        %v1820 = vshll.u32 %v1752, 16
        %v1822 = vrot.slane %v1820, 2
        %v1823 = vor.u32 %v1819, %v1822
        %v1825 = vshrl.u32 %v1754, 16
        %v1827 = vrot.slane %v1825, 1
        %v1828 = vshll.u32 %v1754, 16
        %v1830 = vrot.slane %v1828, 2
        %v1831 = vor.u32 %v1827, %v1830
        %v1832 = vsel %vm1798, %v1823, %v1831
        %v1834 = vshrl.u32 %v1755, 16
        %v1836 = vrot.slane %v1834, 1
        %v1837 = vshll.u32 %v1755, 16
        %v1839 = vrot.slane %v1837, 2
        %v1840 = vor.u32 %v1836, %v1839
        %v1841 = vsel %vm1798, %v1814, %v1840
        %v1843 = vshrl.u32 %v1756, 16
        %v1845 = vrot.slane %v1843, 1
        %v1846 = vshll.u32 %v1756, 16
        %v1848 = vrot.slane %v1846, 2
        %v1849 = vor.u32 %v1845, %v1848
        %v1850 = vsel %vm1798, %v1831, %v1849
        %v1852 = vshll.u32 %v1757, 16
        %v1854 = vrot.slane %v1852, 2
        %v1855 = vsel %vm1798, %v1840, %v1854
        %v1857 = vshll.u32 %v1758, 16
        %v1859 = vrot.slane %v1857, 2
        %v1860 = vsel %vm1798, %v1849, %v1859
        %v1902 = vunpack.c.l.b16 %v1760
        %v1903 = vunpack.c.h.b16 %v1760
        %v1904 = vunpack.c.l.b16 %v1761
        %v1905 = vunpack.c.l.b16 %v1762
        %v1906 = vunpack.c.h.b16 %v1762
        %v1907 = vunpack.c.l.b16 %v1763
        %v1908 = vunpack.c.l.b16 %v1764
        %v1909 = vunpack.c.h.b16 %v1764
        %v1910 = vunpack.c.l.b16 %v1765
        %v1911 = vunpack.c.l.b16 %v1766
        %v1912 = vunpack.c.h.b16 %v1766
        %v1913 = vunpack.c.l.b16 %v1767
        %v1914 = vunpack.c.l.b16 %v1768
        %v1915 = vunpack.c.h.b16 %v1768
        %v1916 = vunpack.c.l.b16 %v1769
        %v1917 = vunpack.c.l.b16 %v1770
        %v1918 = vunpack.c.h.b16 %v1770
        %v1919 = vunpack.c.l.b16 %v1771
        %v1920 = vunpack.c.l.b16 %v1772
        %v1921 = vunpack.c.h.b16 %v1772
        %v1922 = vunpack.c.l.b16 %v1773
        %v1923 = vunpack.c.l.b16 %v1774
        %v1924 = vunpack.c.h.b16 %v1774
        %v1925 = vunpack.c.l.b16 %v1775
        %v1926 = vunpack.c.l.b16 %v1776
        %v1927 = vunpack.c.h.b16 %v1776
        %v1928 = vunpack.c.l.b16 %v1777
        %v1929 = vunpack.c.l.b16 %v1778
        %v1930 = vunpack.c.h.b16 %v1778
        %v1931 = vunpack.c.l.b16 %v1779
        %v1932 = vunpack.c.l.b16 %v1780
        %v1933 = vunpack.c.h.b16 %v1780
        %v1934 = vunpack.c.l.b16 %v1781
        %v1935 = vunpack.c.l.b16 %v1782
        %v1936 = vunpack.c.h.b16 %v1782
        %v1937 = vunpack.c.l.b16 %v1783
        %v1938 = vunpack.c.l.b16 %v1784
        %v1939 = vunpack.c.h.b16 %v1784
        %v1940 = vunpack.c.l.b16 %v1785
        %v1941 = vunpack.c.l.b16 %v1786
        %v1942 = vunpack.c.h.b16 %v1786
        %v1943 = vunpack.c.l.b16 %v1787
        %v1944 = vunpack.c.l.b16 %v1788
        %v1945 = vunpack.c.h.b16 %v1788
        %v1946 = vunpack.c.l.b16 %v1789
        %v1947 = vunpack.c.l.b16 %v1790
        %v1948 = vunpack.c.h.b16 %v1790
        %v1949 = vunpack.c.l.b16 %v1791
        %v1950 = vunpack.c.l.b16 %v1792
        %v1951 = vunpack.c.h.b16 %v1792
        %v1952 = vunpack.c.l.b16 %v1793
        %v1953 = vunpack.c.l.b16 %v1794
        %v1954 = vunpack.c.h.b16 %v1794
        %v1955 = vunpack.c.l.b16 %v1795
        %v1956 = vunpack.c.l.b16 %v1796
        %v1957 = vunpack.c.h.b16 %v1796
        %v1958 = vunpack.c.l.b16 %v1797
        %v1959 = vpack.c.b16 %v1905, %v1902
        %v1960 = vpack.c.b16 %v1906, %v1903
        %v1961 = vpack.c.b16 %v1907, %v1904
        %v1962 = vpack.c.b16 %v1911, %v1908
        %v1963 = vpack.c.b16 %v1912, %v1909
        %v1964 = vpack.c.b16 %v1913, %v1910
        %v1965 = vpack.c.b16 %v1917, %v1914
        %v1966 = vpack.c.b16 %v1918, %v1915
        %v1967 = vpack.c.b16 %v1919, %v1916
        %v1968 = vpack.c.b16 %v1923, %v1920
        %v1969 = vpack.c.b16 %v1924, %v1921
        %v1970 = vpack.c.b16 %v1925, %v1922
        %v1971 = vpack.c.b16 %v1929, %v1926
        %v1972 = vpack.c.b16 %v1930, %v1927
        %v1973 = vpack.c.b16 %v1931, %v1928
        %v1974 = vpack.c.b16 %v1935, %v1932
        %v1975 = vpack.c.b16 %v1936, %v1933
        %v1976 = vpack.c.b16 %v1937, %v1934
        %v1977 = vpack.c.b16 %v1941, %v1938
        %v1978 = vpack.c.b16 %v1942, %v1939
        %v1979 = vpack.c.b16 %v1943, %v1940
        %v1980 = vpack.c.b16 %v1947, %v1944
        %v1981 = vpack.c.b16 %v1948, %v1945
        %v1982 = vpack.c.b16 %v1949, %v1946
        %v1983 = vpack.c.b16 %v1953, %v1950
        %v1984 = vpack.c.b16 %v1954, %v1951
        %v1985 = vpack.c.b16 %v1955, %v1952
        %v1986 = vpack.c.b16 %v1956, %v1956
        %v1987 = vpack.c.b16 %v1957, %v1957
        %v1988 = vpack.c.b16 %v1958, %v1958
        %v2017 = vsel %vm933, %v1832, 0
        %v2020 = vsel %vm933, %v1850, 0
        %v2023 = vsel %vm933, %v1860, 0
        %v2026 = vsel %vm943, %v1986, 0
        %v2029 = vsel %vm943, %v1987, 0
        %v2032 = vsel %vm943, %v1988, 0
        %2034 = vmatprep.subr.bf16.mxu0 %v1960
        %2035 = vmatpush1.bf16.msra.mxu0 %v1959
        %2036 = vmatprep.subr.bf16.mxu0 %v1963
        %2037 = vmatpush1.bf16.msra.mxu0 %v1962
        %2038 = vmatprep.subr.bf16.mxu0 %v1966
        %2039 = vmatpush1.bf16.msra.mxu0 %v1965
        %2040 = vmatprep.subr.bf16.mxu0 %v1969
        %2041 = vmatpush1.bf16.msra.mxu0 %v1968
        %2042 = vmatprep.subr.bf16.mxu0 %v1972
        %2043 = vmatpush1.bf16.msra.mxu0 %v1971
        %2044 = vmatprep.subr.bf16.mxu0 %v1975
        %2045 = vmatpush1.bf16.msra.mxu0 %v1974
        %2046 = vmatprep.subr.bf16.mxu0 %v1978
        %2047 = vmatpush1.bf16.msra.mxu0 %v1977
        %2048 = vmatprep.subr.bf16.mxu0 %v1981
        %2049 = vmatpush1.bf16.msra.mxu0 %v1980
        %2050 = vmatprep.subr.bf16.mxu0 %v1984
        %2051 = vmatpush1.bf16.msra.mxu0 %v1983
        %2052 = vmatprep.subr.bf16.mxu0 %v2029
        %2053 = vmatpush1.bf16.msra.mxu0 %v2026
        %2054 = vmatprep.subr.bf16.mxu0 0
        %2055 = vmatpush1.bf16.msra.mxu0 0
        %2056 = vmatprep.subr.bf16.mxu0 0
        %2057 = vmatpush1.bf16.msra.mxu0 0
        %2058 = vmatprep.subr.bf16.mxu0 0
        %2059 = vmatpush1.bf16.msra.mxu0 0
        %2060 = vmatprep.subr.bf16.mxu0 0
        %2061 = vmatpush1.bf16.msra.mxu0 0
        %2062 = vmatprep.subr.bf16.mxu0 0
        %2063 = vmatpush1.bf16.msra.mxu0 0
        %2064 = vmatprep.subr.bf16.mxu0 0
        %2065 = vmatpush1.bf16.msra.mxu0 0
        %2066 = vmatprep.mubr.bf16.mxu0 %v2017
        %2067 = vmatmul.mubr.bf16.gmra.mrb[0].mxu0 %v1815
        %v2068 = vpop.f32.mrb[0].mxu0
        %v2069 = vadd.f32 0.0, %v2068
        %v2070 = vpop.f32.mrb[0].mxu0
        %v2071 = vadd.f32 0.0, %v2070
        %v2072 = vpop.f32.mrb[0].mxu0
        %v2073 = vadd.f32 0.0, %v2072
        %v2074 = vpop.f32.mrb[0].mxu0
        %v2075 = vadd.f32 0.0, %v2074
        %2076 = vmatprep.mubr.bf16.mxu0 %v2020
        %2077 = vmatmul.mubr.bf16.gmra.mrb[0].mxu0 %v1841
        %v2078 = vpop.f32.mrb[0].mxu0
        %v2079 = vadd.f32 0.0, %v2078
        %v2080 = vpop.f32.mrb[0].mxu0
        %v2081 = vadd.f32 0.0, %v2080
        %v2082 = vpop.f32.mrb[0].mxu0
        %v2083 = vadd.f32 0.0, %v2082
        %v2084 = vpop.f32.mrb[0].mxu0
        %v2085 = vadd.f32 0.0, %v2084
        %2086 = vmatprep.mubr.bf16.mxu0 %v2023
        %2087 = vmatmul.mubr.bf16.gmra.mrb[0].mxu0 %v1855
        %v2088 = vpop.f32.mrb[0].mxu0
        %v2089 = vadd.f32 0.0, %v2088
        %v2090 = vpop.f32.mrb[0].mxu0
        %v2091 = vadd.f32 0.0, %v2090
        %v2092 = vpop.f32.mrb[0].mxu0
        %v2093 = vadd.f32 0.0, %v2092
        %v2094 = vpop.f32.mrb[0].mxu0
        %v2095 = vadd.f32 0.0, %v2094
        %2096 = vdwg.mxu0
        %2097 = vmatprep.subr.bf16.mxu0 0
        %2098 = vmatpush1.bf16.msra.mxu0 %v1961
        %2099 = vmatprep.subr.bf16.mxu0 0
        %2100 = vmatpush1.bf16.msra.mxu0 %v1964
        %2101 = vmatprep.subr.bf16.mxu0 0
        %2102 = vmatpush1.bf16.msra.mxu0 %v1967
        %2103 = vmatprep.subr.bf16.mxu0 0
        %2104 = vmatpush1.bf16.msra.mxu0 %v1970
        %2105 = vmatprep.subr.bf16.mxu0 0
        %2106 = vmatpush1.bf16.msra.mxu0 %v1973
        %2107 = vmatprep.subr.bf16.mxu0 0
        %2108 = vmatpush1.bf16.msra.mxu0 %v1976
        %2109 = vmatprep.subr.bf16.mxu0 0
        %2110 = vmatpush1.bf16.msra.mxu0 %v1979
        %2111 = vmatprep.subr.bf16.mxu0 0
        %2112 = vmatpush1.bf16.msra.mxu0 %v1982
        %2113 = vmatprep.subr.bf16.mxu0 0
        %2114 = vmatpush1.bf16.msra.mxu0 %v1985
        %2115 = vmatprep.subr.bf16.mxu0 0
        %2116 = vmatpush1.bf16.msra.mxu0 %v2032
        %2117 = vmatprep.subr.bf16.mxu0 0
        %2118 = vmatpush1.bf16.msra.mxu0 0
        %2119 = vmatprep.subr.bf16.mxu0 0
        %2120 = vmatpush1.bf16.msra.mxu0 0
        %2121 = vmatprep.subr.bf16.mxu0 0
        %2122 = vmatpush1.bf16.msra.mxu0 0
        %2123 = vmatprep.subr.bf16.mxu0 0
        %2124 = vmatpush1.bf16.msra.mxu0 0
        %2125 = vmatprep.subr.bf16.mxu0 0
        %2126 = vmatpush1.bf16.msra.mxu0 0
        %2127 = vmatprep.subr.bf16.mxu0 0
        %2128 = vmatpush1.bf16.msra.mxu0 0
        %2129 = vmatprep.mubr.bf16.mxu0 %v2017
        %2130 = vmatmul.mubr.bf16.gmra.mrb[0].mxu0 %v1815
        %v2131 = vpop.f32.mrb[0].mxu0
        %v2132 = vadd.f32 0.0, %v2131
        %v2133 = vpop.f32.mrb[0].mxu0
        %v2134 = vpop.f32.mrb[0].mxu0
        %v2135 = vadd.f32 0.0, %v2134
        %v2136 = vpop.f32.mrb[0].mxu0
        %2137 = vmatprep.mubr.bf16.mxu0 %v2020
        %2138 = vmatmul.mubr.bf16.gmra.mrb[0].mxu0 %v1841
        %v2139 = vpop.f32.mrb[0].mxu0
        %v2140 = vadd.f32 0.0, %v2139
        %v2141 = vpop.f32.mrb[0].mxu0
        %v2142 = vpop.f32.mrb[0].mxu0
        %v2143 = vadd.f32 0.0, %v2142
        %v2144 = vpop.f32.mrb[0].mxu0
        %2145 = vmatprep.mubr.bf16.mxu0 %v2023
        %2146 = vmatmul.mubr.bf16.gmra.mrb[0].mxu0 %v1855
        %v2147 = vpop.f32.mrb[0].mxu0
        %v2148 = vadd.f32 0.0, %v2147
        %v2149 = vpop.f32.mrb[0].mxu0
        %v2150 = vpop.f32.mrb[0].mxu0
        %v2151 = vadd.f32 0.0, %v2150
        %v2152 = vpop.f32.mrb[0].mxu0
        %2153 = vdwg.mxu0
        %v2154 = vadd.f32 %v1719, %v2069
        %v2155 = vadd.f32 %v1720, %v2071
        %v2156 = vadd.f32 %v1721, %v2132
        %v2157 = vadd.f32 %v1722, %v2073
        %v2158 = vadd.f32 %v1723, %v2075
        %v2159 = vadd.f32 %v1724, %v2135
        %v2160 = vadd.f32 %v1725, %v2079
        %v2161 = vadd.f32 %v1726, %v2081
        %v2162 = vadd.f32 %v1727, %v2140
        %v2163 = vadd.f32 %v1728, %v2083
        %v2164 = vadd.f32 %v1729, %v2085
        %v2165 = vadd.f32 %v1730, %v2143
        %v2166 = vadd.f32 %v1731, %v2089
        %v2167 = vadd.f32 %v1732, %v2091
        %v2168 = vadd.f32 %v1733, %v2148
        %v2169 = vadd.f32 %v1734, %v2093
        %v2170 = vadd.f32 %v1735, %v2095
        %v2171 = vadd.f32 %v1736, %v2151
        %v2172 = vld [vmem:[%s626] sm:$0xf0]
        %v2173 = vld [vmem:[%s626 + $0x8] sm:$0xf0]
        %v2174 = vld [vmem:[%s626 + $0x60] sm:$0x3]
        %v2175 = vld [vmem:[%s626 + $0x68] sm:$0x3]
        %v2176 = vpack.c.bf16 %v1739, %v2172
        %v2177 = vpack.c.bf16 %v1740, %v2173
        %v2178 = vpack.c.bf16 %v2174, %v2174
        %v2179 = vpack.c.bf16 %v2175, %v2175
        %s2180 = scalar_lea.vmem %s1, 912
        %v2181 = vld [vmem:[%s2180] sm:$0xff]
        %v2182 = vld [vmem:[%s2180 + $0x8] sm:$0xf]
        %v2183 = vld [vmem:[%s2180 + $0xc] sm:$0xff]
        %v2184 = vld [vmem:[%s2180 + $0x14] sm:$0xf]
        %v2185 = vld [vmem:[%s2180 + $0x18] sm:$0xff]
        %v2186 = vld [vmem:[%s2180 + $0x20] sm:$0xf]
        %v2187 = vld [vmem:[%s2180 + $0x24] sm:$0xff]
        %v2188 = vld [vmem:[%s2180 + $0x2c] sm:$0xf]
        %v2189 = vld [vmem:[%s2180 + $0x30] sm:$0xff]
        %v2190 = vld [vmem:[%s2180 + $0x38] sm:$0xf]
        %v2191 = vld [vmem:[%s2180 + $0x3c] sm:$0xff]
        %v2192 = vld [vmem:[%s2180 + $0x44] sm:$0xf]
        %v2193 = vld [vmem:[%s2180 + $0x48] sm:$0xff]
        %v2194 = vld [vmem:[%s2180 + $0x50] sm:$0xf]
        %v2195 = vld [vmem:[%s2180 + $0x54] sm:$0xff]
        %v2196 = vld [vmem:[%s2180 + $0x5c] sm:$0xf]
        %v2197 = vld [vmem:[%s2180 + $0x60] sm:$0xff]
        %v2198 = vld [vmem:[%s2180 + $0x68] sm:$0xf]
        %v2199 = vld [vmem:[%s2180 + $0x6c] sm:$0xff]
        %v2200 = vld [vmem:[%s2180 + $0x74] sm:$0xf]
        %v2201 = vld [vmem:[%s2180 + $0x78] sm:$0xff]
        %v2202 = vld [vmem:[%s2180 + $0x80] sm:$0xf]
        %v2203 = vld [vmem:[%s2180 + $0x84] sm:$0xff]
        %v2204 = vld [vmem:[%s2180 + $0x8c] sm:$0xf]
        %v2205 = vld [vmem:[%s2180 + $0x90] sm:$0xff]
        %v2206 = vld [vmem:[%s2180 + $0x98] sm:$0xf]
        %v2207 = vld [vmem:[%s2180 + $0x9c] sm:$0xff]
        %v2208 = vld [vmem:[%s2180 + $0xa4] sm:$0xf]
        %v2209 = vld [vmem:[%s2180 + $0xa8] sm:$0xff]
        %v2210 = vld [vmem:[%s2180 + $0xb0] sm:$0xf]
        %v2211 = vld [vmem:[%s2180 + $0xb4] sm:$0xff]
        %v2212 = vld [vmem:[%s2180 + $0xbc] sm:$0xf]
        %v2213 = vld [vmem:[%s2180 + $0xc0] sm:$0xff]
        %v2214 = vld [vmem:[%s2180 + $0xc8] sm:$0xf]
        %v2215 = vld [vmem:[%s2180 + $0xcc] sm:$0xff]
        %v2216 = vld [vmem:[%s2180 + $0xd4] sm:$0xf]
        %v2217 = vld [vmem:[%s2180 + $0xd8] sm:$0x77]
        %v2218 = vld [vmem:[%s2180 + $0xe0] sm:$0x7]
        %vm2227 = vcmask 1045504
        %v2228 = vrot.slane %v2176, 2
        %v2229 = vrot.slane %v1753, 2
        %v2230 = vsel %vm2227, %v2228, %v2229
        %v2231 = vrot.slane %v2177, 2
        %v2232 = vrot.slane %v1754, 2
        %v2233 = vsel %vm2227, %v2231, %v2232
        %v2234 = vrot.slane %v1755, 2
        %v2235 = vsel %vm2227, %v2229, %v2234
        %v2236 = vrot.slane %v1756, 2
        %v2237 = vsel %vm2227, %v2232, %v2236
        %v2238 = vrot.slane %v2178, 2
        %v2239 = vsel %vm2227, %v2234, %v2238
        %v2240 = vrot.slane %v2179, 2
        %v2241 = vsel %vm2227, %v2236, %v2240
        %v2283 = vunpack.c.l.b16 %v2181
        %v2284 = vunpack.c.h.b16 %v2181
        %v2285 = vunpack.c.l.b16 %v2182
        %v2286 = vunpack.c.l.b16 %v2183
        %v2287 = vunpack.c.h.b16 %v2183
        %v2288 = vunpack.c.l.b16 %v2184
        %v2289 = vunpack.c.l.b16 %v2185
        %v2290 = vunpack.c.h.b16 %v2185
        %v2291 = vunpack.c.l.b16 %v2186
        %v2292 = vunpack.c.l.b16 %v2187
        %v2293 = vunpack.c.h.b16 %v2187
        %v2294 = vunpack.c.l.b16 %v2188
        %v2295 = vunpack.c.l.b16 %v2189
        %v2296 = vunpack.c.h.b16 %v2189
        %v2297 = vunpack.c.l.b16 %v2190
        %v2298 = vunpack.c.l.b16 %v2191
        %v2299 = vunpack.c.h.b16 %v2191
        %v2300 = vunpack.c.l.b16 %v2192
        %v2301 = vunpack.c.l.b16 %v2193
        %v2302 = vunpack.c.h.b16 %v2193
        %v2303 = vunpack.c.l.b16 %v2194
        %v2304 = vunpack.c.l.b16 %v2195
        %v2305 = vunpack.c.h.b16 %v2195
        %v2306 = vunpack.c.l.b16 %v2196
        %v2307 = vunpack.c.l.b16 %v2197
        %v2308 = vunpack.c.h.b16 %v2197
        %v2309 = vunpack.c.l.b16 %v2198
        %v2310 = vunpack.c.l.b16 %v2199
        %v2311 = vunpack.c.h.b16 %v2199
        %v2312 = vunpack.c.l.b16 %v2200
        %v2313 = vunpack.c.l.b16 %v2201
        %v2314 = vunpack.c.h.b16 %v2201
        %v2315 = vunpack.c.l.b16 %v2202
        %v2316 = vunpack.c.l.b16 %v2203
        %v2317 = vunpack.c.h.b16 %v2203
        %v2318 = vunpack.c.l.b16 %v2204
        %v2319 = vunpack.c.l.b16 %v2205
        %v2320 = vunpack.c.h.b16 %v2205
        %v2321 = vunpack.c.l.b16 %v2206
        %v2322 = vunpack.c.l.b16 %v2207
        %v2323 = vunpack.c.h.b16 %v2207
        %v2324 = vunpack.c.l.b16 %v2208
        %v2325 = vunpack.c.l.b16 %v2209
        %v2326 = vunpack.c.h.b16 %v2209
        %v2327 = vunpack.c.l.b16 %v2210
        %v2328 = vunpack.c.l.b16 %v2211
        %v2329 = vunpack.c.h.b16 %v2211
        %v2330 = vunpack.c.l.b16 %v2212
        %v2331 = vunpack.c.l.b16 %v2213
        %v2332 = vunpack.c.h.b16 %v2213
        %v2333 = vunpack.c.l.b16 %v2214
        %v2334 = vunpack.c.l.b16 %v2215
        %v2335 = vunpack.c.h.b16 %v2215
        %v2336 = vunpack.c.l.b16 %v2216
        %v2337 = vunpack.c.l.b16 %v2217
        %v2338 = vunpack.c.h.b16 %v2217
        %v2339 = vunpack.c.l.b16 %v2218
        %v2340 = vpack.c.b16 %v2286, %v2283
        %v2341 = vpack.c.b16 %v2287, %v2284
        %v2342 = vpack.c.b16 %v2288, %v2285
        %v2343 = vpack.c.b16 %v2292, %v2289
        %v2344 = vpack.c.b16 %v2293, %v2290
        %v2345 = vpack.c.b16 %v2294, %v2291
        %v2346 = vpack.c.b16 %v2298, %v2295
        %v2347 = vpack.c.b16 %v2299, %v2296
        %v2348 = vpack.c.b16 %v2300, %v2297
        %v2349 = vpack.c.b16 %v2304, %v2301
        %v2350 = vpack.c.b16 %v2305, %v2302
        %v2351 = vpack.c.b16 %v2306, %v2303
        %v2352 = vpack.c.b16 %v2310, %v2307
        %v2353 = vpack.c.b16 %v2311, %v2308
        %v2354 = vpack.c.b16 %v2312, %v2309
        %v2355 = vpack.c.b16 %v2316, %v2313
        %v2356 = vpack.c.b16 %v2317, %v2314
        %v2357 = vpack.c.b16 %v2318, %v2315
        %v2358 = vpack.c.b16 %v2322, %v2319
        %v2359 = vpack.c.b16 %v2323, %v2320
        %v2360 = vpack.c.b16 %v2324, %v2321
        %v2361 = vpack.c.b16 %v2328, %v2325
        %v2362 = vpack.c.b16 %v2329, %v2326
        %v2363 = vpack.c.b16 %v2330, %v2327
        %v2364 = vpack.c.b16 %v2334, %v2331
        %v2365 = vpack.c.b16 %v2335, %v2332
        %v2366 = vpack.c.b16 %v2336, %v2333
        %v2367 = vpack.c.b16 %v2337, %v2337
        %v2368 = vpack.c.b16 %v2338, %v2338
        %v2369 = vpack.c.b16 %v2339, %v2339
        %v2398 = vsel %vm933, %v2233, 0
        %v2401 = vsel %vm933, %v2237, 0
        %v2404 = vsel %vm933, %v2241, 0
        %v2407 = vsel %vm943, %v2367, 0
        %v2410 = vsel %vm943, %v2368, 0
        %v2413 = vsel %vm943, %v2369, 0
        %2415 = vmatprep.subr.bf16.mxu0 %v2341
        %2416 = vmatpush1.bf16.msra.mxu0 %v2340
        %2417 = vmatprep.subr.bf16.mxu0 %v2344
        %2418 = vmatpush1.bf16.msra.mxu0 %v2343
        %2419 = vmatprep.subr.bf16.mxu0 %v2347
        %2420 = vmatpush1.bf16.msra.mxu0 %v2346
        %2421 = vmatprep.subr.bf16.mxu0 %v2350
        %2422 = vmatpush1.bf16.msra.mxu0 %v2349
        %2423 = vmatprep.subr.bf16.mxu0 %v2353
        %2424 = vmatpush1.bf16.msra.mxu0 %v2352
        %2425 = vmatprep.subr.bf16.mxu0 %v2356
        %2426 = vmatpush1.bf16.msra.mxu0 %v2355
        %2427 = vmatprep.subr.bf16.mxu0 %v2359
        %2428 = vmatpush1.bf16.msra.mxu0 %v2358
        %2429 = vmatprep.subr.bf16.mxu0 %v2362
        %2430 = vmatpush1.bf16.msra.mxu0 %v2361
        %2431 = vmatprep.subr.bf16.mxu0 %v2365
        %2432 = vmatpush1.bf16.msra.mxu0 %v2364
        %2433 = vmatprep.subr.bf16.mxu0 %v2410
        %2434 = vmatpush1.bf16.msra.mxu0 %v2407
        %2435 = vmatprep.subr.bf16.mxu0 0
        %2436 = vmatpush1.bf16.msra.mxu0 0
        %2437 = vmatprep.subr.bf16.mxu0 0
        %2438 = vmatpush1.bf16.msra.mxu0 0
        %2439 = vmatprep.subr.bf16.mxu0 0
        %2440 = vmatpush1.bf16.msra.mxu0 0
        %2441 = vmatprep.subr.bf16.mxu0 0
        %2442 = vmatpush1.bf16.msra.mxu0 0
        %2443 = vmatprep.subr.bf16.mxu0 0
        %2444 = vmatpush1.bf16.msra.mxu0 0
        %2445 = vmatprep.subr.bf16.mxu0 0
        %2446 = vmatpush1.bf16.msra.mxu0 0
        %2447 = vmatprep.mubr.bf16.mxu0 %v2398
        %2448 = vmatmul.mubr.bf16.gmra.mrb[0].mxu0 %v2230
        %v2449 = vpop.f32.mrb[0].mxu0
        %v2450 = vadd.f32 0.0, %v2449
        %v2451 = vpop.f32.mrb[0].mxu0
        %v2452 = vadd.f32 0.0, %v2451
        %v2453 = vpop.f32.mrb[0].mxu0
        %v2454 = vadd.f32 0.0, %v2453
        %v2455 = vpop.f32.mrb[0].mxu0
        %v2456 = vadd.f32 0.0, %v2455
        %2457 = vmatprep.mubr.bf16.mxu0 %v2401
        %2458 = vmatmul.mubr.bf16.gmra.mrb[0].mxu0 %v2235
        %v2459 = vpop.f32.mrb[0].mxu0
        %v2460 = vadd.f32 0.0, %v2459
        %v2461 = vpop.f32.mrb[0].mxu0
        %v2462 = vadd.f32 0.0, %v2461
        %v2463 = vpop.f32.mrb[0].mxu0
        %v2464 = vadd.f32 0.0, %v2463
        %v2465 = vpop.f32.mrb[0].mxu0
        %v2466 = vadd.f32 0.0, %v2465
        %2467 = vmatprep.mubr.bf16.mxu0 %v2404
        %2468 = vmatmul.mubr.bf16.gmra.mrb[0].mxu0 %v2239
        %v2469 = vpop.f32.mrb[0].mxu0
        %v2470 = vadd.f32 0.0, %v2469
        %v2471 = vpop.f32.mrb[0].mxu0
        %v2472 = vadd.f32 0.0, %v2471
        %v2473 = vpop.f32.mrb[0].mxu0
        %v2474 = vadd.f32 0.0, %v2473
        %v2475 = vpop.f32.mrb[0].mxu0
        %v2476 = vadd.f32 0.0, %v2475
        %2477 = vdwg.mxu0
        %2478 = vmatprep.subr.bf16.mxu0 0
        %2479 = vmatpush1.bf16.msra.mxu0 %v2342
        %2480 = vmatprep.subr.bf16.mxu0 0
        %2481 = vmatpush1.bf16.msra.mxu0 %v2345
        %2482 = vmatprep.subr.bf16.mxu0 0
        %2483 = vmatpush1.bf16.msra.mxu0 %v2348
        %2484 = vmatprep.subr.bf16.mxu0 0
        %2485 = vmatpush1.bf16.msra.mxu0 %v2351
        %2486 = vmatprep.subr.bf16.mxu0 0
        %2487 = vmatpush1.bf16.msra.mxu0 %v2354
        %2488 = vmatprep.subr.bf16.mxu0 0
        %2489 = vmatpush1.bf16.msra.mxu0 %v2357
        %2490 = vmatprep.subr.bf16.mxu0 0
        %2491 = vmatpush1.bf16.msra.mxu0 %v2360
        %2492 = vmatprep.subr.bf16.mxu0 0
        %2493 = vmatpush1.bf16.msra.mxu0 %v2363
        %2494 = vmatprep.subr.bf16.mxu0 0
        %2495 = vmatpush1.bf16.msra.mxu0 %v2366
        %2496 = vmatprep.subr.bf16.mxu0 0
        %2497 = vmatpush1.bf16.msra.mxu0 %v2413
        %2498 = vmatprep.subr.bf16.mxu0 0
        %2499 = vmatpush1.bf16.msra.mxu0 0
        %2500 = vmatprep.subr.bf16.mxu0 0
        %2501 = vmatpush1.bf16.msra.mxu0 0
        %2502 = vmatprep.subr.bf16.mxu0 0
        %2503 = vmatpush1.bf16.msra.mxu0 0
        %2504 = vmatprep.subr.bf16.mxu0 0
        %2505 = vmatpush1.bf16.msra.mxu0 0
        %2506 = vmatprep.subr.bf16.mxu0 0
        %2507 = vmatpush1.bf16.msra.mxu0 0
        %2508 = vmatprep.subr.bf16.mxu0 0
        %2509 = vmatpush1.bf16.msra.mxu0 0
        %2510 = vmatprep.mubr.bf16.mxu0 %v2398
        %2511 = vmatmul.mubr.bf16.gmra.mrb[0].mxu0 %v2230
        %v2512 = vpop.f32.mrb[0].mxu0
        %v2513 = vadd.f32 0.0, %v2512
        %v2514 = vpop.f32.mrb[0].mxu0
        %v2515 = vpop.f32.mrb[0].mxu0
        %v2516 = vadd.f32 0.0, %v2515
        %v2517 = vpop.f32.mrb[0].mxu0
        %2518 = vmatprep.mubr.bf16.mxu0 %v2401
        %2519 = vmatmul.mubr.bf16.gmra.mrb[0].mxu0 %v2235
        %v2520 = vpop.f32.mrb[0].mxu0
        %v2521 = vadd.f32 0.0, %v2520
        %v2522 = vpop.f32.mrb[0].mxu0
        %v2523 = vpop.f32.mrb[0].mxu0
        %v2524 = vadd.f32 0.0, %v2523
        %v2525 = vpop.f32.mrb[0].mxu0
        %2526 = vmatprep.mubr.bf16.mxu0 %v2404
        %2527 = vmatmul.mubr.bf16.gmra.mrb[0].mxu0 %v2239
        %v2528 = vpop.f32.mrb[0].mxu0
        %v2529 = vadd.f32 0.0, %v2528
        %v2530 = vpop.f32.mrb[0].mxu0
        %v2531 = vpop.f32.mrb[0].mxu0
        %v2532 = vadd.f32 0.0, %v2531
        %v2533 = vpop.f32.mrb[0].mxu0
        %2534 = vdwg.mxu0
        %v2535 = vadd.f32 %v2154, %v2450
        %v2536 = vadd.f32 %v2155, %v2452
        %v2537 = vadd.f32 %v2156, %v2513
        %v2538 = vadd.f32 %v2157, %v2454
        %v2539 = vadd.f32 %v2158, %v2456
        %v2540 = vadd.f32 %v2159, %v2516
        %v2541 = vadd.f32 %v2160, %v2460
        %v2542 = vadd.f32 %v2161, %v2462
        %v2543 = vadd.f32 %v2162, %v2521
        %v2544 = vadd.f32 %v2163, %v2464
        %v2545 = vadd.f32 %v2164, %v2466
        %v2546 = vadd.f32 %v2165, %v2524
        %v2547 = vadd.f32 %v2166, %v2470
        %v2548 = vadd.f32 %v2167, %v2472
        %v2549 = vadd.f32 %v2168, %v2529
        %v2550 = vadd.f32 %v2169, %v2474
        %v2551 = vadd.f32 %v2170, %v2476
        %v2552 = vadd.f32 %v2171, %v2532
        %v2553 = vld [vmem:[%s2] sm:$0x7]
        %v2555 = vlaneseq
        %v2556 = vshrl.u32 %v2555, 7
        %v2557 = vsub.s32 0, %v2556
        %v2558 = vrot.slane %v2553, %v2557
        %v2559 = vlaneseq
        %v2560 = vshrl.u32 %v2559, 7
        %v2561 = vsub.s32 1, %v2560
        %v2562 = vrot.slane %v2553, %v2561
        %v2563 = vlaneseq
        %v2564 = vshrl.u32 %v2563, 7
        %v2565 = vsub.s32 2, %v2564
        %v2566 = vrot.slane %v2553, %v2565
        %v2570 = vadd.f32 %v2535, %v2558
        %v2571 = vadd.f32 %v2536, %v2562
        %v2572 = vadd.f32 %v2537, %v2566
        %v2573 = vadd.f32 %v2538, %v2558
        %v2574 = vadd.f32 %v2539, %v2562
        %v2575 = vadd.f32 %v2540, %v2566
        %v2576 = vadd.f32 %v2541, %v2558
        %v2577 = vadd.f32 %v2542, %v2562
        %v2578 = vadd.f32 %v2543, %v2566
        %v2579 = vadd.f32 %v2544, %v2558
        %v2580 = vadd.f32 %v2545, %v2562
        %v2581 = vadd.f32 %v2546, %v2566
        %v2582 = vadd.f32 %v2547, %v2558
        %v2583 = vadd.f32 %v2548, %v2562
        %v2584 = vadd.f32 %v2549, %v2566
        %v2585 = vadd.f32 %v2550, %v2558
        %v2586 = vadd.f32 %v2551, %v2562
        %v2587 = vadd.f32 %v2552, %v2566
        %v2588 = vmax.f32 %v2570, 0.0
        %v2589 = vmax.f32 %v2571, 0.0
        %v2590 = vmax.f32 %v2572, 0.0
        %v2591 = vmax.f32 %v2573, 0.0
        %v2592 = vmax.f32 %v2574, 0.0
        %v2593 = vmax.f32 %v2575, 0.0
        %v2594 = vmax.f32 %v2576, 0.0
        %v2595 = vmax.f32 %v2577, 0.0
        %v2596 = vmax.f32 %v2578, 0.0
        %v2597 = vmax.f32 %v2579, 0.0
        %v2598 = vmax.f32 %v2580, 0.0
        %v2599 = vmax.f32 %v2581, 0.0
        %v2600 = vmax.f32 %v2582, 0.0
        %v2601 = vmax.f32 %v2583, 0.0
        %v2602 = vmax.f32 %v2584, 0.0
        %v2603 = vmax.f32 %v2585, 0.0
        %v2604 = vmax.f32 %v2586, 0.0
        %v2605 = vmax.f32 %v2587, 0.0
        %v2606 = vld [vmem:[%s3] sm:$0xff]
        %v2607 = vld [vmem:[%s3 + $0x8] sm:$0xff]
        %v2608 = vld [vmem:[%s3 + $0x10] sm:$0x7f]
        %vm2609 = vcmask 375808
        %v2611 = vsel %vm2609, %v2606, 0
        %v2614 = vsel %vm2609, %v2607, 0
        %v2617 = vsel %vm2609, %v2608, 0
        %vm2619 = vcmask 1045504
        %v2621 = vsel %vm2619, %v2603, 0
        %v2624 = vsel %vm2619, %v2604, 0
        %v2627 = vsel %vm2619, %v2605, 0
        %2629 = vmatprep.subr.mxu0 %v2589
        %2630 = vmatpush1.msra.mxu0 %v2588
        %2631 = vmatprep.subr.mxu0 %v2592
        %2632 = vmatpush1.msra.mxu0 %v2591
        %2633 = vmatprep.subr.mxu0 %v2595
        %2634 = vmatpush1.msra.mxu0 %v2594
        %2635 = vmatprep.subr.mxu0 %v2598
        %2636 = vmatpush1.msra.mxu0 %v2597
        %2637 = vmatprep.subr.mxu0 %v2601
        %2638 = vmatpush1.msra.mxu0 %v2600
        %2639 = vmatprep.subr.mxu0 %v2624
        %2640 = vmatpush1.msra.mxu0 %v2621
        %2641 = vmatprep.subr.mxu0 0.0
        %2642 = vmatpush1.msra.mxu0 0.0
        %2643 = vmatprep.subr.mxu0 0.0
        %2644 = vmatpush1.msra.mxu0 0.0
        %2645 = vmatprep.subr.mxu0 0.0
        %2646 = vmatpush1.msra.mxu0 0.0
        %2647 = vmatprep.subr.mxu0 0.0
        %2648 = vmatpush1.msra.mxu0 0.0
        %2649 = vmatprep.subr.mxu0 0.0
        %2650 = vmatpush1.msra.mxu0 0.0
        %2651 = vmatprep.subr.mxu0 0.0
        %2652 = vmatpush1.msra.mxu0 0.0
        %2653 = vmatprep.subr.mxu0 0.0
        %2654 = vmatpush1.msra.mxu0 0.0
        %2655 = vmatprep.subr.mxu0 0.0
        %2656 = vmatpush1.msra.mxu0 0.0
        %2657 = vmatprep.subr.mxu0 0.0
        %2658 = vmatpush1.msra.mxu0 0.0
        %2659 = vmatprep.subr.mxu0 0.0
        %2660 = vmatpush1.msra.mxu0 0.0
        %2661 = vmatprep.subr.mxu0 0.0
        %2662 = vmatpush1.msra.mxu0 0.0
        %2663 = vmatprep.subr.mxu0 0.0
        %2664 = vmatpush1.msra.mxu0 0.0
        %2665 = vmatprep.subr.mxu0 0.0
        %2666 = vmatpush1.msra.mxu0 0.0
        %2667 = vmatprep.subr.mxu0 0.0
        %2668 = vmatpush1.msra.mxu0 0.0
        %2669 = vmatprep.subr.mxu0 0.0
        %2670 = vmatpush1.msra.mxu0 0.0
        %2671 = vmatprep.subr.mxu0 0.0
        %2672 = vmatpush1.msra.mxu0 0.0
        %2673 = vmatprep.subr.mxu0 0.0
        %2674 = vmatpush1.msra.mxu0 0.0
        %2675 = vmatprep.subr.mxu0 0.0
        %2676 = vmatpush1.msra.mxu0 0.0
        %2677 = vmatprep.subr.mxu0 0.0
        %2678 = vmatpush1.msra.mxu0 0.0
        %2679 = vmatprep.subr.mxu0 0.0
        %2680 = vmatpush1.msra.mxu0 0.0
        %2681 = vmatprep.subr.mxu0 0.0
        %2682 = vmatpush1.msra.mxu0 0.0
        %2683 = vmatprep.subr.mxu0 0.0
        %2684 = vmatpush1.msra.mxu0 0.0
        %2685 = vmatprep.subr.mxu0 0.0
        %2686 = vmatpush1.msra.mxu0 0.0
        %2687 = vmatprep.subr.mxu0 0.0
        %2688 = vmatpush1.msra.mxu0 0.0
        %2689 = vmatprep.subr.mxu0 0.0
        %2690 = vmatpush1.msra.mxu0 0.0
        %2691 = vmatprep.subr.mxu0 0.0
        %2692 = vmatpush1.msra.mxu0 0.0
        %2693 = vmatprep.mubr.f32.mxu0 0.0
        %2694 = vmatmul.mubr.f32.gmra.mrb[0].mxu0 %v2611
        %v2695 = vpop.f32.mrb[0].mxu0
        %v2696 = vadd.f32 0.0, %v2695
        %v2697 = vpop.f32.mrb[0].mxu0
        %v2698 = vadd.f32 0.0, %v2697
        %2699 = vmatprep.mubr.f32.mxu0 0.0
        %2700 = vmatmul.mubr.f32.gmra.mrb[0].mxu0 %v2614
        %v2701 = vpop.f32.mrb[0].mxu0
        %v2702 = vadd.f32 0.0, %v2701
        %v2703 = vpop.f32.mrb[0].mxu0
        %v2704 = vadd.f32 0.0, %v2703
        %2705 = vmatprep.mubr.f32.mxu0 0.0
        %2706 = vmatmul.mubr.f32.gmra.mrb[0].mxu0 %v2617
        %v2707 = vpop.f32.mrb[0].mxu0
        %v2708 = vadd.f32 0.0, %v2707
        %v2709 = vpop.f32.mrb[0].mxu0
        %v2710 = vadd.f32 0.0, %v2709
        %2711 = vdwg.mxu0
        %2712 = vmatprep.subr.mxu0 0.0
        %2713 = vmatpush1.msra.mxu0 %v2590
        %2714 = vmatprep.subr.mxu0 0.0
        %2715 = vmatpush1.msra.mxu0 %v2593
        %2716 = vmatprep.subr.mxu0 0.0
        %2717 = vmatpush1.msra.mxu0 %v2596
        %2718 = vmatprep.subr.mxu0 0.0
        %2719 = vmatpush1.msra.mxu0 %v2599
        %2720 = vmatprep.subr.mxu0 0.0
        %2721 = vmatpush1.msra.mxu0 %v2602
        %2722 = vmatprep.subr.mxu0 0.0
        %2723 = vmatpush1.msra.mxu0 %v2627
        %2724 = vmatprep.subr.mxu0 0.0
        %2725 = vmatpush1.msra.mxu0 0.0
        %2726 = vmatprep.subr.mxu0 0.0
        %2727 = vmatpush1.msra.mxu0 0.0
        %2728 = vmatprep.subr.mxu0 0.0
        %2729 = vmatpush1.msra.mxu0 0.0
        %2730 = vmatprep.subr.mxu0 0.0
        %2731 = vmatpush1.msra.mxu0 0.0
        %2732 = vmatprep.subr.mxu0 0.0
        %2733 = vmatpush1.msra.mxu0 0.0
        %2734 = vmatprep.subr.mxu0 0.0
        %2735 = vmatpush1.msra.mxu0 0.0
        %2736 = vmatprep.subr.mxu0 0.0
        %2737 = vmatpush1.msra.mxu0 0.0
        %2738 = vmatprep.subr.mxu0 0.0
        %2739 = vmatpush1.msra.mxu0 0.0
        %2740 = vmatprep.subr.mxu0 0.0
        %2741 = vmatpush1.msra.mxu0 0.0
        %2742 = vmatprep.subr.mxu0 0.0
        %2743 = vmatpush1.msra.mxu0 0.0
        %2744 = vmatprep.subr.mxu0 0.0
        %2745 = vmatpush1.msra.mxu0 0.0
        %2746 = vmatprep.subr.mxu0 0.0
        %2747 = vmatpush1.msra.mxu0 0.0
        %2748 = vmatprep.subr.mxu0 0.0
        %2749 = vmatpush1.msra.mxu0 0.0
        %2750 = vmatprep.subr.mxu0 0.0
        %2751 = vmatpush1.msra.mxu0 0.0
        %2752 = vmatprep.subr.mxu0 0.0
        %2753 = vmatpush1.msra.mxu0 0.0
        %2754 = vmatprep.subr.mxu0 0.0
        %2755 = vmatpush1.msra.mxu0 0.0
        %2756 = vmatprep.subr.mxu0 0.0
        %2757 = vmatpush1.msra.mxu0 0.0
        %2758 = vmatprep.subr.mxu0 0.0
        %2759 = vmatpush1.msra.mxu0 0.0
        %2760 = vmatprep.subr.mxu0 0.0
        %2761 = vmatpush1.msra.mxu0 0.0
        %2762 = vmatprep.subr.mxu0 0.0
        %2763 = vmatpush1.msra.mxu0 0.0
        %2764 = vmatprep.subr.mxu0 0.0
        %2765 = vmatpush1.msra.mxu0 0.0
        %2766 = vmatprep.subr.mxu0 0.0
        %2767 = vmatpush1.msra.mxu0 0.0
        %2768 = vmatprep.subr.mxu0 0.0
        %2769 = vmatpush1.msra.mxu0 0.0
        %2770 = vmatprep.subr.mxu0 0.0
        %2771 = vmatpush1.msra.mxu0 0.0
        %2772 = vmatprep.subr.mxu0 0.0
        %2773 = vmatpush1.msra.mxu0 0.0
        %2774 = vmatprep.subr.mxu0 0.0
        %2775 = vmatpush1.msra.mxu0 0.0
        %2776 = vmatprep.mubr.f32.mxu0 0.0
        %2777 = vmatmul.mubr.f32.gmra.mrb[0].mxu0 %v2611
        %v2778 = vpop.f32.mrb[0].mxu0
        %v2779 = vadd.f32 0.0, %v2778
        %v2780 = vpop.f32.mrb[0].mxu0
        %2781 = vmatprep.mubr.f32.mxu0 0.0
        %2782 = vmatmul.mubr.f32.gmra.mrb[0].mxu0 %v2614
        %v2783 = vpop.f32.mrb[0].mxu0
        %v2784 = vadd.f32 0.0, %v2783
        %v2785 = vpop.f32.mrb[0].mxu0
        %2786 = vmatprep.mubr.f32.mxu0 0.0
        %2787 = vmatmul.mubr.f32.gmra.mrb[0].mxu0 %v2617
        %v2788 = vpop.f32.mrb[0].mxu0
        %v2789 = vadd.f32 0.0, %v2788
        %v2790 = vpop.f32.mrb[0].mxu0
        %2791 = vdwg.mxu0
        %v2792 = vld [vmem:[%s4] sm:$0xff]
        %v2793 = vld [vmem:[%s4 + $0x8] sm:$0xff]
        %v2794 = vld [vmem:[%s4 + $0x10] sm:$0x7f]
        %v2796 = vsel %vm2609, %v2792, 0
        %v2799 = vsel %vm2609, %v2793, 0
        %v2802 = vsel %vm2609, %v2794, 0
        %2804 = vmatprep.subr.mxu0 %v2589
        %2805 = vmatpush1.msra.mxu0 %v2588
        %2806 = vmatprep.subr.mxu0 %v2592
        %2807 = vmatpush1.msra.mxu0 %v2591
        %2808 = vmatprep.subr.mxu0 %v2595
        %2809 = vmatpush1.msra.mxu0 %v2594
        %2810 = vmatprep.subr.mxu0 %v2598
        %2811 = vmatpush1.msra.mxu0 %v2597
        %2812 = vmatprep.subr.mxu0 %v2601
        %2813 = vmatpush1.msra.mxu0 %v2600
        %2814 = vmatprep.subr.mxu0 %v2624
        %2815 = vmatpush1.msra.mxu0 %v2621
        %2816 = vmatprep.subr.mxu0 0.0
        %2817 = vmatpush1.msra.mxu0 0.0
        %2818 = vmatprep.subr.mxu0 0.0
        %2819 = vmatpush1.msra.mxu0 0.0
        %2820 = vmatprep.subr.mxu0 0.0
        %2821 = vmatpush1.msra.mxu0 0.0
        %2822 = vmatprep.subr.mxu0 0.0
        %2823 = vmatpush1.msra.mxu0 0.0
        %2824 = vmatprep.subr.mxu0 0.0
        %2825 = vmatpush1.msra.mxu0 0.0
        %2826 = vmatprep.subr.mxu0 0.0
        %2827 = vmatpush1.msra.mxu0 0.0
        %2828 = vmatprep.subr.mxu0 0.0
        %2829 = vmatpush1.msra.mxu0 0.0
        %2830 = vmatprep.subr.mxu0 0.0
        %2831 = vmatpush1.msra.mxu0 0.0
        %2832 = vmatprep.subr.mxu0 0.0
        %2833 = vmatpush1.msra.mxu0 0.0
        %2834 = vmatprep.subr.mxu0 0.0
        %2835 = vmatpush1.msra.mxu0 0.0
        %2836 = vmatprep.subr.mxu0 0.0
        %2837 = vmatpush1.msra.mxu0 0.0
        %2838 = vmatprep.subr.mxu0 0.0
        %2839 = vmatpush1.msra.mxu0 0.0
        %2840 = vmatprep.subr.mxu0 0.0
        %2841 = vmatpush1.msra.mxu0 0.0
        %2842 = vmatprep.subr.mxu0 0.0
        %2843 = vmatpush1.msra.mxu0 0.0
        %2844 = vmatprep.subr.mxu0 0.0
        %2845 = vmatpush1.msra.mxu0 0.0
        %2846 = vmatprep.subr.mxu0 0.0
        %2847 = vmatpush1.msra.mxu0 0.0
        %2848 = vmatprep.subr.mxu0 0.0
        %2849 = vmatpush1.msra.mxu0 0.0
        %2850 = vmatprep.subr.mxu0 0.0
        %2851 = vmatpush1.msra.mxu0 0.0
        %2852 = vmatprep.subr.mxu0 0.0
        %2853 = vmatpush1.msra.mxu0 0.0
        %2854 = vmatprep.subr.mxu0 0.0
        %2855 = vmatpush1.msra.mxu0 0.0
        %2856 = vmatprep.subr.mxu0 0.0
        %2857 = vmatpush1.msra.mxu0 0.0
        %2858 = vmatprep.subr.mxu0 0.0
        %2859 = vmatpush1.msra.mxu0 0.0
        %2860 = vmatprep.subr.mxu0 0.0
        %2861 = vmatpush1.msra.mxu0 0.0
        %2862 = vmatprep.subr.mxu0 0.0
        %2863 = vmatpush1.msra.mxu0 0.0
        %2864 = vmatprep.subr.mxu0 0.0
        %2865 = vmatpush1.msra.mxu0 0.0
        %2866 = vmatprep.subr.mxu0 0.0
        %2867 = vmatpush1.msra.mxu0 0.0
        %2868 = vmatprep.mubr.f32.mxu0 0.0
        %2869 = vmatmul.mubr.f32.gmra.mrb[0].mxu0 %v2796
        %v2870 = vpop.f32.mrb[0].mxu0
        %v2871 = vadd.f32 0.0, %v2870
        %v2872 = vpop.f32.mrb[0].mxu0
        %v2873 = vadd.f32 0.0, %v2872
        %2874 = vmatprep.mubr.f32.mxu0 0.0
        %2875 = vmatmul.mubr.f32.gmra.mrb[0].mxu0 %v2799
        %v2876 = vpop.f32.mrb[0].mxu0
        %v2877 = vadd.f32 0.0, %v2876
        %v2878 = vpop.f32.mrb[0].mxu0
        %v2879 = vadd.f32 0.0, %v2878
        %2880 = vmatprep.mubr.f32.mxu0 0.0
        %2881 = vmatmul.mubr.f32.gmra.mrb[0].mxu0 %v2802
        %v2882 = vpop.f32.mrb[0].mxu0
        %v2883 = vadd.f32 0.0, %v2882
        %v2884 = vpop.f32.mrb[0].mxu0
        %v2885 = vadd.f32 0.0, %v2884
        %2886 = vdwg.mxu0
        %2887 = vmatprep.subr.mxu0 0.0
        %2888 = vmatpush1.msra.mxu0 %v2590
        %2889 = vmatprep.subr.mxu0 0.0
        %2890 = vmatpush1.msra.mxu0 %v2593
        %2891 = vmatprep.subr.mxu0 0.0
        %2892 = vmatpush1.msra.mxu0 %v2596
        %2893 = vmatprep.subr.mxu0 0.0
        %2894 = vmatpush1.msra.mxu0 %v2599
        %2895 = vmatprep.subr.mxu0 0.0
        %2896 = vmatpush1.msra.mxu0 %v2602
        %2897 = vmatprep.subr.mxu0 0.0
        %2898 = vmatpush1.msra.mxu0 %v2627
        %2899 = vmatprep.subr.mxu0 0.0
        %2900 = vmatpush1.msra.mxu0 0.0
        %2901 = vmatprep.subr.mxu0 0.0
        %2902 = vmatpush1.msra.mxu0 0.0
        %2903 = vmatprep.subr.mxu0 0.0
        %2904 = vmatpush1.msra.mxu0 0.0
        %2905 = vmatprep.subr.mxu0 0.0
        %2906 = vmatpush1.msra.mxu0 0.0
        %2907 = vmatprep.subr.mxu0 0.0
        %2908 = vmatpush1.msra.mxu0 0.0
        %2909 = vmatprep.subr.mxu0 0.0
        %2910 = vmatpush1.msra.mxu0 0.0
        %2911 = vmatprep.subr.mxu0 0.0
        %2912 = vmatpush1.msra.mxu0 0.0
        %2913 = vmatprep.subr.mxu0 0.0
        %2914 = vmatpush1.msra.mxu0 0.0
        %2915 = vmatprep.subr.mxu0 0.0
        %2916 = vmatpush1.msra.mxu0 0.0
        %2917 = vmatprep.subr.mxu0 0.0
        %2918 = vmatpush1.msra.mxu0 0.0
        %2919 = vmatprep.subr.mxu0 0.0
        %2920 = vmatpush1.msra.mxu0 0.0
        %2921 = vmatprep.subr.mxu0 0.0
        %2922 = vmatpush1.msra.mxu0 0.0
        %2923 = vmatprep.subr.mxu0 0.0
        %2924 = vmatpush1.msra.mxu0 0.0
        %2925 = vmatprep.subr.mxu0 0.0
        %2926 = vmatpush1.msra.mxu0 0.0
        %2927 = vmatprep.subr.mxu0 0.0
        %2928 = vmatpush1.msra.mxu0 0.0
        %2929 = vmatprep.subr.mxu0 0.0
        %2930 = vmatpush1.msra.mxu0 0.0
        %2931 = vmatprep.subr.mxu0 0.0
        %2932 = vmatpush1.msra.mxu0 0.0
        %2933 = vmatprep.subr.mxu0 0.0
        %2934 = vmatpush1.msra.mxu0 0.0
        %2935 = vmatprep.subr.mxu0 0.0
        %2936 = vmatpush1.msra.mxu0 0.0
        %2937 = vmatprep.subr.mxu0 0.0
        %2938 = vmatpush1.msra.mxu0 0.0
        %2939 = vmatprep.subr.mxu0 0.0
        %2940 = vmatpush1.msra.mxu0 0.0
        %2941 = vmatprep.subr.mxu0 0.0
        %2942 = vmatpush1.msra.mxu0 0.0
        %2943 = vmatprep.subr.mxu0 0.0
        %2944 = vmatpush1.msra.mxu0 0.0
        %2945 = vmatprep.subr.mxu0 0.0
        %2946 = vmatpush1.msra.mxu0 0.0
        %2947 = vmatprep.subr.mxu0 0.0
        %2948 = vmatpush1.msra.mxu0 0.0
        %2949 = vmatprep.subr.mxu0 0.0
        %2950 = vmatpush1.msra.mxu0 0.0
        %2951 = vmatprep.mubr.f32.mxu0 0.0
        %2952 = vmatmul.mubr.f32.gmra.mrb[0].mxu0 %v2796
        %v2953 = vpop.f32.mrb[0].mxu0
        %v2954 = vadd.f32 0.0, %v2953
        %v2955 = vpop.f32.mrb[0].mxu0
        %2956 = vmatprep.mubr.f32.mxu0 0.0
        %2957 = vmatmul.mubr.f32.gmra.mrb[0].mxu0 %v2799
        %v2958 = vpop.f32.mrb[0].mxu0
        %v2959 = vadd.f32 0.0, %v2958
        %v2960 = vpop.f32.mrb[0].mxu0
        %2961 = vmatprep.mubr.f32.mxu0 0.0
        %2962 = vmatmul.mubr.f32.gmra.mrb[0].mxu0 %v2802
        %v2963 = vpop.f32.mrb[0].mxu0
        %v2964 = vadd.f32 0.0, %v2963
        %v2965 = vpop.f32.mrb[0].mxu0
        %2966 = vdwg.mxu0
        %v2967 = vmax.f32 %v2696, %v2871
        %v2968 = vmax.f32 %v2698, %v2873
        %v2969 = vmax.f32 %v2779, %v2954
        %v2970 = vmax.f32 %v2702, %v2877
        %v2971 = vmax.f32 %v2704, %v2879
        %v2972 = vmax.f32 %v2784, %v2959
        %v2973 = vmax.f32 %v2708, %v2883
        %v2974 = vmax.f32 %v2710, %v2885
        %v2975 = vmax.f32 %v2789, %v2964
        %v2976 = vld [vmem:[%s5] sm:$0xff]
        %v2977 = vld [vmem:[%s5 + $0x8] sm:$0xff]
        %v2978 = vld [vmem:[%s5 + $0x10] sm:$0xff]
        %v2979 = vld [vmem:[%s5 + $0x18] sm:$0xff]
        %v2980 = vld [vmem:[%s5 + $0x20] sm:$0xff]
        %v2981 = vld [vmem:[%s5 + $0x28] sm:$0xff]
        %v2982 = vld [vmem:[%s5 + $0x30] sm:$0xff]
        %v2983 = vld [vmem:[%s5 + $0x38] sm:$0xff]
        %v2984 = vld [vmem:[%s5 + $0x40] sm:$0xff]
        %v2985 = vld [vmem:[%s5 + $0x48] sm:$0xff]
        %v2986 = vld [vmem:[%s5 + $0x50] sm:$0xff]
        %v2987 = vld [vmem:[%s5 + $0x58] sm:$0xff]
        %v2988 = vld [vmem:[%s5 + $0x60] sm:$0xff]
        %v2989 = vld [vmem:[%s5 + $0x68] sm:$0xff]
        %v2990 = vld [vmem:[%s5 + $0x70] sm:$0xff]
        %v2991 = vld [vmem:[%s5 + $0x78] sm:$0xff]
        %v2992 = vld [vmem:[%s5 + $0x80] sm:$0xff]
        %v2993 = vld [vmem:[%s5 + $0x88] sm:$0xff]
        %v2994 = vld [vmem:[%s5 + $0x90] sm:$0xff]
        %v2995 = vld [vmem:[%s5 + $0x98] sm:$0xff]
        %v2996 = vld [vmem:[%s5 + $0xa0] sm:$0xff]
        %v2997 = vld [vmem:[%s5 + $0xa8] sm:$0xff]
        %v2998 = vld [vmem:[%s5 + $0xb0] sm:$0xff]
        %v2999 = vld [vmem:[%s5 + $0xb8] sm:$0xff]
        %v3000 = vld [vmem:[%s5 + $0xc0] sm:$0xff]
        %v3001 = vld [vmem:[%s5 + $0xc8] sm:$0xff]
        %v3002 = vld [vmem:[%s5 + $0xd0] sm:$0xff]
        %v3003 = vld [vmem:[%s5 + $0xd8] sm:$0xff]
        %v3004 = vld [vmem:[%s5 + $0xe0] sm:$0xff]
        %v3005 = vld [vmem:[%s5 + $0xe8] sm:$0xff]
        %v3006 = vld [vmem:[%s5 + $0xf0] sm:$0xff]
        %v3007 = vld [vmem:[%s5 + $0xf8] sm:$0xff]
        %v3008 = vld [vmem:[%s5 + $0x100] sm:$0xff]
        %v3009 = vld [vmem:[%s5 + $0x108] sm:$0xff]
        %v3010 = vld [vmem:[%s5 + $0x110] sm:$0xff]
        %v3011 = vld [vmem:[%s5 + $0x118] sm:$0xff]
        %v3012 = vld [vmem:[%s5 + $0x120] sm:$0xff]
        %v3013 = vld [vmem:[%s5 + $0x128] sm:$0xff]
        %v3014 = vld [vmem:[%s5 + $0x130] sm:$0xff]
        %v3015 = vld [vmem:[%s5 + $0x138] sm:$0xff]
        %v3016 = vld [vmem:[%s5 + $0x140] sm:$0xff]
        %v3017 = vld [vmem:[%s5 + $0x148] sm:$0xff]
        %v3018 = vld [vmem:[%s5 + $0x150] sm:$0xff]
        %v3019 = vld [vmem:[%s5 + $0x158] sm:$0xff]
        %v3020 = vld [vmem:[%s5 + $0x160] sm:$0xff]
        %v3021 = vld [vmem:[%s5 + $0x168] sm:$0xff]
        %v3022 = vld [vmem:[%s5 + $0x170] sm:$0xff]
        %v3023 = vld [vmem:[%s5 + $0x178] sm:$0xff]
        %v3024 = vld [vmem:[%s5 + $0x180] sm:$0xff]
        %v3025 = vld [vmem:[%s5 + $0x188] sm:$0xff]
        %v3026 = vld [vmem:[%s5 + $0x190] sm:$0xff]
        %v3027 = vld [vmem:[%s5 + $0x198] sm:$0xff]
        %v3028 = vld [vmem:[%s5 + $0x1a0] sm:$0xff]
        %v3029 = vld [vmem:[%s5 + $0x1a8] sm:$0xff]
        %v3030 = vld [vmem:[%s5 + $0x1b0] sm:$0xff]
        %v3031 = vld [vmem:[%s5 + $0x1b8] sm:$0xff]
        %v3032 = vld [vmem:[%s5 + $0x1c0] sm:$0xff]
        %v3033 = vld [vmem:[%s5 + $0x1c8] sm:$0xff]
        %v3034 = vld [vmem:[%s5 + $0x1d0] sm:$0xff]
        %v3035 = vld [vmem:[%s5 + $0x1d8] sm:$0xff]
        %v3036 = vld [vmem:[%s5 + $0x1e0] sm:$0xff]
        %v3037 = vld [vmem:[%s5 + $0x1e8] sm:$0xff]
        %v3038 = vld [vmem:[%s5 + $0x1f0] sm:$0xff]
        %v3039 = vld [vmem:[%s5 + $0x1f8] sm:$0xff]
        %v3040 = vld [vmem:[%s5 + $0x200] sm:$0xff]
        %v3041 = vld [vmem:[%s5 + $0x208] sm:$0xff]
        %v3042 = vld [vmem:[%s5 + $0x210] sm:$0xff]
        %v3043 = vld [vmem:[%s5 + $0x218] sm:$0xff]
        %v3044 = vld [vmem:[%s5 + $0x220] sm:$0xf]
        %v3045 = vld [vmem:[%s5 + $0x228] sm:$0xf]
        %vm3046 = vcmask 162816
        %v3048 = vsel %vm3046, %v2969, 0
        %v3051 = vsel %vm3046, %v2972, 0
        %v3054 = vsel %vm3046, %v2975, 0
        %vm3056 = vcmask 1043456
        %v3058 = vsel %vm3056, %v3044, 0
        %v3061 = vsel %vm3056, %v3045, 0
        %3063 = vmatprep.subr.mxu0 %v2977
        %3064 = vmatpush1.msra.mxu0 %v2976
        %3065 = vmatprep.subr.mxu0 %v2979
        %3066 = vmatpush1.msra.mxu0 %v2978
        %3067 = vmatprep.subr.mxu0 %v2981
        %3068 = vmatpush1.msra.mxu0 %v2980
        %3069 = vmatprep.subr.mxu0 %v2983
        %3070 = vmatpush1.msra.mxu0 %v2982
        %3071 = vmatprep.subr.mxu0 %v2985
        %3072 = vmatpush1.msra.mxu0 %v2984
        %3073 = vmatprep.subr.mxu0 %v2987
        %3074 = vmatpush1.msra.mxu0 %v2986
        %3075 = vmatprep.subr.mxu0 %v2989
        %3076 = vmatpush1.msra.mxu0 %v2988
        %3077 = vmatprep.subr.mxu0 %v2991
        %3078 = vmatpush1.msra.mxu0 %v2990
        %3079 = vmatprep.subr.mxu0 %v2993
        %3080 = vmatpush1.msra.mxu0 %v2992
        %3081 = vmatprep.subr.mxu0 %v2995
        %3082 = vmatpush1.msra.mxu0 %v2994
        %3083 = vmatprep.subr.mxu0 %v2997
        %3084 = vmatpush1.msra.mxu0 %v2996
        %3085 = vmatprep.subr.mxu0 %v2999
        %3086 = vmatpush1.msra.mxu0 %v2998
        %3087 = vmatprep.subr.mxu0 %v3001
        %3088 = vmatpush1.msra.mxu0 %v3000
        %3089 = vmatprep.subr.mxu0 %v3003
        %3090 = vmatpush1.msra.mxu0 %v3002
        %3091 = vmatprep.subr.mxu0 %v3005
        %3092 = vmatpush1.msra.mxu0 %v3004
        %3093 = vmatprep.subr.mxu0 %v3007
        %3094 = vmatpush1.msra.mxu0 %v3006
        %3095 = vmatprep.subr.mxu0 %v3009
        %3096 = vmatpush1.msra.mxu0 %v3008
        %3097 = vmatprep.subr.mxu0 %v3011
        %3098 = vmatpush1.msra.mxu0 %v3010
        %3099 = vmatprep.subr.mxu0 %v3013
        %3100 = vmatpush1.msra.mxu0 %v3012
        %3101 = vmatprep.subr.mxu0 %v3015
        %3102 = vmatpush1.msra.mxu0 %v3014
        %3103 = vmatprep.subr.mxu0 %v3017
        %3104 = vmatpush1.msra.mxu0 %v3016
        %3105 = vmatprep.subr.mxu0 %v3019
        %3106 = vmatpush1.msra.mxu0 %v3018
        %3107 = vmatprep.subr.mxu0 %v3021
        %3108 = vmatpush1.msra.mxu0 %v3020
        %3109 = vmatprep.subr.mxu0 %v3023
        %3110 = vmatpush1.msra.mxu0 %v3022
        %3111 = vmatprep.subr.mxu0 %v3025
        %3112 = vmatpush1.msra.mxu0 %v3024
        %3113 = vmatprep.subr.mxu0 %v3027
        %3114 = vmatpush1.msra.mxu0 %v3026
        %3115 = vmatprep.subr.mxu0 %v3029
        %3116 = vmatpush1.msra.mxu0 %v3028
        %3117 = vmatprep.subr.mxu0 %v3031
        %3118 = vmatpush1.msra.mxu0 %v3030
        %3119 = vmatprep.subr.mxu0 %v3033
        %3120 = vmatpush1.msra.mxu0 %v3032
        %3121 = vmatprep.subr.mxu0 %v3035
        %3122 = vmatpush1.msra.mxu0 %v3034
        %3123 = vmatprep.subr.mxu0 %v3037
        %3124 = vmatpush1.msra.mxu0 %v3036
        %3125 = vmatprep.subr.mxu0 %v3039
        %3126 = vmatpush1.msra.mxu0 %v3038
        %3127 = vmatprep.mubr.f32.mxu0 %v2968
        %3128 = vmatmul.mubr.f32.gmra.mrb[0].mxu0 %v2967
        %v3129 = vpop.f32.mrb[0].mxu0
        %v3130 = vadd.f32 0.0, %v3129
        %v3131 = vpop.f32.mrb[0].mxu0
        %v3132 = vadd.f32 0.0, %v3131
        %3133 = vmatprep.mubr.f32.mxu0 %v2971
        %3134 = vmatmul.mubr.f32.gmra.mrb[0].mxu0 %v2970
        %v3135 = vpop.f32.mrb[0].mxu0
        %v3136 = vadd.f32 0.0, %v3135
        %v3137 = vpop.f32.mrb[0].mxu0
        %v3138 = vadd.f32 0.0, %v3137
        %3139 = vmatprep.mubr.f32.mxu0 %v2974
        %3140 = vmatmul.mubr.f32.gmra.mrb[0].mxu0 %v2973
        %v3141 = vpop.f32.mrb[0].mxu0
        %v3142 = vadd.f32 0.0, %v3141
        %v3143 = vpop.f32.mrb[0].mxu0
        %v3144 = vadd.f32 0.0, %v3143
        %3145 = vdwg.mxu0
        %3146 = vmatprep.subr.mxu0 %v3041
        %3147 = vmatpush1.msra.mxu0 %v3040
        %3148 = vmatprep.subr.mxu0 %v3043
        %3149 = vmatpush1.msra.mxu0 %v3042
        %3150 = vmatprep.subr.mxu0 %v3061
        %3151 = vmatpush1.msra.mxu0 %v3058
        %3152 = vmatprep.subr.mxu0 0.0
        %3153 = vmatpush1.msra.mxu0 0.0
        %3154 = vmatprep.subr.mxu0 0.0
        %3155 = vmatpush1.msra.mxu0 0.0
        %3156 = vmatprep.subr.mxu0 0.0
        %3157 = vmatpush1.msra.mxu0 0.0
        %3158 = vmatprep.subr.mxu0 0.0
        %3159 = vmatpush1.msra.mxu0 0.0
        %3160 = vmatprep.subr.mxu0 0.0
        %3161 = vmatpush1.msra.mxu0 0.0
        %3162 = vmatprep.subr.mxu0 0.0
        %3163 = vmatpush1.msra.mxu0 0.0
        %3164 = vmatprep.subr.mxu0 0.0
        %3165 = vmatpush1.msra.mxu0 0.0
        %3166 = vmatprep.subr.mxu0 0.0
        %3167 = vmatpush1.msra.mxu0 0.0
        %3168 = vmatprep.subr.mxu0 0.0
        %3169 = vmatpush1.msra.mxu0 0.0
        %3170 = vmatprep.subr.mxu0 0.0
        %3171 = vmatpush1.msra.mxu0 0.0
        %3172 = vmatprep.subr.mxu0 0.0
        %3173 = vmatpush1.msra.mxu0 0.0
        %3174 = vmatprep.subr.mxu0 0.0
        %3175 = vmatpush1.msra.mxu0 0.0
        %3176 = vmatprep.subr.mxu0 0.0
        %3177 = vmatpush1.msra.mxu0 0.0
        %3178 = vmatprep.subr.mxu0 0.0
        %3179 = vmatpush1.msra.mxu0 0.0
        %3180 = vmatprep.subr.mxu0 0.0
        %3181 = vmatpush1.msra.mxu0 0.0
        %3182 = vmatprep.subr.mxu0 0.0
        %3183 = vmatpush1.msra.mxu0 0.0
        %3184 = vmatprep.subr.mxu0 0.0
        %3185 = vmatpush1.msra.mxu0 0.0
        %3186 = vmatprep.subr.mxu0 0.0
        %3187 = vmatpush1.msra.mxu0 0.0
        %3188 = vmatprep.subr.mxu0 0.0
        %3189 = vmatpush1.msra.mxu0 0.0
        %3190 = vmatprep.subr.mxu0 0.0
        %3191 = vmatpush1.msra.mxu0 0.0
        %3192 = vmatprep.subr.mxu0 0.0
        %3193 = vmatpush1.msra.mxu0 0.0
        %3194 = vmatprep.subr.mxu0 0.0
        %3195 = vmatpush1.msra.mxu0 0.0
        %3196 = vmatprep.subr.mxu0 0.0
        %3197 = vmatpush1.msra.mxu0 0.0
        %3198 = vmatprep.subr.mxu0 0.0
        %3199 = vmatpush1.msra.mxu0 0.0
        %3200 = vmatprep.subr.mxu0 0.0
        %3201 = vmatpush1.msra.mxu0 0.0
        %3202 = vmatprep.subr.mxu0 0.0
        %3203 = vmatpush1.msra.mxu0 0.0
        %3204 = vmatprep.subr.mxu0 0.0
        %3205 = vmatpush1.msra.mxu0 0.0
        %3206 = vmatprep.subr.mxu0 0.0
        %3207 = vmatpush1.msra.mxu0 0.0
        %3208 = vmatprep.subr.mxu0 0.0
        %3209 = vmatpush1.msra.mxu0 0.0
        %3210 = vmatprep.mubr.f32.mxu0 0.0
        %3211 = vmatmul.mubr.f32.gmra.mrb[0].mxu0 %v3048
        %v3212 = vpop.f32.mrb[0].mxu0
        %v3213 = vadd.f32 %v3130, %v3212
        %v3214 = vpop.f32.mrb[0].mxu0
        %v3215 = vadd.f32 %v3132, %v3214
        %3216 = vmatprep.mubr.f32.mxu0 0.0
        %3217 = vmatmul.mubr.f32.gmra.mrb[0].mxu0 %v3051
        %v3218 = vpop.f32.mrb[0].mxu0
        %v3219 = vadd.f32 %v3136, %v3218
        %v3220 = vpop.f32.mrb[0].mxu0
        %v3221 = vadd.f32 %v3138, %v3220
        %3222 = vmatprep.mubr.f32.mxu0 0.0
        %3223 = vmatmul.mubr.f32.gmra.mrb[0].mxu0 %v3054
        %v3224 = vpop.f32.mrb[0].mxu0
        %v3225 = vadd.f32 %v3142, %v3224
        %v3226 = vpop.f32.mrb[0].mxu0
        %v3227 = vadd.f32 %v3144, %v3226
        %3228 = vdwg.mxu0
        %v3229 = vld [vmem:[%s6] sm:$0xff]
        %v3230 = vld [vmem:[%s6 + $0x8] sm:$0xff]
        %v3231 = vld [vmem:[%s6 + $0x10] sm:$0xff]
        %v3232 = vld [vmem:[%s6 + $0x18] sm:$0xff]
        %v3233 = vld [vmem:[%s6 + $0x20] sm:$0xff]
        %v3234 = vld [vmem:[%s6 + $0x28] sm:$0xff]
        %v3235 = vld [vmem:[%s6 + $0x30] sm:$0xff]
        %v3236 = vld [vmem:[%s6 + $0x38] sm:$0xff]
        %v3237 = vld [vmem:[%s6 + $0x40] sm:$0xff]
        %v3238 = vld [vmem:[%s6 + $0x48] sm:$0xff]
        %v3239 = vld [vmem:[%s6 + $0x50] sm:$0xff]
        %v3240 = vld [vmem:[%s6 + $0x58] sm:$0xff]
        %v3241 = vld [vmem:[%s6 + $0x60] sm:$0xff]
        %v3242 = vld [vmem:[%s6 + $0x68] sm:$0xff]
        %v3243 = vld [vmem:[%s6 + $0x70] sm:$0xff]
        %v3244 = vld [vmem:[%s6 + $0x78] sm:$0xff]
        %v3245 = vld [vmem:[%s6 + $0x80] sm:$0xff]
        %v3246 = vld [vmem:[%s6 + $0x88] sm:$0xff]
        %v3247 = vld [vmem:[%s6 + $0x90] sm:$0xff]
        %v3248 = vld [vmem:[%s6 + $0x98] sm:$0xff]
        %v3249 = vld [vmem:[%s6 + $0xa0] sm:$0xff]
        %v3250 = vld [vmem:[%s6 + $0xa8] sm:$0xff]
        %v3251 = vld [vmem:[%s6 + $0xb0] sm:$0xff]
        %v3252 = vld [vmem:[%s6 + $0xb8] sm:$0xff]
        %v3253 = vld [vmem:[%s6 + $0xc0] sm:$0xff]
        %v3254 = vld [vmem:[%s6 + $0xc8] sm:$0xff]
        %v3255 = vld [vmem:[%s6 + $0xd0] sm:$0xff]
        %v3256 = vld [vmem:[%s6 + $0xd8] sm:$0xff]
        %v3257 = vld [vmem:[%s6 + $0xe0] sm:$0xff]
        %v3258 = vld [vmem:[%s6 + $0xe8] sm:$0xff]
        %v3259 = vld [vmem:[%s6 + $0xf0] sm:$0xff]
        %v3260 = vld [vmem:[%s6 + $0xf8] sm:$0xff]
        %v3261 = vld [vmem:[%s6 + $0x100] sm:$0xff]
        %v3262 = vld [vmem:[%s6 + $0x108] sm:$0xff]
        %v3263 = vld [vmem:[%s6 + $0x110] sm:$0xff]
        %v3264 = vld [vmem:[%s6 + $0x118] sm:$0xff]
        %v3265 = vld [vmem:[%s6 + $0x120] sm:$0xff]
        %v3266 = vld [vmem:[%s6 + $0x128] sm:$0xff]
        %v3267 = vld [vmem:[%s6 + $0x130] sm:$0xff]
        %v3268 = vld [vmem:[%s6 + $0x138] sm:$0xff]
        %v3269 = vld [vmem:[%s6 + $0x140] sm:$0xff]
        %v3270 = vld [vmem:[%s6 + $0x148] sm:$0xff]
        %v3271 = vld [vmem:[%s6 + $0x150] sm:$0xff]
        %v3272 = vld [vmem:[%s6 + $0x158] sm:$0xff]
        %v3273 = vld [vmem:[%s6 + $0x160] sm:$0xff]
        %v3274 = vld [vmem:[%s6 + $0x168] sm:$0xff]
        %v3275 = vld [vmem:[%s6 + $0x170] sm:$0xff]
        %v3276 = vld [vmem:[%s6 + $0x178] sm:$0xff]
        %v3277 = vld [vmem:[%s6 + $0x180] sm:$0xff]
        %v3278 = vld [vmem:[%s6 + $0x188] sm:$0xff]
        %v3279 = vld [vmem:[%s6 + $0x190] sm:$0xff]
        %v3280 = vld [vmem:[%s6 + $0x198] sm:$0xff]
        %v3281 = vld [vmem:[%s6 + $0x1a0] sm:$0xff]
        %v3282 = vld [vmem:[%s6 + $0x1a8] sm:$0xff]
        %v3283 = vld [vmem:[%s6 + $0x1b0] sm:$0xff]
        %v3284 = vld [vmem:[%s6 + $0x1b8] sm:$0xff]
        %v3285 = vld [vmem:[%s6 + $0x1c0] sm:$0xff]
        %v3286 = vld [vmem:[%s6 + $0x1c8] sm:$0xff]
        %v3287 = vld [vmem:[%s6 + $0x1d0] sm:$0xff]
        %v3288 = vld [vmem:[%s6 + $0x1d8] sm:$0xff]
        %v3289 = vld [vmem:[%s6 + $0x1e0] sm:$0xff]
        %v3290 = vld [vmem:[%s6 + $0x1e8] sm:$0xff]
        %v3291 = vld [vmem:[%s6 + $0x1f0] sm:$0xff]
        %v3292 = vld [vmem:[%s6 + $0x1f8] sm:$0xff]
        %v3293 = vld [vmem:[%s6 + $0x200] sm:$0xff]
        %v3294 = vld [vmem:[%s6 + $0x208] sm:$0xff]
        %v3295 = vld [vmem:[%s6 + $0x210] sm:$0xff]
        %v3296 = vld [vmem:[%s6 + $0x218] sm:$0xff]
        %v3297 = vld [vmem:[%s6 + $0x220] sm:$0xf]
        %v3298 = vld [vmem:[%s6 + $0x228] sm:$0xf]
        %v3300 = vsel %vm3056, %v3297, 0
        %v3303 = vsel %vm3056, %v3298, 0
        %3305 = vmatprep.subr.mxu0 %v3230
        %3306 = vmatpush1.msra.mxu0 %v3229
        %3307 = vmatprep.subr.mxu0 %v3232
        %3308 = vmatpush1.msra.mxu0 %v3231
        %3309 = vmatprep.subr.mxu0 %v3234
        %3310 = vmatpush1.msra.mxu0 %v3233
        %3311 = vmatprep.subr.mxu0 %v3236
        %3312 = vmatpush1.msra.mxu0 %v3235
        %3313 = vmatprep.subr.mxu0 %v3238
        %3314 = vmatpush1.msra.mxu0 %v3237
        %3315 = vmatprep.subr.mxu0 %v3240
        %3316 = vmatpush1.msra.mxu0 %v3239
        %3317 = vmatprep.subr.mxu0 %v3242
        %3318 = vmatpush1.msra.mxu0 %v3241
        %3319 = vmatprep.subr.mxu0 %v3244
        %3320 = vmatpush1.msra.mxu0 %v3243
        %3321 = vmatprep.subr.mxu0 %v3246
        %3322 = vmatpush1.msra.mxu0 %v3245
        %3323 = vmatprep.subr.mxu0 %v3248
        %3324 = vmatpush1.msra.mxu0 %v3247
        %3325 = vmatprep.subr.mxu0 %v3250
        %3326 = vmatpush1.msra.mxu0 %v3249
        %3327 = vmatprep.subr.mxu0 %v3252
        %3328 = vmatpush1.msra.mxu0 %v3251
        %3329 = vmatprep.subr.mxu0 %v3254
        %3330 = vmatpush1.msra.mxu0 %v3253
        %3331 = vmatprep.subr.mxu0 %v3256
        %3332 = vmatpush1.msra.mxu0 %v3255
        %3333 = vmatprep.subr.mxu0 %v3258
        %3334 = vmatpush1.msra.mxu0 %v3257
        %3335 = vmatprep.subr.mxu0 %v3260
        %3336 = vmatpush1.msra.mxu0 %v3259
        %3337 = vmatprep.subr.mxu0 %v3262
        %3338 = vmatpush1.msra.mxu0 %v3261
        %3339 = vmatprep.subr.mxu0 %v3264
        %3340 = vmatpush1.msra.mxu0 %v3263
        %3341 = vmatprep.subr.mxu0 %v3266
        %3342 = vmatpush1.msra.mxu0 %v3265
        %3343 = vmatprep.subr.mxu0 %v3268
        %3344 = vmatpush1.msra.mxu0 %v3267
        %3345 = vmatprep.subr.mxu0 %v3270
        %3346 = vmatpush1.msra.mxu0 %v3269
        %3347 = vmatprep.subr.mxu0 %v3272
        %3348 = vmatpush1.msra.mxu0 %v3271
        %3349 = vmatprep.subr.mxu0 %v3274
        %3350 = vmatpush1.msra.mxu0 %v3273
        %3351 = vmatprep.subr.mxu0 %v3276
        %3352 = vmatpush1.msra.mxu0 %v3275
        %3353 = vmatprep.subr.mxu0 %v3278
        %3354 = vmatpush1.msra.mxu0 %v3277
        %3355 = vmatprep.subr.mxu0 %v3280
        %3356 = vmatpush1.msra.mxu0 %v3279
        %3357 = vmatprep.subr.mxu0 %v3282
        %3358 = vmatpush1.msra.mxu0 %v3281
        %3359 = vmatprep.subr.mxu0 %v3284
        %3360 = vmatpush1.msra.mxu0 %v3283
        %3361 = vmatprep.subr.mxu0 %v3286
        %3362 = vmatpush1.msra.mxu0 %v3285
        %3363 = vmatprep.subr.mxu0 %v3288
        %3364 = vmatpush1.msra.mxu0 %v3287
        %3365 = vmatprep.subr.mxu0 %v3290
        %3366 = vmatpush1.msra.mxu0 %v3289
        %3367 = vmatprep.subr.mxu0 %v3292
        %3368 = vmatpush1.msra.mxu0 %v3291
        %3369 = vmatprep.mubr.f32.mxu0 %v2968
        %3370 = vmatmul.mubr.f32.gmra.mrb[0].mxu0 %v2967
        %v3371 = vpop.f32.mrb[0].mxu0
        %v3372 = vadd.f32 0.0, %v3371
        %v3373 = vpop.f32.mrb[0].mxu0
        %v3374 = vadd.f32 0.0, %v3373
        %3375 = vmatprep.mubr.f32.mxu0 %v2971
        %3376 = vmatmul.mubr.f32.gmra.mrb[0].mxu0 %v2970
        %v3377 = vpop.f32.mrb[0].mxu0
        %v3378 = vadd.f32 0.0, %v3377
        %v3379 = vpop.f32.mrb[0].mxu0
        %v3380 = vadd.f32 0.0, %v3379
        %3381 = vmatprep.mubr.f32.mxu0 %v2974
        %3382 = vmatmul.mubr.f32.gmra.mrb[0].mxu0 %v2973
        %v3383 = vpop.f32.mrb[0].mxu0
        %v3384 = vadd.f32 0.0, %v3383
        %v3385 = vpop.f32.mrb[0].mxu0
        %v3386 = vadd.f32 0.0, %v3385
        %3387 = vdwg.mxu0
        %3388 = vmatprep.subr.mxu0 %v3294
        %3389 = vmatpush1.msra.mxu0 %v3293
        %3390 = vmatprep.subr.mxu0 %v3296
        %3391 = vmatpush1.msra.mxu0 %v3295
        %3392 = vmatprep.subr.mxu0 %v3303
        %3393 = vmatpush1.msra.mxu0 %v3300
        %3394 = vmatprep.subr.mxu0 0.0
        %3395 = vmatpush1.msra.mxu0 0.0
        %3396 = vmatprep.subr.mxu0 0.0
        %3397 = vmatpush1.msra.mxu0 0.0
        %3398 = vmatprep.subr.mxu0 0.0
        %3399 = vmatpush1.msra.mxu0 0.0
        %3400 = vmatprep.subr.mxu0 0.0
        %3401 = vmatpush1.msra.mxu0 0.0
        %3402 = vmatprep.subr.mxu0 0.0
        %3403 = vmatpush1.msra.mxu0 0.0
        %3404 = vmatprep.subr.mxu0 0.0
        %3405 = vmatpush1.msra.mxu0 0.0
        %3406 = vmatprep.subr.mxu0 0.0
        %3407 = vmatpush1.msra.mxu0 0.0
        %3408 = vmatprep.subr.mxu0 0.0
        %3409 = vmatpush1.msra.mxu0 0.0
        %3410 = vmatprep.subr.mxu0 0.0
        %3411 = vmatpush1.msra.mxu0 0.0
        %3412 = vmatprep.subr.mxu0 0.0
        %3413 = vmatpush1.msra.mxu0 0.0
        %3414 = vmatprep.subr.mxu0 0.0
        %3415 = vmatpush1.msra.mxu0 0.0
        %3416 = vmatprep.subr.mxu0 0.0
        %3417 = vmatpush1.msra.mxu0 0.0
        %3418 = vmatprep.subr.mxu0 0.0
        %3419 = vmatpush1.msra.mxu0 0.0
        %3420 = vmatprep.subr.mxu0 0.0
        %3421 = vmatpush1.msra.mxu0 0.0
        %3422 = vmatprep.subr.mxu0 0.0
        %3423 = vmatpush1.msra.mxu0 0.0
        %3424 = vmatprep.subr.mxu0 0.0
        %3425 = vmatpush1.msra.mxu0 0.0
        %3426 = vmatprep.subr.mxu0 0.0
        %3427 = vmatpush1.msra.mxu0 0.0
        %3428 = vmatprep.subr.mxu0 0.0
        %3429 = vmatpush1.msra.mxu0 0.0
        %3430 = vmatprep.subr.mxu0 0.0
        %3431 = vmatpush1.msra.mxu0 0.0
        %3432 = vmatprep.subr.mxu0 0.0
        %3433 = vmatpush1.msra.mxu0 0.0
        %3434 = vmatprep.subr.mxu0 0.0
        %3435 = vmatpush1.msra.mxu0 0.0
        %3436 = vmatprep.subr.mxu0 0.0
        %3437 = vmatpush1.msra.mxu0 0.0
        %3438 = vmatprep.subr.mxu0 0.0
        %3439 = vmatpush1.msra.mxu0 0.0
        %3440 = vmatprep.subr.mxu0 0.0
        %3441 = vmatpush1.msra.mxu0 0.0
        %3442 = vmatprep.subr.mxu0 0.0
        %3443 = vmatpush1.msra.mxu0 0.0
        %3444 = vmatprep.subr.mxu0 0.0
        %3445 = vmatpush1.msra.mxu0 0.0
        %3446 = vmatprep.subr.mxu0 0.0
        %3447 = vmatpush1.msra.mxu0 0.0
        %3448 = vmatprep.subr.mxu0 0.0
        %3449 = vmatpush1.msra.mxu0 0.0
        %3450 = vmatprep.subr.mxu0 0.0
        %3451 = vmatpush1.msra.mxu0 0.0
        %3452 = vmatprep.mubr.f32.mxu0 0.0
        %3453 = vmatmul.mubr.f32.gmra.mrb[0].mxu0 %v3048
        %v3454 = vpop.f32.mrb[0].mxu0
        %v3455 = vadd.f32 %v3372, %v3454
        %v3456 = vpop.f32.mrb[0].mxu0
        %v3457 = vadd.f32 %v3374, %v3456
        %3458 = vmatprep.mubr.f32.mxu0 0.0
        %3459 = vmatmul.mubr.f32.gmra.mrb[0].mxu0 %v3051
        %v3460 = vpop.f32.mrb[0].mxu0
        %v3461 = vadd.f32 %v3378, %v3460
        %v3462 = vpop.f32.mrb[0].mxu0
        %v3463 = vadd.f32 %v3380, %v3462
        %3464 = vmatprep.mubr.f32.mxu0 0.0
        %3465 = vmatmul.mubr.f32.gmra.mrb[0].mxu0 %v3054
        %v3466 = vpop.f32.mrb[0].mxu0
        %v3467 = vadd.f32 %v3384, %v3466
        %v3468 = vpop.f32.mrb[0].mxu0
        %v3469 = vadd.f32 %v3386, %v3468
        %3470 = vdwg.mxu0
        %v3471 = vmax.f32 %v3213, %v3455
        %v3472 = vmax.f32 %v3215, %v3457
        %v3473 = vmax.f32 %v3219, %v3461
        %v3474 = vmax.f32 %v3221, %v3463
        %v3475 = vmax.f32 %v3225, %v3467
        %v3476 = vmax.f32 %v3227, %v3469
        %v3477 = vld [vmem:[%s7] sm:$0xff]
        %v3478 = vld [vmem:[%s7 + $0x8] sm:$0x7]
        %vm3479 = vcmask 187392
        %v3481 = vsel %vm3479, %v3477, 0
        %v3484 = vsel %vm3479, %v3478, 0
        %vm3486 = vcmask 1046528
        %v3488 = vsel %vm3486, %v3475, 0
        %v3491 = vsel %vm3486, %v3476, 0
        %3493 = vmatprep.subr.mxu0 %v3472
        %3494 = vmatpush1.msra.mxu0 %v3471
        %3495 = vmatprep.subr.mxu0 %v3474
        %3496 = vmatpush1.msra.mxu0 %v3473
        %3497 = vmatprep.subr.mxu0 %v3491
        %3498 = vmatpush1.msra.mxu0 %v3488
        %3499 = vmatprep.subr.mxu0 0.0
        %3500 = vmatpush1.msra.mxu0 0.0
        %3501 = vmatprep.subr.mxu0 0.0
        %3502 = vmatpush1.msra.mxu0 0.0
        %3503 = vmatprep.subr.mxu0 0.0
        %3504 = vmatpush1.msra.mxu0 0.0
        %3505 = vmatprep.subr.mxu0 0.0
        %3506 = vmatpush1.msra.mxu0 0.0
        %3507 = vmatprep.subr.mxu0 0.0
        %3508 = vmatpush1.msra.mxu0 0.0
        %3509 = vmatprep.subr.mxu0 0.0
        %3510 = vmatpush1.msra.mxu0 0.0
        %3511 = vmatprep.subr.mxu0 0.0
        %3512 = vmatpush1.msra.mxu0 0.0
        %3513 = vmatprep.subr.mxu0 0.0
        %3514 = vmatpush1.msra.mxu0 0.0
        %3515 = vmatprep.subr.mxu0 0.0
        %3516 = vmatpush1.msra.mxu0 0.0
        %3517 = vmatprep.subr.mxu0 0.0
        %3518 = vmatpush1.msra.mxu0 0.0
        %3519 = vmatprep.subr.mxu0 0.0
        %3520 = vmatpush1.msra.mxu0 0.0
        %3521 = vmatprep.subr.mxu0 0.0
        %3522 = vmatpush1.msra.mxu0 0.0
        %3523 = vmatprep.subr.mxu0 0.0
        %3524 = vmatpush1.msra.mxu0 0.0
        %3525 = vmatprep.subr.mxu0 0.0
        %3526 = vmatpush1.msra.mxu0 0.0
        %3527 = vmatprep.subr.mxu0 0.0
        %3528 = vmatpush1.msra.mxu0 0.0
        %3529 = vmatprep.subr.mxu0 0.0
        %3530 = vmatpush1.msra.mxu0 0.0
        %3531 = vmatprep.subr.mxu0 0.0
        %3532 = vmatpush1.msra.mxu0 0.0
        %3533 = vmatprep.subr.mxu0 0.0
        %3534 = vmatpush1.msra.mxu0 0.0
        %3535 = vmatprep.subr.mxu0 0.0
        %3536 = vmatpush1.msra.mxu0 0.0
        %3537 = vmatprep.subr.mxu0 0.0
        %3538 = vmatpush1.msra.mxu0 0.0
        %3539 = vmatprep.subr.mxu0 0.0
        %3540 = vmatpush1.msra.mxu0 0.0
        %3541 = vmatprep.subr.mxu0 0.0
        %3542 = vmatpush1.msra.mxu0 0.0
        %3543 = vmatprep.subr.mxu0 0.0
        %3544 = vmatpush1.msra.mxu0 0.0
        %3545 = vmatprep.subr.mxu0 0.0
        %3546 = vmatpush1.msra.mxu0 0.0
        %3547 = vmatprep.subr.mxu0 0.0
        %3548 = vmatpush1.msra.mxu0 0.0
        %3549 = vmatprep.subr.mxu0 0.0
        %3550 = vmatpush1.msra.mxu0 0.0
        %3551 = vmatprep.subr.mxu0 0.0
        %3552 = vmatpush1.msra.mxu0 0.0
        %3553 = vmatprep.subr.mxu0 0.0
        %3554 = vmatpush1.msra.mxu0 0.0
        %3555 = vmatprep.subr.mxu0 0.0
        %3556 = vmatpush1.msra.mxu0 0.0
        %3557 = vmatprep.mubr.f32.mxu0 0.0
        %3558 = vmatmul.mubr.f32.gmra.mrb[0].mxu0 %v3481
        %v3559 = vpop.f32.mrb[0].mxu0
        %v3560 = vadd.f32 0.0, %v3559
        %v3561 = vpop.f32.mrb[0].mxu0
        %v3562 = vadd.f32 0.0, %v3561
        %3563 = vmatprep.mubr.f32.mxu0 0.0
        %3564 = vmatmul.mubr.f32.gmra.mrb[0].mxu0 %v3484
        %v3565 = vpop.f32.mrb[0].mxu0
        %v3566 = vadd.f32 0.0, %v3565
        %v3567 = vpop.f32.mrb[0].mxu0
        %v3568 = vadd.f32 0.0, %v3567
        %3569 = vdwg.mxu0
        %v3570 = vpack.c.bf16 %v3566, %v3560
        %v3571 = vpack.c.bf16 %v3568, %v3562
        %v3572 = vld [vmem:[%s8] sm:$0xff]
        %v3573 = vld [vmem:[%s8 + $0x8] sm:$0xff]
        %v3574 = vld [vmem:[%s8 + $0x10] sm:$0xff]
        %v3575 = vld [vmem:[%s8 + $0x18] sm:$0xff]
        %v3576 = vld [vmem:[%s8 + $0x20] sm:$0xff]
        %v3577 = vld [vmem:[%s8 + $0x28] sm:$0xff]
        %v3578 = vld [vmem:[%s8 + $0x30] sm:$0xff]
        %v3579 = vld [vmem:[%s8 + $0x38] sm:$0xff]
        %v3580 = vld [vmem:[%s8 + $0x40] sm:$0xff]
        %v3581 = vld [vmem:[%s8 + $0x48] sm:$0xff]
        %v3582 = vld [vmem:[%s8 + $0x50] sm:$0xff]
        %v3583 = vld [vmem:[%s8 + $0x58] sm:$0xff]
        %v3584 = vld [vmem:[%s8 + $0x60] sm:$0xff]
        %v3585 = vld [vmem:[%s8 + $0x68] sm:$0xff]
        %v3586 = vld [vmem:[%s8 + $0x70] sm:$0xff]
        %v3587 = vld [vmem:[%s8 + $0x78] sm:$0xff]
        %v3588 = vld [vmem:[%s8 + $0x80] sm:$0xff]
        %v3589 = vld [vmem:[%s8 + $0x88] sm:$0x11]
        %s3590 = scalar_lea.vmem %s7, 16
        %v3591 = vld [vmem:[%s3590] sm:$0xff]
        %v3592 = vld [vmem:[%s3590 + $0x8] sm:$0x7]
        %v3594 = vsel %vm3479, %v3591, 0
        %v3597 = vsel %vm3479, %v3592, 0
        %3599 = vmatprep.subr.mxu0 %v3472
        %3600 = vmatpush1.msra.mxu0 %v3471
        %3601 = vmatprep.subr.mxu0 %v3474
        %3602 = vmatpush1.msra.mxu0 %v3473
        %3603 = vmatprep.subr.mxu0 %v3491
        %3604 = vmatpush1.msra.mxu0 %v3488
        %3605 = vmatprep.subr.mxu0 0.0
        %3606 = vmatpush1.msra.mxu0 0.0
        %3607 = vmatprep.subr.mxu0 0.0
        %3608 = vmatpush1.msra.mxu0 0.0
        %3609 = vmatprep.subr.mxu0 0.0
        %3610 = vmatpush1.msra.mxu0 0.0
        %3611 = vmatprep.subr.mxu0 0.0
        %3612 = vmatpush1.msra.mxu0 0.0
        %3613 = vmatprep.subr.mxu0 0.0
        %3614 = vmatpush1.msra.mxu0 0.0
        %3615 = vmatprep.subr.mxu0 0.0
        %3616 = vmatpush1.msra.mxu0 0.0
        %3617 = vmatprep.subr.mxu0 0.0
        %3618 = vmatpush1.msra.mxu0 0.0
        %3619 = vmatprep.subr.mxu0 0.0
        %3620 = vmatpush1.msra.mxu0 0.0
        %3621 = vmatprep.subr.mxu0 0.0
        %3622 = vmatpush1.msra.mxu0 0.0
        %3623 = vmatprep.subr.mxu0 0.0
        %3624 = vmatpush1.msra.mxu0 0.0
        %3625 = vmatprep.subr.mxu0 0.0
        %3626 = vmatpush1.msra.mxu0 0.0
        %3627 = vmatprep.subr.mxu0 0.0
        %3628 = vmatpush1.msra.mxu0 0.0
        %3629 = vmatprep.subr.mxu0 0.0
        %3630 = vmatpush1.msra.mxu0 0.0
        %3631 = vmatprep.subr.mxu0 0.0
        %3632 = vmatpush1.msra.mxu0 0.0
        %3633 = vmatprep.subr.mxu0 0.0
        %3634 = vmatpush1.msra.mxu0 0.0
        %3635 = vmatprep.subr.mxu0 0.0
        %3636 = vmatpush1.msra.mxu0 0.0
        %3637 = vmatprep.subr.mxu0 0.0
        %3638 = vmatpush1.msra.mxu0 0.0
        %3639 = vmatprep.subr.mxu0 0.0
        %3640 = vmatpush1.msra.mxu0 0.0
        %3641 = vmatprep.subr.mxu0 0.0
        %3642 = vmatpush1.msra.mxu0 0.0
        %3643 = vmatprep.subr.mxu0 0.0
        %3644 = vmatpush1.msra.mxu0 0.0
        %3645 = vmatprep.subr.mxu0 0.0
        %3646 = vmatpush1.msra.mxu0 0.0
        %3647 = vmatprep.subr.mxu0 0.0
        %3648 = vmatpush1.msra.mxu0 0.0
        %3649 = vmatprep.subr.mxu0 0.0
        %3650 = vmatpush1.msra.mxu0 0.0
        %3651 = vmatprep.subr.mxu0 0.0
        %3652 = vmatpush1.msra.mxu0 0.0
        %3653 = vmatprep.subr.mxu0 0.0
        %3654 = vmatpush1.msra.mxu0 0.0
        %3655 = vmatprep.subr.mxu0 0.0
        %3656 = vmatpush1.msra.mxu0 0.0
        %3657 = vmatprep.subr.mxu0 0.0
        %3658 = vmatpush1.msra.mxu0 0.0
        %3659 = vmatprep.subr.mxu0 0.0
        %3660 = vmatpush1.msra.mxu0 0.0
        %3661 = vmatprep.subr.mxu0 0.0
        %3662 = vmatpush1.msra.mxu0 0.0
        %3663 = vmatprep.mubr.f32.mxu0 0.0
        %3664 = vmatmul.mubr.f32.gmra.mrb[0].mxu0 %v3594
        %v3665 = vpop.f32.mrb[0].mxu0
        %v3666 = vadd.f32 0.0, %v3665
        %v3667 = vpop.f32.mrb[0].mxu0
        %v3668 = vadd.f32 0.0, %v3667
        %3669 = vmatprep.mubr.f32.mxu0 0.0
        %3670 = vmatmul.mubr.f32.gmra.mrb[0].mxu0 %v3597
        %v3671 = vpop.f32.mrb[0].mxu0
        %v3672 = vadd.f32 0.0, %v3671
        %v3673 = vpop.f32.mrb[0].mxu0
        %v3674 = vadd.f32 0.0, %v3673
        %3675 = vdwg.mxu0
        %v3676 = vpack.c.bf16 %v3672, %v3666
        %v3677 = vpack.c.bf16 %v3674, %v3668
        %s3678 = scalar_lea.vmem %s8, 144
        %v3679 = vld [vmem:[%s3678] sm:$0xff]
        %v3680 = vld [vmem:[%s3678 + $0x8] sm:$0xff]
        %v3681 = vld [vmem:[%s3678 + $0x10] sm:$0xff]
        %v3682 = vld [vmem:[%s3678 + $0x18] sm:$0xff]
        %v3683 = vld [vmem:[%s3678 + $0x20] sm:$0xff]
        %v3684 = vld [vmem:[%s3678 + $0x28] sm:$0xff]
        %v3685 = vld [vmem:[%s3678 + $0x30] sm:$0xff]
        %v3686 = vld [vmem:[%s3678 + $0x38] sm:$0xff]
        %v3687 = vld [vmem:[%s3678 + $0x40] sm:$0xff]
        %v3688 = vld [vmem:[%s3678 + $0x48] sm:$0xff]
        %v3689 = vld [vmem:[%s3678 + $0x50] sm:$0xff]
        %v3690 = vld [vmem:[%s3678 + $0x58] sm:$0xff]
        %v3691 = vld [vmem:[%s3678 + $0x60] sm:$0xff]
        %v3692 = vld [vmem:[%s3678 + $0x68] sm:$0xff]
        %v3693 = vld [vmem:[%s3678 + $0x70] sm:$0xff]
        %v3694 = vld [vmem:[%s3678 + $0x78] sm:$0xff]
        %v3695 = vld [vmem:[%s3678 + $0x80] sm:$0xff]
        %v3696 = vld [vmem:[%s3678 + $0x88] sm:$0x11]
        %v3715 = vunpack.c.l.b16 %v3679
        %v3716 = vunpack.c.h.b16 %v3679
        %v3717 = vunpack.c.l.b16 %v3680
        %v3718 = vunpack.c.h.b16 %v3680
        %v3719 = vunpack.c.l.b16 %v3681
        %v3720 = vunpack.c.h.b16 %v3681
        %v3721 = vunpack.c.l.b16 %v3682
        %v3722 = vunpack.c.h.b16 %v3682
        %v3723 = vunpack.c.l.b16 %v3683
        %v3724 = vunpack.c.h.b16 %v3683
        %v3725 = vunpack.c.l.b16 %v3684
        %v3726 = vunpack.c.h.b16 %v3684
        %v3727 = vunpack.c.l.b16 %v3685
        %v3728 = vunpack.c.h.b16 %v3685
        %v3729 = vunpack.c.l.b16 %v3686
        %v3730 = vunpack.c.h.b16 %v3686
        %v3731 = vunpack.c.l.b16 %v3687
        %v3732 = vunpack.c.h.b16 %v3687
        %v3733 = vunpack.c.l.b16 %v3688
        %v3734 = vunpack.c.h.b16 %v3688
        %v3735 = vunpack.c.l.b16 %v3689
        %v3736 = vunpack.c.h.b16 %v3689
        %v3737 = vunpack.c.l.b16 %v3690
        %v3738 = vunpack.c.h.b16 %v3690
        %v3739 = vunpack.c.l.b16 %v3691
        %v3740 = vunpack.c.h.b16 %v3691
        %v3741 = vunpack.c.l.b16 %v3692
        %v3742 = vunpack.c.h.b16 %v3692
        %v3743 = vunpack.c.l.b16 %v3693
        %v3744 = vunpack.c.h.b16 %v3693
        %v3745 = vunpack.c.l.b16 %v3694
        %v3746 = vunpack.c.h.b16 %v3694
        %v3747 = vunpack.c.l.b16 %v3695
        %v3748 = vunpack.c.h.b16 %v3695
        %v3749 = vunpack.c.l.b16 %v3696
        %v3750 = vunpack.c.h.b16 %v3696
        %v3751 = vpack.c.b16 %v3717, %v3715
        %v3752 = vpack.c.b16 %v3718, %v3716
        %v3753 = vpack.c.b16 %v3721, %v3719
        %v3754 = vpack.c.b16 %v3722, %v3720
        %v3755 = vpack.c.b16 %v3725, %v3723
        %v3756 = vpack.c.b16 %v3726, %v3724
        %v3757 = vpack.c.b16 %v3729, %v3727
        %v3758 = vpack.c.b16 %v3730, %v3728
        %v3759 = vpack.c.b16 %v3733, %v3731
        %v3760 = vpack.c.b16 %v3734, %v3732
        %v3761 = vpack.c.b16 %v3737, %v3735
        %v3762 = vpack.c.b16 %v3738, %v3736
        %v3763 = vpack.c.b16 %v3741, %v3739
        %v3764 = vpack.c.b16 %v3742, %v3740
        %v3765 = vpack.c.b16 %v3745, %v3743
        %v3766 = vpack.c.b16 %v3746, %v3744
        %v3767 = vpack.c.b16 %v3749, %v3747
        %v3768 = vpack.c.b16 %v3750, %v3748
        %vm3785 = vcmask 80896
        %v3787 = vsel %vm3785, %v3677, 0
        %vm3789 = vcmask 1044480
        %v3791 = vsel %vm3789, %v3767, 0
        %v3794 = vsel %vm3789, %v3768, 0
        %3796 = vmatprep.subr.bf16.mxu0 %v3752
        %3797 = vmatpush1.bf16.msra.mxu0 %v3751
        %3798 = vmatprep.subr.bf16.mxu0 %v3754
        %3799 = vmatpush1.bf16.msra.mxu0 %v3753
        %3800 = vmatprep.subr.bf16.mxu0 %v3756
        %3801 = vmatpush1.bf16.msra.mxu0 %v3755
        %3802 = vmatprep.subr.bf16.mxu0 %v3758
        %3803 = vmatpush1.bf16.msra.mxu0 %v3757
        %3804 = vmatprep.subr.bf16.mxu0 %v3760
        %3805 = vmatpush1.bf16.msra.mxu0 %v3759
        %3806 = vmatprep.subr.bf16.mxu0 %v3762
        %3807 = vmatpush1.bf16.msra.mxu0 %v3761
        %3808 = vmatprep.subr.bf16.mxu0 %v3764
        %3809 = vmatpush1.bf16.msra.mxu0 %v3763
        %3810 = vmatprep.subr.bf16.mxu0 %v3766
        %3811 = vmatpush1.bf16.msra.mxu0 %v3765
        %3812 = vmatprep.subr.bf16.mxu0 %v3794
        %3813 = vmatpush1.bf16.msra.mxu0 %v3791
        %3814 = vmatprep.subr.bf16.mxu0 0
        %3815 = vmatpush1.bf16.msra.mxu0 0
        %3816 = vmatprep.subr.bf16.mxu0 0
        %3817 = vmatpush1.bf16.msra.mxu0 0
        %3818 = vmatprep.subr.bf16.mxu0 0
        %3819 = vmatpush1.bf16.msra.mxu0 0
        %3820 = vmatprep.subr.bf16.mxu0 0
        %3821 = vmatpush1.bf16.msra.mxu0 0
        %3822 = vmatprep.subr.bf16.mxu0 0
        %3823 = vmatpush1.bf16.msra.mxu0 0
        %3824 = vmatprep.subr.bf16.mxu0 0
        %3825 = vmatpush1.bf16.msra.mxu0 0
        %3826 = vmatprep.subr.bf16.mxu0 0
        %3827 = vmatpush1.bf16.msra.mxu0 0
        %3828 = vmatprep.mubr.bf16.mxu0 %v3787
        %3829 = vmatmul.mubr.bf16.gmra.mrb[0].mxu0 %v3676
        %v3830 = vpop.f32.mrb[0].mxu0
        %v3831 = vadd.f32 0.0, %v3830
        %v3832 = vpop.f32.mrb[0].mxu0
        %v3833 = vadd.f32 0.0, %v3832
        %v3834 = vpop.f32.mrb[0].mxu0
        %v3835 = vadd.f32 0.0, %v3834
        %v3836 = vpop.f32.mrb[0].mxu0
        %v3837 = vadd.f32 0.0, %v3836
        %3838 = vdwg.mxu0
        %v3857 = vunpack.c.l.b16 %v3572
        %v3858 = vunpack.c.h.b16 %v3572
        %v3859 = vunpack.c.l.b16 %v3573
        %v3860 = vunpack.c.h.b16 %v3573
        %v3861 = vunpack.c.l.b16 %v3574
        %v3862 = vunpack.c.h.b16 %v3574
        %v3863 = vunpack.c.l.b16 %v3575
        %v3864 = vunpack.c.h.b16 %v3575
        %v3865 = vunpack.c.l.b16 %v3576
        %v3866 = vunpack.c.h.b16 %v3576
        %v3867 = vunpack.c.l.b16 %v3577
        %v3868 = vunpack.c.h.b16 %v3577
        %v3869 = vunpack.c.l.b16 %v3578
        %v3870 = vunpack.c.h.b16 %v3578
        %v3871 = vunpack.c.l.b16 %v3579
        %v3872 = vunpack.c.h.b16 %v3579
        %v3873 = vunpack.c.l.b16 %v3580
        %v3874 = vunpack.c.h.b16 %v3580
        %v3875 = vunpack.c.l.b16 %v3581
        %v3876 = vunpack.c.h.b16 %v3581
        %v3877 = vunpack.c.l.b16 %v3582
        %v3878 = vunpack.c.h.b16 %v3582
        %v3879 = vunpack.c.l.b16 %v3583
        %v3880 = vunpack.c.h.b16 %v3583
        %v3881 = vunpack.c.l.b16 %v3584
        %v3882 = vunpack.c.h.b16 %v3584
        %v3883 = vunpack.c.l.b16 %v3585
        %v3884 = vunpack.c.h.b16 %v3585
        %v3885 = vunpack.c.l.b16 %v3586
        %v3886 = vunpack.c.h.b16 %v3586
        %v3887 = vunpack.c.l.b16 %v3587
        %v3888 = vunpack.c.h.b16 %v3587
        %v3889 = vunpack.c.l.b16 %v3588
        %v3890 = vunpack.c.h.b16 %v3588
        %v3891 = vunpack.c.l.b16 %v3589
        %v3892 = vunpack.c.h.b16 %v3589
        %v3893 = vpack.c.b16 %v3859, %v3857
        %v3894 = vpack.c.b16 %v3860, %v3858
        %v3895 = vpack.c.b16 %v3863, %v3861
        %v3896 = vpack.c.b16 %v3864, %v3862
        %v3897 = vpack.c.b16 %v3867, %v3865
        %v3898 = vpack.c.b16 %v3868, %v3866
        %v3899 = vpack.c.b16 %v3871, %v3869
        %v3900 = vpack.c.b16 %v3872, %v3870
        %v3901 = vpack.c.b16 %v3875, %v3873
        %v3902 = vpack.c.b16 %v3876, %v3874
        %v3903 = vpack.c.b16 %v3879, %v3877
        %v3904 = vpack.c.b16 %v3880, %v3878
        %v3905 = vpack.c.b16 %v3883, %v3881
        %v3906 = vpack.c.b16 %v3884, %v3882
        %v3907 = vpack.c.b16 %v3887, %v3885
        %v3908 = vpack.c.b16 %v3888, %v3886
        %v3909 = vpack.c.b16 %v3891, %v3889
        %v3910 = vpack.c.b16 %v3892, %v3890
        %v3928 = vsel %vm3785, %v3571, 0
        %v3931 = vsel %vm3789, %v3909, 0
        %v3934 = vsel %vm3789, %v3910, 0
        %3936 = vmatprep.subr.bf16.mxu0 %v3894
        %3937 = vmatpush1.bf16.msra.mxu0 %v3893
        %3938 = vmatprep.subr.bf16.mxu0 %v3896
        %3939 = vmatpush1.bf16.msra.mxu0 %v3895
        %3940 = vmatprep.subr.bf16.mxu0 %v3898
        %3941 = vmatpush1.bf16.msra.mxu0 %v3897
        %3942 = vmatprep.subr.bf16.mxu0 %v3900
        %3943 = vmatpush1.bf16.msra.mxu0 %v3899
        %3944 = vmatprep.subr.bf16.mxu0 %v3902
        %3945 = vmatpush1.bf16.msra.mxu0 %v3901
        %3946 = vmatprep.subr.bf16.mxu0 %v3904
        %3947 = vmatpush1.bf16.msra.mxu0 %v3903
        %3948 = vmatprep.subr.bf16.mxu0 %v3906
        %3949 = vmatpush1.bf16.msra.mxu0 %v3905
        %3950 = vmatprep.subr.bf16.mxu0 %v3908
        %3951 = vmatpush1.bf16.msra.mxu0 %v3907
        %3952 = vmatprep.subr.bf16.mxu0 %v3934
        %3953 = vmatpush1.bf16.msra.mxu0 %v3931
        %3954 = vmatprep.subr.bf16.mxu0 0
        %3955 = vmatpush1.bf16.msra.mxu0 0
        %3956 = vmatprep.subr.bf16.mxu0 0
        %3957 = vmatpush1.bf16.msra.mxu0 0
        %3958 = vmatprep.subr.bf16.mxu0 0
        %3959 = vmatpush1.bf16.msra.mxu0 0
        %3960 = vmatprep.subr.bf16.mxu0 0
        %3961 = vmatpush1.bf16.msra.mxu0 0
        %3962 = vmatprep.subr.bf16.mxu0 0
        %3963 = vmatpush1.bf16.msra.mxu0 0
        %3964 = vmatprep.subr.bf16.mxu0 0
        %3965 = vmatpush1.bf16.msra.mxu0 0
        %3966 = vmatprep.subr.bf16.mxu0 0
        %3967 = vmatpush1.bf16.msra.mxu0 0
        %3968 = vmatprep.mubr.bf16.mxu0 %v3928
        %3969 = vmatmul.mubr.bf16.gmra.mrb[0].mxu0 %v3570
        %v3970 = vpop.f32.mrb[0].mxu0
        %v3971 = vadd.f32 %v3831, %v3970
        %v3972 = vpop.f32.mrb[0].mxu0
        %v3973 = vadd.f32 %v3833, %v3972
        %v3974 = vpop.f32.mrb[0].mxu0
        %v3975 = vadd.f32 %v3835, %v3974
        %v3976 = vpop.f32.mrb[0].mxu0
        %v3977 = vadd.f32 %v3837, %v3976
        %3978 = vdwg.mxu0
        %s3979 = scalar_lea.vmem %s7, 32
        %v3980 = vld [vmem:[%s3979] sm:$0xff]
        %v3981 = vld [vmem:[%s3979 + $0x8] sm:$0x7]
        %v3983 = vsel %vm3479, %v3980, 0
        %v3986 = vsel %vm3479, %v3981, 0
        %3988 = vmatprep.subr.mxu0 %v3472
        %3989 = vmatpush1.msra.mxu0 %v3471
        %3990 = vmatprep.subr.mxu0 %v3474
        %3991 = vmatpush1.msra.mxu0 %v3473
        %3992 = vmatprep.subr.mxu0 %v3491
        %3993 = vmatpush1.msra.mxu0 %v3488
        %3994 = vmatprep.subr.mxu0 0.0
        %3995 = vmatpush1.msra.mxu0 0.0
        %3996 = vmatprep.subr.mxu0 0.0
        %3997 = vmatpush1.msra.mxu0 0.0
        %3998 = vmatprep.subr.mxu0 0.0
        %3999 = vmatpush1.msra.mxu0 0.0
        %4000 = vmatprep.subr.mxu0 0.0
        %4001 = vmatpush1.msra.mxu0 0.0
        %4002 = vmatprep.subr.mxu0 0.0
        %4003 = vmatpush1.msra.mxu0 0.0
        %4004 = vmatprep.subr.mxu0 0.0
        %4005 = vmatpush1.msra.mxu0 0.0
        %4006 = vmatprep.subr.mxu0 0.0
        %4007 = vmatpush1.msra.mxu0 0.0
        %4008 = vmatprep.subr.mxu0 0.0
        %4009 = vmatpush1.msra.mxu0 0.0
        %4010 = vmatprep.subr.mxu0 0.0
        %4011 = vmatpush1.msra.mxu0 0.0
        %4012 = vmatprep.subr.mxu0 0.0
        %4013 = vmatpush1.msra.mxu0 0.0
        %4014 = vmatprep.subr.mxu0 0.0
        %4015 = vmatpush1.msra.mxu0 0.0
        %4016 = vmatprep.subr.mxu0 0.0
        %4017 = vmatpush1.msra.mxu0 0.0
        %4018 = vmatprep.subr.mxu0 0.0
        %4019 = vmatpush1.msra.mxu0 0.0
        %4020 = vmatprep.subr.mxu0 0.0
        %4021 = vmatpush1.msra.mxu0 0.0
        %4022 = vmatprep.subr.mxu0 0.0
        %4023 = vmatpush1.msra.mxu0 0.0
        %4024 = vmatprep.subr.mxu0 0.0
        %4025 = vmatpush1.msra.mxu0 0.0
        %4026 = vmatprep.subr.mxu0 0.0
        %4027 = vmatpush1.msra.mxu0 0.0
        %4028 = vmatprep.subr.mxu0 0.0
        %4029 = vmatpush1.msra.mxu0 0.0
        %4030 = vmatprep.subr.mxu0 0.0
        %4031 = vmatpush1.msra.mxu0 0.0
        %4032 = vmatprep.subr.mxu0 0.0
        %4033 = vmatpush1.msra.mxu0 0.0
        %4034 = vmatprep.subr.mxu0 0.0
        %4035 = vmatpush1.msra.mxu0 0.0
        %4036 = vmatprep.subr.mxu0 0.0
        %4037 = vmatpush1.msra.mxu0 0.0
        %4038 = vmatprep.subr.mxu0 0.0
        %4039 = vmatpush1.msra.mxu0 0.0
        %4040 = vmatprep.subr.mxu0 0.0
        %4041 = vmatpush1.msra.mxu0 0.0
        %4042 = vmatprep.subr.mxu0 0.0
        %4043 = vmatpush1.msra.mxu0 0.0
        %4044 = vmatprep.subr.mxu0 0.0
        %4045 = vmatpush1.msra.mxu0 0.0
        %4046 = vmatprep.subr.mxu0 0.0
        %4047 = vmatpush1.msra.mxu0 0.0
        %4048 = vmatprep.subr.mxu0 0.0
        %4049 = vmatpush1.msra.mxu0 0.0
        %4050 = vmatprep.subr.mxu0 0.0
        %4051 = vmatpush1.msra.mxu0 0.0
        %4052 = vmatprep.mubr.f32.mxu0 0.0
        %4053 = vmatmul.mubr.f32.gmra.mrb[0].mxu0 %v3983
        %v4054 = vpop.f32.mrb[0].mxu0
        %v4055 = vadd.f32 0.0, %v4054
        %v4056 = vpop.f32.mrb[0].mxu0
        %v4057 = vadd.f32 0.0, %v4056
        %4058 = vmatprep.mubr.f32.mxu0 0.0
        %4059 = vmatmul.mubr.f32.gmra.mrb[0].mxu0 %v3986
        %v4060 = vpop.f32.mrb[0].mxu0
        %v4061 = vadd.f32 0.0, %v4060
        %v4062 = vpop.f32.mrb[0].mxu0
        %v4063 = vadd.f32 0.0, %v4062
        %4064 = vdwg.mxu0
        %v4065 = vpack.c.bf16 %v4061, %v4055
        %v4066 = vpack.c.bf16 %v4063, %v4057
        %s4067 = scalar_lea.vmem %s8, 288
        %v4068 = vld [vmem:[%s4067] sm:$0xff]
        %v4069 = vld [vmem:[%s4067 + $0x8] sm:$0xff]
        %v4070 = vld [vmem:[%s4067 + $0x10] sm:$0xff]
        %v4071 = vld [vmem:[%s4067 + $0x18] sm:$0xff]
        %v4072 = vld [vmem:[%s4067 + $0x20] sm:$0xff]
        %v4073 = vld [vmem:[%s4067 + $0x28] sm:$0xff]
        %v4074 = vld [vmem:[%s4067 + $0x30] sm:$0xff]
        %v4075 = vld [vmem:[%s4067 + $0x38] sm:$0xff]
        %v4076 = vld [vmem:[%s4067 + $0x40] sm:$0xff]
        %v4077 = vld [vmem:[%s4067 + $0x48] sm:$0xff]
        %v4078 = vld [vmem:[%s4067 + $0x50] sm:$0xff]
        %v4079 = vld [vmem:[%s4067 + $0x58] sm:$0xff]
        %v4080 = vld [vmem:[%s4067 + $0x60] sm:$0xff]
        %v4081 = vld [vmem:[%s4067 + $0x68] sm:$0xff]
        %v4082 = vld [vmem:[%s4067 + $0x70] sm:$0xff]
        %v4083 = vld [vmem:[%s4067 + $0x78] sm:$0xff]
        %v4084 = vld [vmem:[%s4067 + $0x80] sm:$0xff]
        %v4085 = vld [vmem:[%s4067 + $0x88] sm:$0x11]
        %v4104 = vunpack.c.l.b16 %v4068
        %v4105 = vunpack.c.h.b16 %v4068
        %v4106 = vunpack.c.l.b16 %v4069
        %v4107 = vunpack.c.h.b16 %v4069
        %v4108 = vunpack.c.l.b16 %v4070
        %v4109 = vunpack.c.h.b16 %v4070
        %v4110 = vunpack.c.l.b16 %v4071
        %v4111 = vunpack.c.h.b16 %v4071
        %v4112 = vunpack.c.l.b16 %v4072
        %v4113 = vunpack.c.h.b16 %v4072
        %v4114 = vunpack.c.l.b16 %v4073
        %v4115 = vunpack.c.h.b16 %v4073
        %v4116 = vunpack.c.l.b16 %v4074
        %v4117 = vunpack.c.h.b16 %v4074
        %v4118 = vunpack.c.l.b16 %v4075
        %v4119 = vunpack.c.h.b16 %v4075
        %v4120 = vunpack.c.l.b16 %v4076
        %v4121 = vunpack.c.h.b16 %v4076
        %v4122 = vunpack.c.l.b16 %v4077
        %v4123 = vunpack.c.h.b16 %v4077
        %v4124 = vunpack.c.l.b16 %v4078
        %v4125 = vunpack.c.h.b16 %v4078
        %v4126 = vunpack.c.l.b16 %v4079
        %v4127 = vunpack.c.h.b16 %v4079
        %v4128 = vunpack.c.l.b16 %v4080
        %v4129 = vunpack.c.h.b16 %v4080
        %v4130 = vunpack.c.l.b16 %v4081
        %v4131 = vunpack.c.h.b16 %v4081
        %v4132 = vunpack.c.l.b16 %v4082
        %v4133 = vunpack.c.h.b16 %v4082
        %v4134 = vunpack.c.l.b16 %v4083
        %v4135 = vunpack.c.h.b16 %v4083
        %v4136 = vunpack.c.l.b16 %v4084
        %v4137 = vunpack.c.h.b16 %v4084
        %v4138 = vunpack.c.l.b16 %v4085
        %v4139 = vunpack.c.h.b16 %v4085
        %v4140 = vpack.c.b16 %v4106, %v4104
        %v4141 = vpack.c.b16 %v4107, %v4105
        %v4142 = vpack.c.b16 %v4110, %v4108
        %v4143 = vpack.c.b16 %v4111, %v4109
        %v4144 = vpack.c.b16 %v4114, %v4112
        %v4145 = vpack.c.b16 %v4115, %v4113
        %v4146 = vpack.c.b16 %v4118, %v4116
        %v4147 = vpack.c.b16 %v4119, %v4117
        %v4148 = vpack.c.b16 %v4122, %v4120
        %v4149 = vpack.c.b16 %v4123, %v4121
        %v4150 = vpack.c.b16 %v4126, %v4124
        %v4151 = vpack.c.b16 %v4127, %v4125
        %v4152 = vpack.c.b16 %v4130, %v4128
        %v4153 = vpack.c.b16 %v4131, %v4129
        %v4154 = vpack.c.b16 %v4134, %v4132
        %v4155 = vpack.c.b16 %v4135, %v4133
        %v4156 = vpack.c.b16 %v4138, %v4136
        %v4157 = vpack.c.b16 %v4139, %v4137
        %v4175 = vsel %vm3785, %v4066, 0
        %v4178 = vsel %vm3789, %v4156, 0
        %v4181 = vsel %vm3789, %v4157, 0
        %4183 = vmatprep.subr.bf16.mxu0 %v4141
        %4184 = vmatpush1.bf16.msra.mxu0 %v4140
        %4185 = vmatprep.subr.bf16.mxu0 %v4143
        %4186 = vmatpush1.bf16.msra.mxu0 %v4142
        %4187 = vmatprep.subr.bf16.mxu0 %v4145
        %4188 = vmatpush1.bf16.msra.mxu0 %v4144
        %4189 = vmatprep.subr.bf16.mxu0 %v4147
        %4190 = vmatpush1.bf16.msra.mxu0 %v4146
        %4191 = vmatprep.subr.bf16.mxu0 %v4149
        %4192 = vmatpush1.bf16.msra.mxu0 %v4148
        %4193 = vmatprep.subr.bf16.mxu0 %v4151
        %4194 = vmatpush1.bf16.msra.mxu0 %v4150
        %4195 = vmatprep.subr.bf16.mxu0 %v4153
        %4196 = vmatpush1.bf16.msra.mxu0 %v4152
        %4197 = vmatprep.subr.bf16.mxu0 %v4155
        %4198 = vmatpush1.bf16.msra.mxu0 %v4154
        %4199 = vmatprep.subr.bf16.mxu0 %v4181
        %4200 = vmatpush1.bf16.msra.mxu0 %v4178
        %4201 = vmatprep.subr.bf16.mxu0 0
        %4202 = vmatpush1.bf16.msra.mxu0 0
        %4203 = vmatprep.subr.bf16.mxu0 0
        %4204 = vmatpush1.bf16.msra.mxu0 0
        %4205 = vmatprep.subr.bf16.mxu0 0
        %4206 = vmatpush1.bf16.msra.mxu0 0
        %4207 = vmatprep.subr.bf16.mxu0 0
        %4208 = vmatpush1.bf16.msra.mxu0 0
        %4209 = vmatprep.subr.bf16.mxu0 0
        %4210 = vmatpush1.bf16.msra.mxu0 0
        %4211 = vmatprep.subr.bf16.mxu0 0
        %4212 = vmatpush1.bf16.msra.mxu0 0
        %4213 = vmatprep.subr.bf16.mxu0 0
        %4214 = vmatpush1.bf16.msra.mxu0 0
        %4215 = vmatprep.mubr.bf16.mxu0 %v4175
        %4216 = vmatmul.mubr.bf16.gmra.mrb[0].mxu0 %v4065
        %v4217 = vpop.f32.mrb[0].mxu0
        %v4218 = vadd.f32 0.0, %v4217
        %v4219 = vpop.f32.mrb[0].mxu0
        %v4220 = vadd.f32 0.0, %v4219
        %v4221 = vpop.f32.mrb[0].mxu0
        %v4222 = vadd.f32 0.0, %v4221
        %v4223 = vpop.f32.mrb[0].mxu0
        %v4224 = vadd.f32 0.0, %v4223
        %4225 = vdwg.mxu0
        %v4226 = vadd.f32 %v3971, %v4218
        %v4227 = vadd.f32 %v3973, %v4220
        %v4228 = vadd.f32 %v3975, %v4222
        %v4229 = vadd.f32 %v3977, %v4224
        %v4230 = vld [vmem:[%s9] sm:$0x3]
        %v4232 = vlaneseq
        %v4233 = vshrl.u32 %v4232, 7
        %v4234 = vsub.s32 0, %v4233
        %v4235 = vrot.slane %v4230, %v4234
        %v4236 = vlaneseq
        %v4237 = vshrl.u32 %v4236, 7
        %v4238 = vsub.s32 1, %v4237
        %v4239 = vrot.slane %v4230, %v4238
        %v4242 = vadd.f32 %v4226, %v4235
        %v4243 = vadd.f32 %v4227, %v4239
        %v4244 = vadd.f32 %v4228, %v4235
        %v4245 = vadd.f32 %v4229, %v4239
        %v4246 = vmax.f32 %v4242, 0.0
        %v4247 = vmax.f32 %v4243, 0.0
        %v4248 = vmax.f32 %v4244, 0.0
        %v4249 = vmax.f32 %v4245, 0.0
        %v4250 = vld [vmem:[%s10] sm:$0x1f]
        %vm4251 = vcmask 89088
        %v4253 = vsel %vm4251, %v4250, 0
        %v4256 = vsel %vm943, %v4248, 0
        %v4259 = vsel %vm943, %v4249, 0
        %4261 = vmatprep.subr.mxu0 %v4247
        %4262 = vmatpush1.msra.mxu0 %v4246
        %4263 = vmatprep.subr.mxu0 %v4259
        %4264 = vmatpush1.msra.mxu0 %v4256
        %4265 = vmatprep.subr.mxu0 0.0
        %4266 = vmatpush1.msra.mxu0 0.0
        %4267 = vmatprep.subr.mxu0 0.0
        %4268 = vmatpush1.msra.mxu0 0.0
        %4269 = vmatprep.subr.mxu0 0.0
        %4270 = vmatpush1.msra.mxu0 0.0
        %4271 = vmatprep.subr.mxu0 0.0
        %4272 = vmatpush1.msra.mxu0 0.0
        %4273 = vmatprep.subr.mxu0 0.0
        %4274 = vmatpush1.msra.mxu0 0.0
        %4275 = vmatprep.subr.mxu0 0.0
        %4276 = vmatpush1.msra.mxu0 0.0
        %4277 = vmatprep.subr.mxu0 0.0
        %4278 = vmatpush1.msra.mxu0 0.0
        %4279 = vmatprep.subr.mxu0 0.0
        %4280 = vmatpush1.msra.mxu0 0.0
        %4281 = vmatprep.subr.mxu0 0.0
        %4282 = vmatpush1.msra.mxu0 0.0
        %4283 = vmatprep.subr.mxu0 0.0
        %4284 = vmatpush1.msra.mxu0 0.0
        %4285 = vmatprep.subr.mxu0 0.0
        %4286 = vmatpush1.msra.mxu0 0.0
        %4287 = vmatprep.subr.mxu0 0.0
        %4288 = vmatpush1.msra.mxu0 0.0
        %4289 = vmatprep.subr.mxu0 0.0
        %4290 = vmatpush1.msra.mxu0 0.0
        %4291 = vmatprep.subr.mxu0 0.0
        %4292 = vmatpush1.msra.mxu0 0.0
        %4293 = vmatprep.subr.mxu0 0.0
        %4294 = vmatpush1.msra.mxu0 0.0
        %4295 = vmatprep.subr.mxu0 0.0
        %4296 = vmatpush1.msra.mxu0 0.0
        %4297 = vmatprep.subr.mxu0 0.0
        %4298 = vmatpush1.msra.mxu0 0.0
        %4299 = vmatprep.subr.mxu0 0.0
        %4300 = vmatpush1.msra.mxu0 0.0
        %4301 = vmatprep.subr.mxu0 0.0
        %4302 = vmatpush1.msra.mxu0 0.0
        %4303 = vmatprep.subr.mxu0 0.0
        %4304 = vmatpush1.msra.mxu0 0.0
        %4305 = vmatprep.subr.mxu0 0.0
        %4306 = vmatpush1.msra.mxu0 0.0
        %4307 = vmatprep.subr.mxu0 0.0
        %4308 = vmatpush1.msra.mxu0 0.0
        %4309 = vmatprep.subr.mxu0 0.0
        %4310 = vmatpush1.msra.mxu0 0.0
        %4311 = vmatprep.subr.mxu0 0.0
        %4312 = vmatpush1.msra.mxu0 0.0
        %4313 = vmatprep.subr.mxu0 0.0
        %4314 = vmatpush1.msra.mxu0 0.0
        %4315 = vmatprep.subr.mxu0 0.0
        %4316 = vmatpush1.msra.mxu0 0.0
        %4317 = vmatprep.subr.mxu0 0.0
        %4318 = vmatpush1.msra.mxu0 0.0
        %4319 = vmatprep.subr.mxu0 0.0
        %4320 = vmatpush1.msra.mxu0 0.0
        %4321 = vmatprep.subr.mxu0 0.0
        %4322 = vmatpush1.msra.mxu0 0.0
        %4323 = vmatprep.subr.mxu0 0.0
        %4324 = vmatpush1.msra.mxu0 0.0
        %4325 = vmatprep.mubr.f32.mxu0 0.0
        %4326 = vmatmul.mubr.f32.gmra.mrb[0].mxu0 %v4253
        %v4327 = vpop.f32.mrb[0].mxu0
        %v4328 = vadd.f32 0.0, %v4327
        %v4329 = vpop.f32.mrb[0].mxu0
        %v4330 = vadd.f32 0.0, %v4329
        %4331 = vdwg.mxu0
        %v4332 = vld [vmem:[%s11] sm:$0x1f]
        %v4334 = vsel %vm4251, %v4332, 0
        %4336 = vmatprep.subr.mxu0 %v4247
        %4337 = vmatpush1.msra.mxu0 %v4246
        %4338 = vmatprep.subr.mxu0 %v4259
        %4339 = vmatpush1.msra.mxu0 %v4256
        %4340 = vmatprep.subr.mxu0 0.0
        %4341 = vmatpush1.msra.mxu0 0.0
        %4342 = vmatprep.subr.mxu0 0.0
        %4343 = vmatpush1.msra.mxu0 0.0
        %4344 = vmatprep.subr.mxu0 0.0
        %4345 = vmatpush1.msra.mxu0 0.0
        %4346 = vmatprep.subr.mxu0 0.0
        %4347 = vmatpush1.msra.mxu0 0.0
        %4348 = vmatprep.subr.mxu0 0.0
        %4349 = vmatpush1.msra.mxu0 0.0
        %4350 = vmatprep.subr.mxu0 0.0
        %4351 = vmatpush1.msra.mxu0 0.0
        %4352 = vmatprep.subr.mxu0 0.0
        %4353 = vmatpush1.msra.mxu0 0.0
        %4354 = vmatprep.subr.mxu0 0.0
        %4355 = vmatpush1.msra.mxu0 0.0
        %4356 = vmatprep.subr.mxu0 0.0
        %4357 = vmatpush1.msra.mxu0 0.0
        %4358 = vmatprep.subr.mxu0 0.0
        %4359 = vmatpush1.msra.mxu0 0.0
        %4360 = vmatprep.subr.mxu0 0.0
        %4361 = vmatpush1.msra.mxu0 0.0
        %4362 = vmatprep.subr.mxu0 0.0
        %4363 = vmatpush1.msra.mxu0 0.0
        %4364 = vmatprep.subr.mxu0 0.0
        %4365 = vmatpush1.msra.mxu0 0.0
        %4366 = vmatprep.subr.mxu0 0.0
        %4367 = vmatpush1.msra.mxu0 0.0
        %4368 = vmatprep.subr.mxu0 0.0
        %4369 = vmatpush1.msra.mxu0 0.0
        %4370 = vmatprep.subr.mxu0 0.0
        %4371 = vmatpush1.msra.mxu0 0.0
        %4372 = vmatprep.subr.mxu0 0.0
        %4373 = vmatpush1.msra.mxu0 0.0
        %4374 = vmatprep.subr.mxu0 0.0
        %4375 = vmatpush1.msra.mxu0 0.0
        %4376 = vmatprep.subr.mxu0 0.0
        %4377 = vmatpush1.msra.mxu0 0.0
        %4378 = vmatprep.subr.mxu0 0.0
        %4379 = vmatpush1.msra.mxu0 0.0
        %4380 = vmatprep.subr.mxu0 0.0
        %4381 = vmatpush1.msra.mxu0 0.0
        %4382 = vmatprep.subr.mxu0 0.0
        %4383 = vmatpush1.msra.mxu0 0.0
        %4384 = vmatprep.subr.mxu0 0.0
        %4385 = vmatpush1.msra.mxu0 0.0
        %4386 = vmatprep.subr.mxu0 0.0
        %4387 = vmatpush1.msra.mxu0 0.0
        %4388 = vmatprep.subr.mxu0 0.0
        %4389 = vmatpush1.msra.mxu0 0.0
        %4390 = vmatprep.subr.mxu0 0.0
        %4391 = vmatpush1.msra.mxu0 0.0
        %4392 = vmatprep.subr.mxu0 0.0
        %4393 = vmatpush1.msra.mxu0 0.0
        %4394 = vmatprep.subr.mxu0 0.0
        %4395 = vmatpush1.msra.mxu0 0.0
        %4396 = vmatprep.subr.mxu0 0.0
        %4397 = vmatpush1.msra.mxu0 0.0
        %4398 = vmatprep.subr.mxu0 0.0
        %4399 = vmatpush1.msra.mxu0 0.0
        %4400 = vmatprep.mubr.f32.mxu0 0.0
        %4401 = vmatmul.mubr.f32.gmra.mrb[0].mxu0 %v4334
        %v4402 = vpop.f32.mrb[0].mxu0
        %v4403 = vadd.f32 0.0, %v4402
        %v4404 = vpop.f32.mrb[0].mxu0
        %v4405 = vadd.f32 0.0, %v4404
        %4406 = vdwg.mxu0
        %v4407 = vmax.f32 %v4328, %v4403
        %v4408 = vmax.f32 %v4330, %v4405
        %v4409 = vld [vmem:[%s12] sm:$0xff]
        %v4410 = vld [vmem:[%s12 + $0x8] sm:$0xff]
        %v4411 = vld [vmem:[%s12 + $0x10] sm:$0xff]
        %v4412 = vld [vmem:[%s12 + $0x18] sm:$0xff]
        %v4413 = vld [vmem:[%s12 + $0x20] sm:$0xff]
        %v4414 = vld [vmem:[%s12 + $0x28] sm:$0xff]
        %v4415 = vld [vmem:[%s12 + $0x30] sm:$0xff]
        %v4416 = vld [vmem:[%s12 + $0x38] sm:$0xff]
        %v4417 = vld [vmem:[%s12 + $0x40] sm:$0xff]
        %v4418 = vld [vmem:[%s12 + $0x48] sm:$0xff]
        %v4419 = vld [vmem:[%s12 + $0x50] sm:$0xff]
        %v4420 = vld [vmem:[%s12 + $0x58] sm:$0xff]
        %v4421 = vld [vmem:[%s12 + $0x60] sm:$0xff]
        %v4422 = vld [vmem:[%s12 + $0x68] sm:$0xff]
        %v4423 = vld [vmem:[%s12 + $0x70] sm:$0xff]
        %v4424 = vld [vmem:[%s12 + $0x78] sm:$0xff]
        %v4425 = vld [vmem:[%s12 + $0x80] sm:$0xf]
        %vm4426 = vcmask 31744
        %v4428 = vsel %vm4426, %v4408, 0
        %v4431 = vsel %vm3056, %v4425, 0
        %4433 = vmatprep.subr.mxu0 0.0
        %4434 = vmatpush1.msra.mxu0 %v4409
        %4435 = vmatprep.subr.mxu0 0.0
        %4436 = vmatpush1.msra.mxu0 %v4410
        %4437 = vmatprep.subr.mxu0 0.0
        %4438 = vmatpush1.msra.mxu0 %v4411
        %4439 = vmatprep.subr.mxu0 0.0
        %4440 = vmatpush1.msra.mxu0 %v4412
        %4441 = vmatprep.subr.mxu0 0.0
        %4442 = vmatpush1.msra.mxu0 %v4413
        %4443 = vmatprep.subr.mxu0 0.0
        %4444 = vmatpush1.msra.mxu0 %v4414
        %4445 = vmatprep.subr.mxu0 0.0
        %4446 = vmatpush1.msra.mxu0 %v4415
        %4447 = vmatprep.subr.mxu0 0.0
        %4448 = vmatpush1.msra.mxu0 %v4416
        %4449 = vmatprep.subr.mxu0 0.0
        %4450 = vmatpush1.msra.mxu0 %v4417
        %4451 = vmatprep.subr.mxu0 0.0
        %4452 = vmatpush1.msra.mxu0 %v4418
        %4453 = vmatprep.subr.mxu0 0.0
        %4454 = vmatpush1.msra.mxu0 %v4419
        %4455 = vmatprep.subr.mxu0 0.0
        %4456 = vmatpush1.msra.mxu0 %v4420
        %4457 = vmatprep.subr.mxu0 0.0
        %4458 = vmatpush1.msra.mxu0 %v4421
        %4459 = vmatprep.subr.mxu0 0.0
        %4460 = vmatpush1.msra.mxu0 %v4422
        %4461 = vmatprep.subr.mxu0 0.0
        %4462 = vmatpush1.msra.mxu0 %v4423
        %4463 = vmatprep.subr.mxu0 0.0
        %4464 = vmatpush1.msra.mxu0 %v4424
        %4465 = vmatprep.subr.mxu0 0.0
        %4466 = vmatpush1.msra.mxu0 %v4431
        %4467 = vmatprep.subr.mxu0 0.0
        %4468 = vmatpush1.msra.mxu0 0.0
        %4469 = vmatprep.subr.mxu0 0.0
        %4470 = vmatpush1.msra.mxu0 0.0
        %4471 = vmatprep.subr.mxu0 0.0
        %4472 = vmatpush1.msra.mxu0 0.0
        %4473 = vmatprep.subr.mxu0 0.0
        %4474 = vmatpush1.msra.mxu0 0.0
        %4475 = vmatprep.subr.mxu0 0.0
        %4476 = vmatpush1.msra.mxu0 0.0
        %4477 = vmatprep.subr.mxu0 0.0
        %4478 = vmatpush1.msra.mxu0 0.0
        %4479 = vmatprep.subr.mxu0 0.0
        %4480 = vmatpush1.msra.mxu0 0.0
        %4481 = vmatprep.subr.mxu0 0.0
        %4482 = vmatpush1.msra.mxu0 0.0
        %4483 = vmatprep.subr.mxu0 0.0
        %4484 = vmatpush1.msra.mxu0 0.0
        %4485 = vmatprep.subr.mxu0 0.0
        %4486 = vmatpush1.msra.mxu0 0.0
        %4487 = vmatprep.subr.mxu0 0.0
        %4488 = vmatpush1.msra.mxu0 0.0
        %4489 = vmatprep.subr.mxu0 0.0
        %4490 = vmatpush1.msra.mxu0 0.0
        %4491 = vmatprep.subr.mxu0 0.0
        %4492 = vmatpush1.msra.mxu0 0.0
        %4493 = vmatprep.subr.mxu0 0.0
        %4494 = vmatpush1.msra.mxu0 0.0
        %4495 = vmatprep.subr.mxu0 0.0
        %4496 = vmatpush1.msra.mxu0 0.0
        %4497 = vmatprep.mubr.f32.mxu0 %v4428
        %4498 = vmatmul.mubr.f32.gmra.mrb[0].mxu0 %v4407
        %v4499 = vpop.f32.mrb[0].mxu0
        %v4500 = vadd.f32 0.0, %v4499
        %v4501 = vpop.f32.mrb[0].mxu0
        %4502 = vdwg.mxu0
        %v4503 = vld [vmem:[%s13] sm:$0xff]
        %v4504 = vld [vmem:[%s13 + $0x8] sm:$0xff]
        %v4505 = vld [vmem:[%s13 + $0x10] sm:$0xff]
        %v4506 = vld [vmem:[%s13 + $0x18] sm:$0xff]
        %v4507 = vld [vmem:[%s13 + $0x20] sm:$0xff]
        %v4508 = vld [vmem:[%s13 + $0x28] sm:$0xff]
        %v4509 = vld [vmem:[%s13 + $0x30] sm:$0xff]
        %v4510 = vld [vmem:[%s13 + $0x38] sm:$0xff]
        %v4511 = vld [vmem:[%s13 + $0x40] sm:$0xff]
        %v4512 = vld [vmem:[%s13 + $0x48] sm:$0xff]
        %v4513 = vld [vmem:[%s13 + $0x50] sm:$0xff]
        %v4514 = vld [vmem:[%s13 + $0x58] sm:$0xff]
        %v4515 = vld [vmem:[%s13 + $0x60] sm:$0xff]
        %v4516 = vld [vmem:[%s13 + $0x68] sm:$0xff]
        %v4517 = vld [vmem:[%s13 + $0x70] sm:$0xff]
        %v4518 = vld [vmem:[%s13 + $0x78] sm:$0xff]
        %v4519 = vld [vmem:[%s13 + $0x80] sm:$0xf]
        %v4521 = vsel %vm3056, %v4519, 0
        %4523 = vmatprep.subr.mxu0 0.0
        %4524 = vmatpush1.msra.mxu0 %v4503
        %4525 = vmatprep.subr.mxu0 0.0
        %4526 = vmatpush1.msra.mxu0 %v4504
        %4527 = vmatprep.subr.mxu0 0.0
        %4528 = vmatpush1.msra.mxu0 %v4505
        %4529 = vmatprep.subr.mxu0 0.0
        %4530 = vmatpush1.msra.mxu0 %v4506
        %4531 = vmatprep.subr.mxu0 0.0
        %4532 = vmatpush1.msra.mxu0 %v4507
        %4533 = vmatprep.subr.mxu0 0.0
        %4534 = vmatpush1.msra.mxu0 %v4508
        %4535 = vmatprep.subr.mxu0 0.0
        %4536 = vmatpush1.msra.mxu0 %v4509
        %4537 = vmatprep.subr.mxu0 0.0
        %4538 = vmatpush1.msra.mxu0 %v4510
        %4539 = vmatprep.subr.mxu0 0.0
        %4540 = vmatpush1.msra.mxu0 %v4511
        %4541 = vmatprep.subr.mxu0 0.0
        %4542 = vmatpush1.msra.mxu0 %v4512
        %4543 = vmatprep.subr.mxu0 0.0
        %4544 = vmatpush1.msra.mxu0 %v4513
        %4545 = vmatprep.subr.mxu0 0.0
        %4546 = vmatpush1.msra.mxu0 %v4514
        %4547 = vmatprep.subr.mxu0 0.0
        %4548 = vmatpush1.msra.mxu0 %v4515
        %4549 = vmatprep.subr.mxu0 0.0
        %4550 = vmatpush1.msra.mxu0 %v4516
        %4551 = vmatprep.subr.mxu0 0.0
        %4552 = vmatpush1.msra.mxu0 %v4517
        %4553 = vmatprep.subr.mxu0 0.0
        %4554 = vmatpush1.msra.mxu0 %v4518
        %4555 = vmatprep.subr.mxu0 0.0
        %4556 = vmatpush1.msra.mxu0 %v4521
        %4557 = vmatprep.subr.mxu0 0.0
        %4558 = vmatpush1.msra.mxu0 0.0
        %4559 = vmatprep.subr.mxu0 0.0
        %4560 = vmatpush1.msra.mxu0 0.0
        %4561 = vmatprep.subr.mxu0 0.0
        %4562 = vmatpush1.msra.mxu0 0.0
        %4563 = vmatprep.subr.mxu0 0.0
        %4564 = vmatpush1.msra.mxu0 0.0
        %4565 = vmatprep.subr.mxu0 0.0
        %4566 = vmatpush1.msra.mxu0 0.0
        %4567 = vmatprep.subr.mxu0 0.0
        %4568 = vmatpush1.msra.mxu0 0.0
        %4569 = vmatprep.subr.mxu0 0.0
        %4570 = vmatpush1.msra.mxu0 0.0
        %4571 = vmatprep.subr.mxu0 0.0
        %4572 = vmatpush1.msra.mxu0 0.0
        %4573 = vmatprep.subr.mxu0 0.0
        %4574 = vmatpush1.msra.mxu0 0.0
        %4575 = vmatprep.subr.mxu0 0.0
        %4576 = vmatpush1.msra.mxu0 0.0
        %4577 = vmatprep.subr.mxu0 0.0
        %4578 = vmatpush1.msra.mxu0 0.0
        %4579 = vmatprep.subr.mxu0 0.0
        %4580 = vmatpush1.msra.mxu0 0.0
        %4581 = vmatprep.subr.mxu0 0.0
        %4582 = vmatpush1.msra.mxu0 0.0
        %4583 = vmatprep.subr.mxu0 0.0
        %4584 = vmatpush1.msra.mxu0 0.0
        %4585 = vmatprep.subr.mxu0 0.0
        %4586 = vmatpush1.msra.mxu0 0.0
        %4587 = vmatprep.mubr.f32.mxu0 %v4428
        %4588 = vmatmul.mubr.f32.gmra.mrb[0].mxu0 %v4407
        %v4589 = vpop.f32.mrb[0].mxu0
        %v4590 = vadd.f32 0.0, %v4589
        %v4591 = vpop.f32.mrb[0].mxu0
        %4592 = vdwg.mxu0
        %v4593 = vmax.f32 %v4500, %v4590
        %v4594 = vpack.c.bf16 %v4593, %v4593
        %v4595 = vld [vmem:[%s14] sm:$0xf]
        %v4596 = vld [vmem:[%s14 + $0x4] sm:$0xf]
        %v4597 = vld [vmem:[%s14 + $0x8] sm:$0xf]
        %v4598 = vld [vmem:[%s14 + $0xc] sm:$0xf]
        %v4599 = vld [vmem:[%s14 + $0x10] sm:$0xf]
        %v4600 = vld [vmem:[%s14 + $0x14] sm:$0xf]
        %v4601 = vld [vmem:[%s14 + $0x18] sm:$0xf]
        %v4602 = vld [vmem:[%s14 + $0x1c] sm:$0x3]
        %s4603 = scalar_lea.vmem %s14, 32
        %v4604 = vld [vmem:[%s4603] sm:$0xf]
        %v4605 = vld [vmem:[%s4603 + $0x4] sm:$0xf]
        %v4606 = vld [vmem:[%s4603 + $0x8] sm:$0xf]
        %v4607 = vld [vmem:[%s4603 + $0xc] sm:$0xf]
        %v4608 = vld [vmem:[%s4603 + $0x10] sm:$0xf]
        %v4609 = vld [vmem:[%s4603 + $0x14] sm:$0xf]
        %v4610 = vld [vmem:[%s4603 + $0x18] sm:$0xf]
        %v4611 = vld [vmem:[%s4603 + $0x1c] sm:$0x3]
        %v4613 = vshrl.u32 %v4594, 16
        %v4623 = vunpack.c.l.b16 %v4604
        %v4624 = vunpack.c.l.b16 %v4605
        %v4625 = vunpack.c.l.b16 %v4606
        %v4626 = vunpack.c.l.b16 %v4607
        %v4627 = vunpack.c.l.b16 %v4608
        %v4628 = vunpack.c.l.b16 %v4609
        %v4629 = vunpack.c.l.b16 %v4610
        %v4630 = vunpack.c.l.b16 %v4611
        %v4631 = vpack.c.b16 %v4624, %v4623
        %v4632 = vpack.c.b16 %v4626, %v4625
        %v4633 = vpack.c.b16 %v4628, %v4627
        %v4634 = vpack.c.b16 %v4630, %v4629
        %vm4638 = vcmask 490496
        %v4640 = vsel %vm4638, %v4613, 0
        %v4643 = vsel %vm2619, %v4634, 0
        %4645 = vmatprep.subr.bf16.mxu0 0
        %4646 = vmatpush1.bf16.msra.mxu0 %v4631
        %4647 = vmatprep.subr.bf16.mxu0 0
        %4648 = vmatpush1.bf16.msra.mxu0 %v4632
        %4649 = vmatprep.subr.bf16.mxu0 0
        %4650 = vmatpush1.bf16.msra.mxu0 %v4633
        %4651 = vmatprep.subr.bf16.mxu0 0
        %4652 = vmatpush1.bf16.msra.mxu0 %v4643
        %4653 = vmatprep.subr.bf16.mxu0 0
        %4654 = vmatpush1.bf16.msra.mxu0 0
        %4655 = vmatprep.subr.bf16.mxu0 0
        %4656 = vmatpush1.bf16.msra.mxu0 0
        %4657 = vmatprep.subr.bf16.mxu0 0
        %4658 = vmatpush1.bf16.msra.mxu0 0
        %4659 = vmatprep.subr.bf16.mxu0 0
        %4660 = vmatpush1.bf16.msra.mxu0 0
        %4661 = vmatprep.subr.bf16.mxu0 0
        %4662 = vmatpush1.bf16.msra.mxu0 0
        %4663 = vmatprep.subr.bf16.mxu0 0
        %4664 = vmatpush1.bf16.msra.mxu0 0
        %4665 = vmatprep.subr.bf16.mxu0 0
        %4666 = vmatpush1.bf16.msra.mxu0 0
        %4667 = vmatprep.subr.bf16.mxu0 0
        %4668 = vmatpush1.bf16.msra.mxu0 0
        %4669 = vmatprep.subr.bf16.mxu0 0
        %4670 = vmatpush1.bf16.msra.mxu0 0
        %4671 = vmatprep.subr.bf16.mxu0 0
        %4672 = vmatpush1.bf16.msra.mxu0 0
        %4673 = vmatprep.subr.bf16.mxu0 0
        %4674 = vmatpush1.bf16.msra.mxu0 0
        %4675 = vmatprep.subr.bf16.mxu0 0
        %4676 = vmatpush1.bf16.msra.mxu0 0
        %4677 = vmatprep.mubr.bf16.mxu0 0
        %4678 = vmatmul.mubr.bf16.gmra.mrb[0].mxu0 %v4640
        %v4679 = vpop.f32.mrb[0].mxu0
        %v4680 = vadd.f32 0.0, %v4679
        %v4681 = vpop.f32.mrb[0].mxu0
        %v4682 = vpop.f32.mrb[0].mxu0
        %v4683 = vpop.f32.mrb[0].mxu0
        %4684 = vdwg.mxu0
        %v4693 = vunpack.c.l.b16 %v4595
        %v4694 = vunpack.c.l.b16 %v4596
        %v4695 = vunpack.c.l.b16 %v4597
        %v4696 = vunpack.c.l.b16 %v4598
        %v4697 = vunpack.c.l.b16 %v4599
        %v4698 = vunpack.c.l.b16 %v4600
        %v4699 = vunpack.c.l.b16 %v4601
        %v4700 = vunpack.c.l.b16 %v4602
        %v4701 = vpack.c.b16 %v4694, %v4693
        %v4702 = vpack.c.b16 %v4696, %v4695
        %v4703 = vpack.c.b16 %v4698, %v4697
        %v4704 = vpack.c.b16 %v4700, %v4699
        %v4708 = vsel %vm4638, %v4594, 0
        %v4711 = vsel %vm2619, %v4704, 0
        %4713 = vmatprep.subr.bf16.mxu0 0
        %4714 = vmatpush1.bf16.msra.mxu0 %v4701
        %4715 = vmatprep.subr.bf16.mxu0 0
        %4716 = vmatpush1.bf16.msra.mxu0 %v4702
        %4717 = vmatprep.subr.bf16.mxu0 0
        %4718 = vmatpush1.bf16.msra.mxu0 %v4703
        %4719 = vmatprep.subr.bf16.mxu0 0
        %4720 = vmatpush1.bf16.msra.mxu0 %v4711
        %4721 = vmatprep.subr.bf16.mxu0 0
        %4722 = vmatpush1.bf16.msra.mxu0 0
        %4723 = vmatprep.subr.bf16.mxu0 0
        %4724 = vmatpush1.bf16.msra.mxu0 0
        %4725 = vmatprep.subr.bf16.mxu0 0
        %4726 = vmatpush1.bf16.msra.mxu0 0
        %4727 = vmatprep.subr.bf16.mxu0 0
        %4728 = vmatpush1.bf16.msra.mxu0 0
        %4729 = vmatprep.subr.bf16.mxu0 0
        %4730 = vmatpush1.bf16.msra.mxu0 0
        %4731 = vmatprep.subr.bf16.mxu0 0
        %4732 = vmatpush1.bf16.msra.mxu0 0
        %4733 = vmatprep.subr.bf16.mxu0 0
        %4734 = vmatpush1.bf16.msra.mxu0 0
        %4735 = vmatprep.subr.bf16.mxu0 0
        %4736 = vmatpush1.bf16.msra.mxu0 0
        %4737 = vmatprep.subr.bf16.mxu0 0
        %4738 = vmatpush1.bf16.msra.mxu0 0
        %4739 = vmatprep.subr.bf16.mxu0 0
        %4740 = vmatpush1.bf16.msra.mxu0 0
        %4741 = vmatprep.subr.bf16.mxu0 0
        %4742 = vmatpush1.bf16.msra.mxu0 0
        %4743 = vmatprep.subr.bf16.mxu0 0
        %4744 = vmatpush1.bf16.msra.mxu0 0
        %4745 = vmatprep.mubr.bf16.mxu0 0
        %4746 = vmatmul.mubr.bf16.gmra.mrb[0].mxu0 %v4708
        %v4747 = vpop.f32.mrb[0].mxu0
        %v4748 = vadd.f32 %v4680, %v4747
        %v4749 = vpop.f32.mrb[0].mxu0
        %v4750 = vpop.f32.mrb[0].mxu0
        %v4751 = vpop.f32.mrb[0].mxu0
        %4752 = vdwg.mxu0
        %s4753 = scalar_lea.vmem %s14, 64
        %v4754 = vld [vmem:[%s4753] sm:$0xf]
        %v4755 = vld [vmem:[%s4753 + $0x4] sm:$0xf]
        %v4756 = vld [vmem:[%s4753 + $0x8] sm:$0xf]
        %v4757 = vld [vmem:[%s4753 + $0xc] sm:$0xf]
        %v4758 = vld [vmem:[%s4753 + $0x10] sm:$0xf]
        %v4759 = vld [vmem:[%s4753 + $0x14] sm:$0xf]
        %v4760 = vld [vmem:[%s4753 + $0x18] sm:$0xf]
        %v4761 = vld [vmem:[%s4753 + $0x1c] sm:$0x3]
        %v4763 = vrot.slane %v4594, 1
        %v4772 = vunpack.c.l.b16 %v4754
        %v4773 = vunpack.c.l.b16 %v4755
        %v4774 = vunpack.c.l.b16 %v4756
        %v4775 = vunpack.c.l.b16 %v4757
        %v4776 = vunpack.c.l.b16 %v4758
        %v4777 = vunpack.c.l.b16 %v4759
        %v4778 = vunpack.c.l.b16 %v4760
        %v4779 = vunpack.c.l.b16 %v4761
        %v4780 = vpack.c.b16 %v4773, %v4772
        %v4781 = vpack.c.b16 %v4775, %v4774
        %v4782 = vpack.c.b16 %v4777, %v4776
        %v4783 = vpack.c.b16 %v4779, %v4778
        %v4788 = vsel %vm4638, %v4763, 0
        %v4791 = vsel %vm2619, %v4783, 0
        %4793 = vmatprep.subr.bf16.mxu0 0
        %4794 = vmatpush1.bf16.msra.mxu0 %v4780
        %4795 = vmatprep.subr.bf16.mxu0 0
        %4796 = vmatpush1.bf16.msra.mxu0 %v4781
        %4797 = vmatprep.subr.bf16.mxu0 0
        %4798 = vmatpush1.bf16.msra.mxu0 %v4782
        %4799 = vmatprep.subr.bf16.mxu0 0
        %4800 = vmatpush1.bf16.msra.mxu0 %v4791
        %4801 = vmatprep.subr.bf16.mxu0 0
        %4802 = vmatpush1.bf16.msra.mxu0 0
        %4803 = vmatprep.subr.bf16.mxu0 0
        %4804 = vmatpush1.bf16.msra.mxu0 0
        %4805 = vmatprep.subr.bf16.mxu0 0
        %4806 = vmatpush1.bf16.msra.mxu0 0
        %4807 = vmatprep.subr.bf16.mxu0 0
        %4808 = vmatpush1.bf16.msra.mxu0 0
        %4809 = vmatprep.subr.bf16.mxu0 0
        %4810 = vmatpush1.bf16.msra.mxu0 0
        %4811 = vmatprep.subr.bf16.mxu0 0
        %4812 = vmatpush1.bf16.msra.mxu0 0
        %4813 = vmatprep.subr.bf16.mxu0 0
        %4814 = vmatpush1.bf16.msra.mxu0 0
        %4815 = vmatprep.subr.bf16.mxu0 0
        %4816 = vmatpush1.bf16.msra.mxu0 0
        %4817 = vmatprep.subr.bf16.mxu0 0
        %4818 = vmatpush1.bf16.msra.mxu0 0
        %4819 = vmatprep.subr.bf16.mxu0 0
        %4820 = vmatpush1.bf16.msra.mxu0 0
        %4821 = vmatprep.subr.bf16.mxu0 0
        %4822 = vmatpush1.bf16.msra.mxu0 0
        %4823 = vmatprep.subr.bf16.mxu0 0
        %4824 = vmatpush1.bf16.msra.mxu0 0
        %4825 = vmatprep.mubr.bf16.mxu0 0
        %4826 = vmatmul.mubr.bf16.gmra.mrb[0].mxu0 %v4788
        %v4827 = vpop.f32.mrb[0].mxu0
        %v4828 = vadd.f32 0.0, %v4827
        %v4829 = vpop.f32.mrb[0].mxu0
        %v4830 = vpop.f32.mrb[0].mxu0
        %v4831 = vpop.f32.mrb[0].mxu0
        %4832 = vdwg.mxu0
        %v4833 = vadd.f32 %v4748, %v4828
        %s4834 = scalar_lea.vmem %s14, 96
        %v4835 = vld [vmem:[%s4834] sm:$0xf]
        %v4836 = vld [vmem:[%s4834 + $0x4] sm:$0xf]
        %v4837 = vld [vmem:[%s4834 + $0x8] sm:$0xf]
        %v4838 = vld [vmem:[%s4834 + $0xc] sm:$0xf]
        %v4839 = vld [vmem:[%s4834 + $0x10] sm:$0xf]
        %v4840 = vld [vmem:[%s4834 + $0x14] sm:$0xf]
        %v4841 = vld [vmem:[%s4834 + $0x18] sm:$0xf]
        %v4842 = vld [vmem:[%s4834 + $0x1c] sm:$0x3]
        %v4843 = vrot.slane %v4613, 1
        %v4852 = vunpack.c.l.b16 %v4835
        %v4853 = vunpack.c.l.b16 %v4836
        %v4854 = vunpack.c.l.b16 %v4837
        %v4855 = vunpack.c.l.b16 %v4838
        %v4856 = vunpack.c.l.b16 %v4839
        %v4857 = vunpack.c.l.b16 %v4840
        %v4858 = vunpack.c.l.b16 %v4841
        %v4859 = vunpack.c.l.b16 %v4842
        %v4860 = vpack.c.b16 %v4853, %v4852
        %v4861 = vpack.c.b16 %v4855, %v4854
        %v4862 = vpack.c.b16 %v4857, %v4856
        %v4863 = vpack.c.b16 %v4859, %v4858
        %v4868 = vsel %vm4638, %v4843, 0
        %v4871 = vsel %vm2619, %v4863, 0
        %4873 = vmatprep.subr.bf16.mxu0 0
        %4874 = vmatpush1.bf16.msra.mxu0 %v4860
        %4875 = vmatprep.subr.bf16.mxu0 0
        %4876 = vmatpush1.bf16.msra.mxu0 %v4861
        %4877 = vmatprep.subr.bf16.mxu0 0
        %4878 = vmatpush1.bf16.msra.mxu0 %v4862
        %4879 = vmatprep.subr.bf16.mxu0 0
        %4880 = vmatpush1.bf16.msra.mxu0 %v4871
        %4881 = vmatprep.subr.bf16.mxu0 0
        %4882 = vmatpush1.bf16.msra.mxu0 0
        %4883 = vmatprep.subr.bf16.mxu0 0
        %4884 = vmatpush1.bf16.msra.mxu0 0
        %4885 = vmatprep.subr.bf16.mxu0 0
        %4886 = vmatpush1.bf16.msra.mxu0 0
        %4887 = vmatprep.subr.bf16.mxu0 0
        %4888 = vmatpush1.bf16.msra.mxu0 0
        %4889 = vmatprep.subr.bf16.mxu0 0
        %4890 = vmatpush1.bf16.msra.mxu0 0
        %4891 = vmatprep.subr.bf16.mxu0 0
        %4892 = vmatpush1.bf16.msra.mxu0 0
        %4893 = vmatprep.subr.bf16.mxu0 0
        %4894 = vmatpush1.bf16.msra.mxu0 0
        %4895 = vmatprep.subr.bf16.mxu0 0
        %4896 = vmatpush1.bf16.msra.mxu0 0
        %4897 = vmatprep.subr.bf16.mxu0 0
        %4898 = vmatpush1.bf16.msra.mxu0 0
        %4899 = vmatprep.subr.bf16.mxu0 0
        %4900 = vmatpush1.bf16.msra.mxu0 0
        %4901 = vmatprep.subr.bf16.mxu0 0
        %4902 = vmatpush1.bf16.msra.mxu0 0
        %4903 = vmatprep.subr.bf16.mxu0 0
        %4904 = vmatpush1.bf16.msra.mxu0 0
        %4905 = vmatprep.mubr.bf16.mxu0 0
        %4906 = vmatmul.mubr.bf16.gmra.mrb[0].mxu0 %v4868
        %v4907 = vpop.f32.mrb[0].mxu0
        %v4908 = vadd.f32 0.0, %v4907
        %v4909 = vpop.f32.mrb[0].mxu0
        %v4910 = vpop.f32.mrb[0].mxu0
        %v4911 = vpop.f32.mrb[0].mxu0
        %4912 = vdwg.mxu0
        %v4913 = vadd.f32 %v4833, %v4908
        %s4914 = scalar_lea.vmem %s14, 128
        %v4915 = vld [vmem:[%s4914] sm:$0xf]
        %v4916 = vld [vmem:[%s4914 + $0x4] sm:$0xf]
        %v4917 = vld [vmem:[%s4914 + $0x8] sm:$0xf]
        %v4918 = vld [vmem:[%s4914 + $0xc] sm:$0xf]
        %v4919 = vld [vmem:[%s4914 + $0x10] sm:$0xf]
        %v4920 = vld [vmem:[%s4914 + $0x14] sm:$0xf]
        %v4921 = vld [vmem:[%s4914 + $0x18] sm:$0xf]
        %v4922 = vld [vmem:[%s4914 + $0x1c] sm:$0x3]
        %v4923 = vrot.slane %v4594, 2
        %v4932 = vunpack.c.l.b16 %v4915
        %v4933 = vunpack.c.l.b16 %v4916
        %v4934 = vunpack.c.l.b16 %v4917
        %v4935 = vunpack.c.l.b16 %v4918
        %v4936 = vunpack.c.l.b16 %v4919
        %v4937 = vunpack.c.l.b16 %v4920
        %v4938 = vunpack.c.l.b16 %v4921
        %v4939 = vunpack.c.l.b16 %v4922
        %v4940 = vpack.c.b16 %v4933, %v4932
        %v4941 = vpack.c.b16 %v4935, %v4934
        %v4942 = vpack.c.b16 %v4937, %v4936
        %v4943 = vpack.c.b16 %v4939, %v4938
        %v4948 = vsel %vm4638, %v4923, 0
        %v4951 = vsel %vm2619, %v4943, 0
        %4953 = vmatprep.subr.bf16.mxu0 0
        %4954 = vmatpush1.bf16.msra.mxu0 %v4940
        %4955 = vmatprep.subr.bf16.mxu0 0
        %4956 = vmatpush1.bf16.msra.mxu0 %v4941
        %4957 = vmatprep.subr.bf16.mxu0 0
        %4958 = vmatpush1.bf16.msra.mxu0 %v4942
        %4959 = vmatprep.subr.bf16.mxu0 0
        %4960 = vmatpush1.bf16.msra.mxu0 %v4951
        %4961 = vmatprep.subr.bf16.mxu0 0
        %4962 = vmatpush1.bf16.msra.mxu0 0
        %4963 = vmatprep.subr.bf16.mxu0 0
        %4964 = vmatpush1.bf16.msra.mxu0 0
        %4965 = vmatprep.subr.bf16.mxu0 0
        %4966 = vmatpush1.bf16.msra.mxu0 0
        %4967 = vmatprep.subr.bf16.mxu0 0
        %4968 = vmatpush1.bf16.msra.mxu0 0
        %4969 = vmatprep.subr.bf16.mxu0 0
        %4970 = vmatpush1.bf16.msra.mxu0 0
        %4971 = vmatprep.subr.bf16.mxu0 0
        %4972 = vmatpush1.bf16.msra.mxu0 0
        %4973 = vmatprep.subr.bf16.mxu0 0
        %4974 = vmatpush1.bf16.msra.mxu0 0
        %4975 = vmatprep.subr.bf16.mxu0 0
        %4976 = vmatpush1.bf16.msra.mxu0 0
        %4977 = vmatprep.subr.bf16.mxu0 0
        %4978 = vmatpush1.bf16.msra.mxu0 0
        %4979 = vmatprep.subr.bf16.mxu0 0
        %4980 = vmatpush1.bf16.msra.mxu0 0
        %4981 = vmatprep.subr.bf16.mxu0 0
        %4982 = vmatpush1.bf16.msra.mxu0 0
        %4983 = vmatprep.subr.bf16.mxu0 0
        %4984 = vmatpush1.bf16.msra.mxu0 0
        %4985 = vmatprep.mubr.bf16.mxu0 0
        %4986 = vmatmul.mubr.bf16.gmra.mrb[0].mxu0 %v4948
        %v4987 = vpop.f32.mrb[0].mxu0
        %v4988 = vadd.f32 0.0, %v4987
        %v4989 = vpop.f32.mrb[0].mxu0
        %v4990 = vpop.f32.mrb[0].mxu0
        %v4991 = vpop.f32.mrb[0].mxu0
        %4992 = vdwg.mxu0
        %v4993 = vadd.f32 %v4913, %v4988
        %v4994 = vld [vmem:[%s15] sm:$0x1]
        %v4995 = vadd.f32 %v4993, %v4994
        %v4996 = vmax.f32 %v4995, 0.0
        %v4997 = vpack.c.bf16 %v4996, %v4996
        %v4998 = vld [vmem:[%s16] sm:$0xf]
        %v4999 = vld [vmem:[%s16 + $0x4] sm:$0xf]
        %v5000 = vld [vmem:[%s16 + $0x8] sm:$0xf]
        %v5001 = vld [vmem:[%s16 + $0xc] sm:$0xf]
        %v5002 = vld [vmem:[%s16 + $0x10] sm:$0xf]
        %v5003 = vld [vmem:[%s16 + $0x14] sm:$0xf]
        %v5004 = vld [vmem:[%s16 + $0x18] sm:$0xf]
        %v5005 = vld [vmem:[%s16 + $0x1c] sm:$0xf]
        %v5006 = vld [vmem:[%s16 + $0x20] sm:$0xf]
        %v5007 = vld [vmem:[%s16 + $0x24] sm:$0xf]
        %v5008 = vld [vmem:[%s16 + $0x28] sm:$0xf]
        %v5009 = vld [vmem:[%s16 + $0x2c] sm:$0xf]
        %v5010 = vld [vmem:[%s16 + $0x30] sm:$0xf]
        %v5011 = vld [vmem:[%s16 + $0x34] sm:$0xf]
        %v5012 = vld [vmem:[%s16 + $0x38] sm:$0xf]
        %v5013 = vld [vmem:[%s17] sm:$0x1]
        %v5029 = vunpack.c.l.b16 %v4998
        %v5030 = vunpack.c.l.b16 %v4999
        %v5031 = vunpack.c.l.b16 %v5000
        %v5032 = vunpack.c.l.b16 %v5001
        %v5033 = vunpack.c.l.b16 %v5002
        %v5034 = vunpack.c.l.b16 %v5003
        %v5035 = vunpack.c.l.b16 %v5004
        %v5036 = vunpack.c.l.b16 %v5005
        %v5037 = vunpack.c.l.b16 %v5006
        %v5038 = vunpack.c.l.b16 %v5007
        %v5039 = vunpack.c.l.b16 %v5008
        %v5040 = vunpack.c.l.b16 %v5009
        %v5041 = vunpack.c.l.b16 %v5010
        %v5042 = vunpack.c.l.b16 %v5011
        %v5043 = vunpack.c.l.b16 %v5012
        %v5044 = vpack.c.b16 %v5030, %v5029
        %v5045 = vpack.c.b16 %v5032, %v5031
        %v5046 = vpack.c.b16 %v5034, %v5033
        %v5047 = vpack.c.b16 %v5036, %v5035
        %v5048 = vpack.c.b16 %v5038, %v5037
        %v5049 = vpack.c.b16 %v5040, %v5039
        %v5050 = vpack.c.b16 %v5042, %v5041
        %v5051 = vpack.c.b16 %v5043, %v5043
        %vm5059 = vcmask 982016
        %v5061 = vsel %vm5059, %v4997, 0
        %v5064 = vsel %vm3056, %v5051, 0
        %5066 = vmatprep.subr.bf16.mxu0 0
        %5067 = vmatpush1.bf16.msra.mxu0 %v5044
        %5068 = vmatprep.subr.bf16.mxu0 0
        %5069 = vmatpush1.bf16.msra.mxu0 %v5045
        %5070 = vmatprep.subr.bf16.mxu0 0
        %5071 = vmatpush1.bf16.msra.mxu0 %v5046
        %5072 = vmatprep.subr.bf16.mxu0 0
        %5073 = vmatpush1.bf16.msra.mxu0 %v5047
        %5074 = vmatprep.subr.bf16.mxu0 0
        %5075 = vmatpush1.bf16.msra.mxu0 %v5048
        %5076 = vmatprep.subr.bf16.mxu0 0
        %5077 = vmatpush1.bf16.msra.mxu0 %v5049
        %5078 = vmatprep.subr.bf16.mxu0 0
        %5079 = vmatpush1.bf16.msra.mxu0 %v5050
        %5080 = vmatprep.subr.bf16.mxu0 0
        %5081 = vmatpush1.bf16.msra.mxu0 %v5064
        %5082 = vmatprep.subr.bf16.mxu0 0
        %5083 = vmatpush1.bf16.msra.mxu0 0
        %5084 = vmatprep.subr.bf16.mxu0 0
        %5085 = vmatpush1.bf16.msra.mxu0 0
        %5086 = vmatprep.subr.bf16.mxu0 0
        %5087 = vmatpush1.bf16.msra.mxu0 0
        %5088 = vmatprep.subr.bf16.mxu0 0
        %5089 = vmatpush1.bf16.msra.mxu0 0
        %5090 = vmatprep.subr.bf16.mxu0 0
        %5091 = vmatpush1.bf16.msra.mxu0 0
        %5092 = vmatprep.subr.bf16.mxu0 0
        %5093 = vmatpush1.bf16.msra.mxu0 0
        %5094 = vmatprep.subr.bf16.mxu0 0
        %5095 = vmatpush1.bf16.msra.mxu0 0
        %5096 = vmatprep.subr.bf16.mxu0 0
        %5097 = vmatpush1.bf16.msra.mxu0 0
        %5098 = vmatprep.mubr.bf16.mxu0 0
        %5099 = vmatmul.mubr.bf16.gmra.mrb[0].mxu0 %v5061
        %v5100 = vpop.f32.mrb[0].mxu0
        %v5101 = vadd.f32 %v5013, %v5100
        %v5102 = vpop.f32.mrb[0].mxu0
        %v5103 = vpop.f32.mrb[0].mxu0
        %v5104 = vpop.f32.mrb[0].mxu0
        %5105 = vdwg.mxu0
        %v5106 = vmax.f32 %v5101, 0.0
        %v5107 = vpack.c.bf16 %v5106, %v5106
        %v5108 = vld [vmem:[%s18] sm:$0xf]
        %v5109 = vld [vmem:[%s18 + $0x4] sm:$0xf]
        %v5110 = vld [vmem:[%s18 + $0x8] sm:$0xf]
        %v5111 = vld [vmem:[%s18 + $0xc] sm:$0xf]
        %v5112 = vld [vmem:[%s18 + $0x10] sm:$0xf]
        %v5113 = vld [vmem:[%s18 + $0x14] sm:$0xf]
        %v5114 = vld [vmem:[%s18 + $0x18] sm:$0xf]
        %v5115 = vld [vmem:[%s18 + $0x1c] sm:$0xf]
        %v5116 = vld [vmem:[%s18 + $0x20] sm:$0xf]
        %v5117 = vld [vmem:[%s18 + $0x24] sm:$0xf]
        %v5118 = vld [vmem:[%s18 + $0x28] sm:$0x3]
        %v5119 = vld [vmem:[%s19] sm:$0x1]
        %v5131 = vunpack.c.l.b16 %v5108
        %v5132 = vunpack.c.l.b16 %v5109
        %v5133 = vunpack.c.l.b16 %v5110
        %v5134 = vunpack.c.l.b16 %v5111
        %v5135 = vunpack.c.l.b16 %v5112
        %v5136 = vunpack.c.l.b16 %v5113
        %v5137 = vunpack.c.l.b16 %v5114
        %v5138 = vunpack.c.l.b16 %v5115
        %v5139 = vunpack.c.l.b16 %v5116
        %v5140 = vunpack.c.l.b16 %v5117
        %v5141 = vunpack.c.l.b16 %v5118
        %v5142 = vpack.c.b16 %v5132, %v5131
        %v5143 = vpack.c.b16 %v5134, %v5133
        %v5144 = vpack.c.b16 %v5136, %v5135
        %v5145 = vpack.c.b16 %v5138, %v5137
        %v5146 = vpack.c.b16 %v5140, %v5139
        %v5147 = vpack.c.b16 %v5141, %v5141
        %vm5153 = vcmask 687104
        %v5155 = vsel %vm5153, %v5107, 0
        %vm5157 = vcmask 1041408
        %v5159 = vsel %vm5157, %v5147, 0
        %5161 = vmatprep.subr.bf16.mxu0 0
        %5162 = vmatpush1.bf16.msra.mxu0 %v5142
        %5163 = vmatprep.subr.bf16.mxu0 0
        %5164 = vmatpush1.bf16.msra.mxu0 %v5143
        %5165 = vmatprep.subr.bf16.mxu0 0
        %5166 = vmatpush1.bf16.msra.mxu0 %v5144
        %5167 = vmatprep.subr.bf16.mxu0 0
        %5168 = vmatpush1.bf16.msra.mxu0 %v5145
        %5169 = vmatprep.subr.bf16.mxu0 0
        %5170 = vmatpush1.bf16.msra.mxu0 %v5146
        %5171 = vmatprep.subr.bf16.mxu0 0
        %5172 = vmatpush1.bf16.msra.mxu0 %v5159
        %5173 = vmatprep.subr.bf16.mxu0 0
        %5174 = vmatpush1.bf16.msra.mxu0 0
        %5175 = vmatprep.subr.bf16.mxu0 0
        %5176 = vmatpush1.bf16.msra.mxu0 0
        %5177 = vmatprep.subr.bf16.mxu0 0
        %5178 = vmatpush1.bf16.msra.mxu0 0
        %5179 = vmatprep.subr.bf16.mxu0 0
        %5180 = vmatpush1.bf16.msra.mxu0 0
        %5181 = vmatprep.subr.bf16.mxu0 0
        %5182 = vmatpush1.bf16.msra.mxu0 0
        %5183 = vmatprep.subr.bf16.mxu0 0
        %5184 = vmatpush1.bf16.msra.mxu0 0
        %5185 = vmatprep.subr.bf16.mxu0 0
        %5186 = vmatpush1.bf16.msra.mxu0 0
        %5187 = vmatprep.subr.bf16.mxu0 0
        %5188 = vmatpush1.bf16.msra.mxu0 0
        %5189 = vmatprep.subr.bf16.mxu0 0
        %5190 = vmatpush1.bf16.msra.mxu0 0
        %5191 = vmatprep.subr.bf16.mxu0 0
        %5192 = vmatpush1.bf16.msra.mxu0 0
        %5193 = vmatprep.mubr.bf16.mxu0 0
        %5194 = vmatmul.mubr.bf16.gmra.mrb[0].mxu0 %v5155
        %v5195 = vpop.f32.mrb[0].mxu0
        %v5196 = vadd.f32 %v5119, %v5195
        %v5197 = vpop.f32.mrb[0].mxu0
        %v5198 = vpop.f32.mrb[0].mxu0
        %v5199 = vpop.f32.mrb[0].mxu0
        %5200 = vdwg.mxu0
        %vm5201 = vcmask 73728
        %v5202 = vsel %vm5201, %v5196, -inf
        %5203 = vmax.xlane.f32.xlu0 %v5202
        %v5204 = vpop.xlane.xlu0 %5203
        %v5205 = vsub.f32 %v5196, %v5204
        %v5206 = vmul.f32 %v5205, 1.442695
        %v5207 = vpow.pop %v5206
        %v5208 = vsel %vm5201, %v5207, 0.0
        %5209 = vadd.xlane.f32.xlu0 %v5208
        %v5210 = vpop.xlane.xlu0 %5209
        %v5211 = vlog2.pop %v5210
        %v5212 = vmul.f32 %v5211, 0.6931472
        %v5213 = vsub.f32 %v5205, %v5212
        %5214 = vst.msk [vmem:[%s621] sm:$0x1] %vm5201, %v5213
        %s5215 = sand.u32 %s467, 1
        %s5216 = scalar_lea.sflag [#allocation3], %s5215
        %s5217 = sand.u32 %s467, 1
        %s5218 = scalar_lea.vmem [#allocation2], %s5217
        // Predicated region
        $region101: #{lenet5_forward.1} parent=99 // pred_check
          %p5219 = pneg %p477
        $region102: #{lenet5_forward.1} parent=99 // pred_check_branch
          %5221 = sbr.rel (%p5219) target = $region104
        $region103: #{lenet5_forward.1} parent=99 // pred_region
          %s5223 = ssub.s32 16, 16
          %5224 = vsyncadd %s5216, %s5223
          %s5225 = smul.addr %s34, 16
          %s5226 = scalar_lea.hbm %s20, %s5225
          %s5228 = sshll.u32 %s5218, 4
          %s5229 = int_to_ptr.vmem [resolvable:$true] %s5228
          %5231 = dma.vmem_to_hbm [thread:$0]  %s5229, 16, %s5226, %s5216
        $region104: #{lenet5_forward.1} parent=99 // pred_fallthru
          _
      $region100: #{lenet5_forward.1} parent=5 // pred_fallthru
        _
      %p5232 = scmp.le.s32.totalorder 2, %s29
      // Predicated region
      $region105: #{lenet5_forward.1} parent=5 // pred_check
        %p5233 = pneg %p5232
      $region106: #{lenet5_forward.1} parent=5 // pred_check_branch
        %5235 = sbr.rel (%p5233) target = $region108
      $region107: #{lenet5_forward.1} parent=5 // pred_region
        %s5236 = ssub.s32 %s29, 2
        // Predicated region
        $region109: #{lenet5_forward.1} parent=107 // pred_check
          %p5237 = pneg %p483
        $region110: #{lenet5_forward.1} parent=107 // pred_check_branch
          %5239 = sbr.rel (%p5237) target = $region112
        $region111: #{lenet5_forward.1} parent=107 // pred_region
          %s5240 = sand.u32 %s468, 1
          %s5241 = scalar_lea.sflag [#allocation3], %s5240
          %s5242 = sand.u32 %s468, 1
          %s5243 = scalar_lea.vmem [#allocation2], %s5242
          %5244 = dma.done %s5241, 16
        $region112: #{lenet5_forward.1} parent=107 // pred_fallthru
          _
      $region108: #{lenet5_forward.1} parent=5 // pred_fallthru
        _
    $region6: #{lenet5_forward.1} parent=1 // loop_footer
      %s33 = sadd.s32 1, %s29
    $region7: #{lenet5_forward.1} parent=1 // loop_footer_branch
      %28 = sbr.rel target = $region3
    $region8: #{lenet5_forward.1} parent=1 // loop_exit
      _
    %5245 = vsyncpa [#allocation3], 1
    %s5246 = scalar_lea.sflag [#allocation3], 1
    %5247 = vsyncpa %s5246, 1

</llo_original>
